<compile_context>
chip_gen: v7x
topology: tpu7x:2x2x1
jax: 0.10.0
libtpu: 0.0.40
codegen_flags: <defaults>
</compile_context>

<pallas_src>
import functools

import jax
import jax.numpy as jnp
from jax.experimental import pallas as pl
from jax.experimental.pallas import tpu as pltpu

SELU_ALPHA = 1.6732632423543772848170429916717
SELU_SCALE = 1.0507009873554804934193349852946


def _round_up(x, m):
    return (x + m - 1) // m * m


def _conv_im2col_kernel(x_ref, w_ref, b_ref, o_ref, slab_ref, *,
                        kh_taps, kw_taps, wp, cin, mg, apply_selu):
    # x_ref   : (1, cin, Lg)  zero-padded, channel-major, spatially-flattened
    #           canvas for this image group (Lg >= mg + max tap offset).
    # w_ref   : (cout, kh*kw*cin) weights, tap-major (kh, kw, cin).
    # b_ref   : (cout, 1) bias (matches the (cout, M) accumulator orientation).
    # o_ref   : (1, cout, mg) conv(+SELU) outputs on the flattened canvas grid.
    # slab_ref: (kh*kw*cin, mg) VMEM scratch holding the im2col slab.

    # Build the im2col slab: one shifted copy per tap (strided copies into the
    # scratch), then contract all taps/channels with ONE MXU matmul.
    for kh in range(kh_taps):
        for kw in range(kw_taps):
            t = kh * kw_taps + kw
            off = kh * wp + kw
            slab_ref[t * cin:(t + 1) * cin, :] = x_ref[0, :, off:off + mg]

    acc = jnp.dot(w_ref[...], slab_ref[...],
                  preferred_element_type=jnp.float32)          # (cout, mg)
    acc = acc + b_ref[...]                                     # lane-broadcast bias

    if apply_selu:
        # SELU.  exp(min(x, 0)) keeps the EUP off large positives / avoids
        # overflow; expm1's Mosaic lowering is not guaranteed and the
        # near-zero precision difference is ~1 f32 ulp here.
        neg = SELU_ALPHA * (jnp.exp(jnp.minimum(acc, 0.0)) - 1.0)
        acc = SELU_SCALE * jnp.where(acc > 0, acc, neg)

    o_ref[0] = acc.astype(o_ref.dtype)


def conv2d_maybe_selu(x, w, b, *, stride=1, padding=1, apply_selu=True,
                      num_groups=2):
    """NCHW Conv2d (+ optional SELU) as a single-matmul Pallas TPU kernel.

    x: (N, Cin, H, W), w: (Cout, Cin, KH, KW), b: (Cout,).
    Returns (N, Cout, OH, OW) float32.
    """
    N, Cin, H, W = x.shape
    Cout, Cin_w, KH, KW = w.shape
    assert Cin == Cin_w
    Hp, Wp = H + 2 * padding, W + 2 * padding
    OH = (Hp - KH) // stride + 1
    OW = (Wp - KW) // stride + 1

    # Grid over independent image groups; "parallel" -> both TCs on v7x.
    NT = num_groups if (N % num_groups == 0 and N >= num_groups) else 1
    Ng = N // NT

    # Lane-dense layout: channels on sublanes, flattened (image,row,col) canvas
    # on lanes.  Pad Cin to a sublane multiple (slab rows stay 8-aligned) and
    # zero-pad the lane tail so every tap's shifted window stays in bounds and
    # the output tile is an unmasked multiple of 128 lanes.
    CinP = _round_up(Cin, 8)
    Mg = _round_up(Ng * Hp * Wp, 128)                     # output lanes / group
    Lg = _round_up(Mg + (KH - 1) * Wp + (KW - 1), 128)    # input lanes / group

    xc = jnp.transpose(x, (1, 0, 2, 3)).astype(jnp.float32)        # (Cin,N,H,W)
    xc = jnp.pad(xc, ((0, CinP - Cin), (0, 0),
                      (padding, padding), (padding, padding)))     # zero border
    xg = xc.reshape(CinP, NT, Ng, Hp, Wp).transpose(1, 0, 2, 3, 4)
    xg = xg.reshape(NT, CinP, Ng * Hp * Wp)
    xg = jnp.pad(xg, ((0, 0), (0, 0), (0, Lg - Ng * Hp * Wp)))

    # Weights pre-flattened in the wrapper: (Cout, KH*KW*CinP), tap-major
    # (kh, kw, cin) to match the slab row order.  (Optionally cast operands to
    # bf16 here for higher MXU rate; kept f32 for exact parity with the ref.)
    wf = jnp.pad(w.astype(jnp.float32),
                 ((0, 0), (0, CinP - Cin), (0, 0), (0, 0)))
    wf = jnp.transpose(wf, (0, 2, 3, 1)).reshape(Cout, KH * KW * CinP)
    bf = b.astype(jnp.float32).reshape(Cout, 1)

    kernel = functools.partial(
        _conv_im2col_kernel, kh_taps=KH, kw_taps=KW, wp=Wp, cin=CinP, mg=Mg,
        apply_selu=apply_selu)

    out_g = pl.pallas_call(
        kernel,
        out_shape=jax.ShapeDtypeStruct((NT, Cout, Mg), jnp.float32),
        grid_spec=pltpu.PrefetchScalarGridSpec(
            num_scalar_prefetch=0,
            grid=(NT,),
            in_specs=[
                pl.BlockSpec((1, CinP, Lg), lambda t: (t, 0, 0)),
                pl.BlockSpec((Cout, KH * KW * CinP), lambda t: (0, 0)),
                pl.BlockSpec((Cout, 1), lambda t: (0, 0)),
            ],
            out_specs=pl.BlockSpec((1, Cout, Mg), lambda t: (t, 0, 0)),
            scratch_shapes=[pltpu.VMEM((KH * KW * CinP, Mg), jnp.float32)],
        ),
        compiler_params=pltpu.CompilerParams(
            dimension_semantics=("parallel",)),
    )(xg, wf, bf)

    # Valid conv outputs sit at canvas positions (stride*oh, stride*ow);
    # extraction / stride subsample / NCHW restore is free XLA plumbing.
    out = out_g[:, :, :Ng * Hp * Wp].reshape(NT, Cout, Ng, Hp, Wp)
    out = out[:, :, :, 0:stride * OH:stride, 0:stride * OW:stride]
    out = jnp.transpose(out, (0, 2, 1, 3, 4)).reshape(N, Cout, OH, OW)
    return out


def unary_mccnn_forward(left, right, params, *, stem_stride=2, padding=1):
    """UnaryMCCNN.forward: shared conv trunk applied to both views.

    params: list of (w, b) per conv layer; all layers but the last apply SELU,
    the first layer uses the stem stride.  left/right are folded into one
    batch so the batch feeds matmul columns and each layer is one launch.
    """
    x = jnp.concatenate([left, right], axis=0)
    n_layers = len(params)
    for i, (w, b) in enumerate(params):
        stride = stem_stride if i == 0 else 1
        apply_selu = i < n_layers - 1          # final Conv2d has no activation
        x = conv2d_maybe_selu(x, w, b, stride=stride, padding=padding,
                              apply_selu=apply_selu)
    un_l, un_r = jnp.split(x, 2, axis=0)
    return un_l, un_r


def init_params(key, *, num_layers=4, unary_ksize=3, unary_features=32,
                in_channels=3):
    params = []
    cin = in_channels
    for _ in range(num_layers):
        key, kw_, kb_ = jax.random.split(key, 3)
        fan_in = cin * unary_ksize * unary_ksize
        w = jax.random.normal(
            kw_, (unary_features, cin, unary_ksize, unary_ksize),
            jnp.float32) / jnp.sqrt(float(fan_in))
        b = 0.05 * jax.random.normal(kb_, (unary_features,), jnp.float32)
        params.append((w, b))
        cin = unary_features
    return params


def _reference_forward(left, right, params, *, stem_stride=2, padding=1):
    def trunk(x):
        n_layers = len(params)
        for i, (w, b) in enumerate(params):
            stride = stem_stride if i == 0 else 1
            x = jax.lax.conv_general_dilated(
                x, w, window_strides=(stride, stride),
                padding=[(padding, padding), (padding, padding)],
                dimension_numbers=("NCHW", "OIHW", "NCHW"),
                precision=jax.lax.Precision.HIGHEST)
            x = x + b[None, :, None, None]
            if i < n_layers - 1:
                x = jax.nn.selu(x)
        return x
    return trunk(left), trunk(right)


if __name__ == "__main__":
    key = jax.random.PRNGKey(0)
    kl, kr, kp = jax.random.split(key, 3)

    # Small shapes implied by the module defaults: 3-channel stereo views,
    # 16x16 spatial, batch 2; features=32, ksize=3, stem stride=2, 4 layers.
    B, C, H, W = 2, 3, 16, 16
    left = jax.random.normal(kl, (B, C, H, W), jnp.float32)
    right = jax.random.normal(kr, (B, C, H, W), jnp.float32)
    params = init_params(kp, num_layers=4, unary_ksize=3, unary_features=32,
                         in_channels=C)

    fwd = jax.jit(unary_mccnn_forward)
    un_l, un_r = fwd(left, right, params)
    un_l.block_until_ready()
    un_r.block_until_ready()

    ref_l, ref_r = _reference_forward(left, right, params)

    assert un_l.shape == (B, 32, 8, 8), un_l.shape
    assert un_r.shape == (B, 32, 8, 8), un_r.shape
    assert jnp.allclose(un_l, ref_l, atol=2e-2, rtol=2e-2), "left mismatch"
    assert jnp.allclose(un_r, ref_r, atol=2e-2, rtol=2e-2), "right mismatch"

    print("KERNEL_OK")
</pallas_src>

<mosaic_0001>
module attributes {stable_mosaic.version = 11 : i64} {
  func.func @_conv_im2col_kernel(%arg0: i32, %arg1: memref<1x8x896xf32, #tpu.memory_space<vmem>>, %arg2: memref<32x72xf32, #tpu.memory_space<vmem>>, %arg3: memref<32x1xf32, #tpu.memory_space<vmem>>, %arg4: memref<1x32x768xf32, #tpu.memory_space<vmem>>, %arg5: memref<72x768xf32, #tpu.memory_space<vmem>>) attributes {dimension_semantics = [#tpu.dimension_semantics<parallel>], iteration_bounds = array<i64: 2>, scalar_prefetch = 0 : i64, scratch_operands = 1 : i64, tpu.core_type = #tpu.core_type<tc>, window_params = [{transform_indices = @transform_0, window_bounds = array<i64: 1, 8, 896>}, {pipeline_mode = #tpu.pipeline_mode<synchronous>, transform_indices = @transform_1, window_bounds = array<i64: 32, 72>}, {pipeline_mode = #tpu.pipeline_mode<synchronous>, transform_indices = @transform_2, window_bounds = array<i64: 32, 1>}, {transform_indices = @transform_3, window_bounds = array<i64: 1, 32, 768>}]} {
    %c0 = arith.constant 0 : index
    %c0_0 = arith.constant 0 : index
    %c0_1 = arith.constant 0 : index
    %0 = vector.load %arg1[%c0, %c0_0, %c0_1] : memref<1x8x896xf32, #tpu.memory_space<vmem>>, vector<1x8x768xf32>
    %1 = vector.shape_cast %0 : vector<1x8x768xf32> to vector<8x768xf32>
    %c0_2 = arith.constant 0 : index
    %c0_3 = arith.constant 0 : index
    %2 = vector.load %arg5[%c0_2, %c0_3] : memref<72x768xf32, #tpu.memory_space<vmem>>, vector<8x768xf32>
    tpu.vector_store %arg5[%c0_2, %c0_3], %1 {strides = array<i32>} : memref<72x768xf32, #tpu.memory_space<vmem>>, vector<8x768xf32>,
    %c0_4 = arith.constant 0 : index
    %c0_5 = arith.constant 0 : index
    %c1 = arith.constant 1 : index
    %3 = vector.load %arg1[%c0_4, %c0_5, %c1] : memref<1x8x896xf32, #tpu.memory_space<vmem>>, vector<1x8x768xf32>
    %4 = vector.shape_cast %3 : vector<1x8x768xf32> to vector<8x768xf32>
    %c8 = arith.constant 8 : index
    %c0_6 = arith.constant 0 : index
    %5 = vector.load %arg5[%c8, %c0_6] : memref<72x768xf32, #tpu.memory_space<vmem>>, vector<8x768xf32>
    tpu.vector_store %arg5[%c8, %c0_6], %4 {strides = array<i32>} : memref<72x768xf32, #tpu.memory_space<vmem>>, vector<8x768xf32>,
    %c0_7 = arith.constant 0 : index
    %c0_8 = arith.constant 0 : index
    %c2 = arith.constant 2 : index
    %6 = vector.load %arg1[%c0_7, %c0_8, %c2] : memref<1x8x896xf32, #tpu.memory_space<vmem>>, vector<1x8x768xf32>
    %7 = vector.shape_cast %6 : vector<1x8x768xf32> to vector<8x768xf32>
    %c16 = arith.constant 16 : index
    %c0_9 = arith.constant 0 : index
    %8 = vector.load %arg5[%c16, %c0_9] : memref<72x768xf32, #tpu.memory_space<vmem>>, vector<8x768xf32>
    tpu.vector_store %arg5[%c16, %c0_9], %7 {strides = array<i32>} : memref<72x768xf32, #tpu.memory_space<vmem>>, vector<8x768xf32>,
    %c0_10 = arith.constant 0 : index
    %c0_11 = arith.constant 0 : index
    %c18 = arith.constant 18 : index
    %9 = vector.load %arg1[%c0_10, %c0_11, %c18] : memref<1x8x896xf32, #tpu.memory_space<vmem>>, vector<1x8x768xf32>
    %10 = vector.shape_cast %9 : vector<1x8x768xf32> to vector<8x768xf32>
    %c24 = arith.constant 24 : index
    %c0_12 = arith.constant 0 : index
    %11 = vector.load %arg5[%c24, %c0_12] : memref<72x768xf32, #tpu.memory_space<vmem>>, vector<8x768xf32>
    tpu.vector_store %arg5[%c24, %c0_12], %10 {strides = array<i32>} : memref<72x768xf32, #tpu.memory_space<vmem>>, vector<8x768xf32>,
    %c0_13 = arith.constant 0 : index
    %c0_14 = arith.constant 0 : index
    %c19 = arith.constant 19 : index
    %12 = vector.load %arg1[%c0_13, %c0_14, %c19] : memref<1x8x896xf32, #tpu.memory_space<vmem>>, vector<1x8x768xf32>
    %13 = vector.shape_cast %12 : vector<1x8x768xf32> to vector<8x768xf32>
    %c32 = arith.constant 32 : index
    %c0_15 = arith.constant 0 : index
    %14 = vector.load %arg5[%c32, %c0_15] : memref<72x768xf32, #tpu.memory_space<vmem>>, vector<8x768xf32>
    tpu.vector_store %arg5[%c32, %c0_15], %13 {strides = array<i32>} : memref<72x768xf32, #tpu.memory_space<vmem>>, vector<8x768xf32>,
    %c0_16 = arith.constant 0 : index
    %c0_17 = arith.constant 0 : index
    %c20 = arith.constant 20 : index
    %15 = vector.load %arg1[%c0_16, %c0_17, %c20] : memref<1x8x896xf32, #tpu.memory_space<vmem>>, vector<1x8x768xf32>
    %16 = vector.shape_cast %15 : vector<1x8x768xf32> to vector<8x768xf32>
    %c40 = arith.constant 40 : index
    %c0_18 = arith.constant 0 : index
    %17 = vector.load %arg5[%c40, %c0_18] : memref<72x768xf32, #tpu.memory_space<vmem>>, vector<8x768xf32>
    tpu.vector_store %arg5[%c40, %c0_18], %16 {strides = array<i32>} : memref<72x768xf32, #tpu.memory_space<vmem>>, vector<8x768xf32>,
    %c0_19 = arith.constant 0 : index
    %c0_20 = arith.constant 0 : index
    %c36 = arith.constant 36 : index
    %18 = vector.load %arg1[%c0_19, %c0_20, %c36] : memref<1x8x896xf32, #tpu.memory_space<vmem>>, vector<1x8x768xf32>
    %19 = vector.shape_cast %18 : vector<1x8x768xf32> to vector<8x768xf32>
    %c48 = arith.constant 48 : index
    %c0_21 = arith.constant 0 : index
    %20 = vector.load %arg5[%c48, %c0_21] : memref<72x768xf32, #tpu.memory_space<vmem>>, vector<8x768xf32>
    tpu.vector_store %arg5[%c48, %c0_21], %19 {strides = array<i32>} : memref<72x768xf32, #tpu.memory_space<vmem>>, vector<8x768xf32>,
    %c0_22 = arith.constant 0 : index
    %c0_23 = arith.constant 0 : index
    %c37 = arith.constant 37 : index
    %21 = vector.load %arg1[%c0_22, %c0_23, %c37] : memref<1x8x896xf32, #tpu.memory_space<vmem>>, vector<1x8x768xf32>
    %22 = vector.shape_cast %21 : vector<1x8x768xf32> to vector<8x768xf32>
    %c56 = arith.constant 56 : index
    %c0_24 = arith.constant 0 : index
    %23 = vector.load %arg5[%c56, %c0_24] : memref<72x768xf32, #tpu.memory_space<vmem>>, vector<8x768xf32>
    tpu.vector_store %arg5[%c56, %c0_24], %22 {strides = array<i32>} : memref<72x768xf32, #tpu.memory_space<vmem>>, vector<8x768xf32>,
    %c0_25 = arith.constant 0 : index
    %c0_26 = arith.constant 0 : index
    %c38 = arith.constant 38 : index
    %24 = vector.load %arg1[%c0_25, %c0_26, %c38] : memref<1x8x896xf32, #tpu.memory_space<vmem>>, vector<1x8x768xf32>
    %25 = vector.shape_cast %24 : vector<1x8x768xf32> to vector<8x768xf32>
    %c64 = arith.constant 64 : index
    %c0_27 = arith.constant 0 : index
    %26 = vector.load %arg5[%c64, %c0_27] : memref<72x768xf32, #tpu.memory_space<vmem>>, vector<8x768xf32>
    tpu.vector_store %arg5[%c64, %c0_27], %25 {strides = array<i32>} : memref<72x768xf32, #tpu.memory_space<vmem>>, vector<8x768xf32>,
    %c0_28 = arith.constant 0 : index
    %c0_29 = arith.constant 0 : index
    %27 = vector.load %arg2[%c0_28, %c0_29] : memref<32x72xf32, #tpu.memory_space<vmem>>, vector<32x72xf32>
    %c0_30 = arith.constant 0 : index
    %c0_31 = arith.constant 0 : index
    %28 = vector.load %arg5[%c0_30, %c0_31] : memref<72x768xf32, #tpu.memory_space<vmem>>, vector<72x768xf32>
    %cst = arith.constant dense<0.000000e+00> : vector<32x768xf32>
    %29 = tpu.matmul %27, %28, %cst {dimension_numbers = #tpu.dot_dimension_numbers<[1], [0], [0], [1], [0, 0, 1, 1], [], []>} : vector<32x72xf32>, vector<72x768xf32>, vector<32x768xf32> -> vector<32x768xf32>
    %c0_32 = arith.constant 0 : index
    %c0_33 = arith.constant 0 : index
    %30 = vector.load %arg3[%c0_32, %c0_33] : memref<32x1xf32, #tpu.memory_space<vmem>>, vector<32x1xf32>
    %31 = vector.broadcast %30 : vector<32x1xf32> to vector<32x768xf32>
    %32 = arith.addf %29, %31 : vector<32x768xf32>
    %cst_34 = arith.constant 0.000000e+00 : f32
    %33 = vector.broadcast %cst_34 : f32 to vector<32x768xf32>
    %34 = arith.minimumf %32, %33 : vector<32x768xf32>
    %35 = math.exp %34 : vector<32x768xf32>
    %cst_35 = arith.constant 1.000000e+00 : f32
    %36 = vector.broadcast %cst_35 : f32 to vector<32x768xf32>
    %37 = arith.subf %35, %36 : vector<32x768xf32>
    %cst_36 = arith.constant 1.67326319 : f32
    %38 = vector.broadcast %cst_36 : f32 to vector<32x768xf32>
    %39 = arith.mulf %38, %37 : vector<32x768xf32>
    %cst_37 = arith.constant 0.000000e+00 : f32
    %40 = vector.broadcast %cst_37 : f32 to vector<32x768xf32>
    %41 = arith.cmpf ogt, %32, %40 : vector<32x768xf32>
    %42 = arith.select %41, %32, %39 : vector<32x768xi1>, vector<32x768xf32>
    %cst_38 = arith.constant 1.05070102 : f32
    %43 = vector.broadcast %cst_38 : f32 to vector<32x768xf32>
    %44 = arith.mulf %43, %42 : vector<32x768xf32>
    %c0_39 = arith.constant 0 : index
    %c0_40 = arith.constant 0 : index
    %c0_41 = arith.constant 0 : index
    %45 = vector.load %arg4[%c0_39, %c0_40, %c0_41] : memref<1x32x768xf32, #tpu.memory_space<vmem>>, vector<1x32x768xf32>
    %46 = vector.shape_cast %45 : vector<1x32x768xf32> to vector<32x768xf32>
    %47 = vector.shape_cast %44 : vector<32x768xf32> to vector<1x32x768xf32>
    tpu.vector_store %arg4[%c0_39, %c0_40, %c0_41], %47 {strides = array<i32>} : memref<1x32x768xf32, #tpu.memory_space<vmem>>, vector<1x32x768xf32>,
    return
  }
  func.func @transform_0(%arg0: i32) -> (i32, i32, i32) {
    %c0_i32 = arith.constant 0 : i32
    %c0_i32_0 = arith.constant 0 : i32
    %c0_i32_1 = arith.constant 0 : i32
    return %arg0, %c0_i32, %c0_i32_0 : i32, i32, i32
  }
  func.func @transform_1(%arg0: i32) -> (i32, i32) {
    %c0_i32 = arith.constant 0 : i32
    %c0_i32_0 = arith.constant 0 : i32
    %c0_i32_1 = arith.constant 0 : i32
    return %c0_i32, %c0_i32_0 : i32, i32
  }
  func.func @transform_2(%arg0: i32) -> (i32, i32) {
    %c0_i32 = arith.constant 0 : i32
    %c0_i32_0 = arith.constant 0 : i32
    %c0_i32_1 = arith.constant 0 : i32
    return %c0_i32, %c0_i32_0 : i32, i32
  }
  func.func @transform_3(%arg0: i32) -> (i32, i32, i32) {
    %c0_i32 = arith.constant 0 : i32
    %c0_i32_0 = arith.constant 0 : i32
    %c0_i32_1 = arith.constant 0 : i32
    return %arg0, %c0_i32, %c0_i32_0 : i32, i32, i32
  }
}

module attributes {stable_mosaic.version = 11 : i64} {
  func.func @_conv_im2col_kernel(%arg0: i32, %arg1: memref<1x32x384xf32, #tpu.memory_space<vmem>>, %arg2: memref<32x288xf32, #tpu.memory_space<vmem>>, %arg3: memref<32x1xf32, #tpu.memory_space<vmem>>, %arg4: memref<1x32x256xf32, #tpu.memory_space<vmem>>, %arg5: memref<288x256xf32, #tpu.memory_space<vmem>>) attributes {dimension_semantics = [#tpu.dimension_semantics<parallel>], iteration_bounds = array<i64: 2>, scalar_prefetch = 0 : i64, scratch_operands = 1 : i64, tpu.core_type = #tpu.core_type<tc>, window_params = [{transform_indices = @transform_0, window_bounds = array<i64: 1, 32, 384>}, {pipeline_mode = #tpu.pipeline_mode<synchronous>, transform_indices = @transform_1, window_bounds = array<i64: 32, 288>}, {pipeline_mode = #tpu.pipeline_mode<synchronous>, transform_indices = @transform_2, window_bounds = array<i64: 32, 1>}, {transform_indices = @transform_3, window_bounds = array<i64: 1, 32, 256>}]} {
    %c0 = arith.constant 0 : index
    %c0_0 = arith.constant 0 : index
    %c0_1 = arith.constant 0 : index
    %0 = vector.load %arg1[%c0, %c0_0, %c0_1] : memref<1x32x384xf32, #tpu.memory_space<vmem>>, vector<1x32x256xf32>
    %1 = vector.shape_cast %0 : vector<1x32x256xf32> to vector<32x256xf32>
    %c0_2 = arith.constant 0 : index
    %c0_3 = arith.constant 0 : index
    %2 = vector.load %arg5[%c0_2, %c0_3] : memref<288x256xf32, #tpu.memory_space<vmem>>, vector<32x256xf32>
    tpu.vector_store %arg5[%c0_2, %c0_3], %1 {strides = array<i32>} : memref<288x256xf32, #tpu.memory_space<vmem>>, vector<32x256xf32>,
    %c0_4 = arith.constant 0 : index
    %c0_5 = arith.constant 0 : index
    %c1 = arith.constant 1 : index
    %3 = vector.load %arg1[%c0_4, %c0_5, %c1] : memref<1x32x384xf32, #tpu.memory_space<vmem>>, vector<1x32x256xf32>
    %4 = vector.shape_cast %3 : vector<1x32x256xf32> to vector<32x256xf32>
    %c32 = arith.constant 32 : index
    %c0_6 = arith.constant 0 : index
    %5 = vector.load %arg5[%c32, %c0_6] : memref<288x256xf32, #tpu.memory_space<vmem>>, vector<32x256xf32>
    tpu.vector_store %arg5[%c32, %c0_6], %4 {strides = array<i32>} : memref<288x256xf32, #tpu.memory_space<vmem>>, vector<32x256xf32>,
    %c0_7 = arith.constant 0 : index
    %c0_8 = arith.constant 0 : index
    %c2 = arith.constant 2 : index
    %6 = vector.load %arg1[%c0_7, %c0_8, %c2] : memref<1x32x384xf32, #tpu.memory_space<vmem>>, vector<1x32x256xf32>
    %7 = vector.shape_cast %6 : vector<1x32x256xf32> to vector<32x256xf32>
    %c64 = arith.constant 64 : index
    %c0_9 = arith.constant 0 : index
    %8 = vector.load %arg5[%c64, %c0_9] : memref<288x256xf32, #tpu.memory_space<vmem>>, vector<32x256xf32>
    tpu.vector_store %arg5[%c64, %c0_9], %7 {strides = array<i32>} : memref<288x256xf32, #tpu.memory_space<vmem>>, vector<32x256xf32>,
    %c0_10 = arith.constant 0 : index
    %c0_11 = arith.constant 0 : index
    %c10 = arith.constant 10 : index
    %9 = vector.load %arg1[%c0_10, %c0_11, %c10] : memref<1x32x384xf32, #tpu.memory_space<vmem>>, vector<1x32x256xf32>
    %10 = vector.shape_cast %9 : vector<1x32x256xf32> to vector<32x256xf32>
    %c96 = arith.constant 96 : index
    %c0_12 = arith.constant 0 : index
    %11 = vector.load %arg5[%c96, %c0_12] : memref<288x256xf32, #tpu.memory_space<vmem>>, vector<32x256xf32>
    tpu.vector_store %arg5[%c96, %c0_12], %10 {strides = array<i32>} : memref<288x256xf32, #tpu.memory_space<vmem>>, vector<32x256xf32>,
    %c0_13 = arith.constant 0 : index
    %c0_14 = arith.constant 0 : index
    %c11 = arith.constant 11 : index
    %12 = vector.load %arg1[%c0_13, %c0_14, %c11] : memref<1x32x384xf32, #tpu.memory_space<vmem>>, vector<1x32x256xf32>
    %13 = vector.shape_cast %12 : vector<1x32x256xf32> to vector<32x256xf32>
    %c128 = arith.constant 128 : index
    %c0_15 = arith.constant 0 : index
    %14 = vector.load %arg5[%c128, %c0_15] : memref<288x256xf32, #tpu.memory_space<vmem>>, vector<32x256xf32>
    tpu.vector_store %arg5[%c128, %c0_15], %13 {strides = array<i32>} : memref<288x256xf32, #tpu.memory_space<vmem>>, vector<32x256xf32>,
    %c0_16 = arith.constant 0 : index
    %c0_17 = arith.constant 0 : index
    %c12 = arith.constant 12 : index
    %15 = vector.load %arg1[%c0_16, %c0_17, %c12] : memref<1x32x384xf32, #tpu.memory_space<vmem>>, vector<1x32x256xf32>
    %16 = vector.shape_cast %15 : vector<1x32x256xf32> to vector<32x256xf32>
    %c160 = arith.constant 160 : index
    %c0_18 = arith.constant 0 : index
    %17 = vector.load %arg5[%c160, %c0_18] : memref<288x256xf32, #tpu.memory_space<vmem>>, vector<32x256xf32>
    tpu.vector_store %arg5[%c160, %c0_18], %16 {strides = array<i32>} : memref<288x256xf32, #tpu.memory_space<vmem>>, vector<32x256xf32>,
    %c0_19 = arith.constant 0 : index
    %c0_20 = arith.constant 0 : index
    %c20 = arith.constant 20 : index
    %18 = vector.load %arg1[%c0_19, %c0_20, %c20] : memref<1x32x384xf32, #tpu.memory_space<vmem>>, vector<1x32x256xf32>
    %19 = vector.shape_cast %18 : vector<1x32x256xf32> to vector<32x256xf32>
    %c192 = arith.constant 192 : index
    %c0_21 = arith.constant 0 : index
    %20 = vector.load %arg5[%c192, %c0_21] : memref<288x256xf32, #tpu.memory_space<vmem>>, vector<32x256xf32>
    tpu.vector_store %arg5[%c192, %c0_21], %19 {strides = array<i32>} : memref<288x256xf32, #tpu.memory_space<vmem>>, vector<32x256xf32>,
    %c0_22 = arith.constant 0 : index
    %c0_23 = arith.constant 0 : index
    %c21 = arith.constant 21 : index
    %21 = vector.load %arg1[%c0_22, %c0_23, %c21] : memref<1x32x384xf32, #tpu.memory_space<vmem>>, vector<1x32x256xf32>
    %22 = vector.shape_cast %21 : vector<1x32x256xf32> to vector<32x256xf32>
    %c224 = arith.constant 224 : index
    %c0_24 = arith.constant 0 : index
    %23 = vector.load %arg5[%c224, %c0_24] : memref<288x256xf32, #tpu.memory_space<vmem>>, vector<32x256xf32>
    tpu.vector_store %arg5[%c224, %c0_24], %22 {strides = array<i32>} : memref<288x256xf32, #tpu.memory_space<vmem>>, vector<32x256xf32>,
    %c0_25 = arith.constant 0 : index
    %c0_26 = arith.constant 0 : index
    %c22 = arith.constant 22 : index
    %24 = vector.load %arg1[%c0_25, %c0_26, %c22] : memref<1x32x384xf32, #tpu.memory_space<vmem>>, vector<1x32x256xf32>
    %25 = vector.shape_cast %24 : vector<1x32x256xf32> to vector<32x256xf32>
    %c256 = arith.constant 256 : index
    %c0_27 = arith.constant 0 : index
    %26 = vector.load %arg5[%c256, %c0_27] : memref<288x256xf32, #tpu.memory_space<vmem>>, vector<32x256xf32>
    tpu.vector_store %arg5[%c256, %c0_27], %25 {strides = array<i32>} : memref<288x256xf32, #tpu.memory_space<vmem>>, vector<32x256xf32>,
    %c0_28 = arith.constant 0 : index
    %c0_29 = arith.constant 0 : index
    %27 = vector.load %arg2[%c0_28, %c0_29] : memref<32x288xf32, #tpu.memory_space<vmem>>, vector<32x288xf32>
    %c0_30 = arith.constant 0 : index
    %c0_31 = arith.constant 0 : index
    %28 = vector.load %arg5[%c0_30, %c0_31] : memref<288x256xf32, #tpu.memory_space<vmem>>, vector<288x256xf32>
    %cst = arith.constant dense<0.000000e+00> : vector<32x256xf32>
    %29 = tpu.matmul %27, %28, %cst {dimension_numbers = #tpu.dot_dimension_numbers<[1], [0], [0], [1], [0, 0, 1, 1], [], []>} : vector<32x288xf32>, vector<288x256xf32>, vector<32x256xf32> -> vector<32x256xf32>
    %c0_32 = arith.constant 0 : index
    %c0_33 = arith.constant 0 : index
    %30 = vector.load %arg3[%c0_32, %c0_33] : memref<32x1xf32, #tpu.memory_space<vmem>>, vector<32x1xf32>
    %31 = vector.broadcast %30 : vector<32x1xf32> to vector<32x256xf32>
    %32 = arith.addf %29, %31 : vector<32x256xf32>
    %cst_34 = arith.constant 0.000000e+00 : f32
    %33 = vector.broadcast %cst_34 : f32 to vector<32x256xf32>
    %34 = arith.minimumf %32, %33 : vector<32x256xf32>
    %35 = math.exp %34 : vector<32x256xf32>
    %cst_35 = arith.constant 1.000000e+00 : f32
    %36 = vector.broadcast %cst_35 : f32 to vector<32x256xf32>
    %37 = arith.subf %35, %36 : vector<32x256xf32>
    %cst_36 = arith.constant 1.67326319 : f32
    %38 = vector.broadcast %cst_36 : f32 to vector<32x256xf32>
    %39 = arith.mulf %38, %37 : vector<32x256xf32>
    %cst_37 = arith.constant 0.000000e+00 : f32
    %40 = vector.broadcast %cst_37 : f32 to vector<32x256xf32>
    %41 = arith.cmpf ogt, %32, %40 : vector<32x256xf32>
    %42 = arith.select %41, %32, %39 : vector<32x256xi1>, vector<32x256xf32>
    %cst_38 = arith.constant 1.05070102 : f32
    %43 = vector.broadcast %cst_38 : f32 to vector<32x256xf32>
    %44 = arith.mulf %43, %42 : vector<32x256xf32>
    %c0_39 = arith.constant 0 : index
    %c0_40 = arith.constant 0 : index
    %c0_41 = arith.constant 0 : index
    %45 = vector.load %arg4[%c0_39, %c0_40, %c0_41] : memref<1x32x256xf32, #tpu.memory_space<vmem>>, vector<1x32x256xf32>
    %46 = vector.shape_cast %45 : vector<1x32x256xf32> to vector<32x256xf32>
    %47 = vector.shape_cast %44 : vector<32x256xf32> to vector<1x32x256xf32>
    tpu.vector_store %arg4[%c0_39, %c0_40, %c0_41], %47 {strides = array<i32>} : memref<1x32x256xf32, #tpu.memory_space<vmem>>, vector<1x32x256xf32>,
    return
  }
  func.func @transform_0(%arg0: i32) -> (i32, i32, i32) {
    %c0_i32 = arith.constant 0 : i32
    %c0_i32_0 = arith.constant 0 : i32
    %c0_i32_1 = arith.constant 0 : i32
    return %arg0, %c0_i32, %c0_i32_0 : i32, i32, i32
  }
  func.func @transform_1(%arg0: i32) -> (i32, i32) {
    %c0_i32 = arith.constant 0 : i32
    %c0_i32_0 = arith.constant 0 : i32
    %c0_i32_1 = arith.constant 0 : i32
    return %c0_i32, %c0_i32_0 : i32, i32
  }
  func.func @transform_2(%arg0: i32) -> (i32, i32) {
    %c0_i32 = arith.constant 0 : i32
    %c0_i32_0 = arith.constant 0 : i32
    %c0_i32_1 = arith.constant 0 : i32
    return %c0_i32, %c0_i32_0 : i32, i32
  }
  func.func @transform_3(%arg0: i32) -> (i32, i32, i32) {
    %c0_i32 = arith.constant 0 : i32
    %c0_i32_0 = arith.constant 0 : i32
    %c0_i32_1 = arith.constant 0 : i32
    return %arg0, %c0_i32, %c0_i32_0 : i32, i32, i32
  }
}

module attributes {stable_mosaic.version = 11 : i64} {
  func.func @_conv_im2col_kernel(%arg0: i32, %arg1: memref<1x32x384xf32, #tpu.memory_space<vmem>>, %arg2: memref<32x288xf32, #tpu.memory_space<vmem>>, %arg3: memref<32x1xf32, #tpu.memory_space<vmem>>, %arg4: memref<1x32x256xf32, #tpu.memory_space<vmem>>, %arg5: memref<288x256xf32, #tpu.memory_space<vmem>>) attributes {dimension_semantics = [#tpu.dimension_semantics<parallel>], iteration_bounds = array<i64: 2>, scalar_prefetch = 0 : i64, scratch_operands = 1 : i64, tpu.core_type = #tpu.core_type<tc>, window_params = [{transform_indices = @transform_0, window_bounds = array<i64: 1, 32, 384>}, {pipeline_mode = #tpu.pipeline_mode<synchronous>, transform_indices = @transform_1, window_bounds = array<i64: 32, 288>}, {pipeline_mode = #tpu.pipeline_mode<synchronous>, transform_indices = @transform_2, window_bounds = array<i64: 32, 1>}, {transform_indices = @transform_3, window_bounds = array<i64: 1, 32, 256>}]} {
    %c0 = arith.constant 0 : index
    %c0_0 = arith.constant 0 : index
    %c0_1 = arith.constant 0 : index
    %0 = vector.load %arg1[%c0, %c0_0, %c0_1] : memref<1x32x384xf32, #tpu.memory_space<vmem>>, vector<1x32x256xf32>
    %1 = vector.shape_cast %0 : vector<1x32x256xf32> to vector<32x256xf32>
    %c0_2 = arith.constant 0 : index
    %c0_3 = arith.constant 0 : index
    %2 = vector.load %arg5[%c0_2, %c0_3] : memref<288x256xf32, #tpu.memory_space<vmem>>, vector<32x256xf32>
    tpu.vector_store %arg5[%c0_2, %c0_3], %1 {strides = array<i32>} : memref<288x256xf32, #tpu.memory_space<vmem>>, vector<32x256xf32>,
    %c0_4 = arith.constant 0 : index
    %c0_5 = arith.constant 0 : index
    %c1 = arith.constant 1 : index
    %3 = vector.load %arg1[%c0_4, %c0_5, %c1] : memref<1x32x384xf32, #tpu.memory_space<vmem>>, vector<1x32x256xf32>
    %4 = vector.shape_cast %3 : vector<1x32x256xf32> to vector<32x256xf32>
    %c32 = arith.constant 32 : index
    %c0_6 = arith.constant 0 : index
    %5 = vector.load %arg5[%c32, %c0_6] : memref<288x256xf32, #tpu.memory_space<vmem>>, vector<32x256xf32>
    tpu.vector_store %arg5[%c32, %c0_6], %4 {strides = array<i32>} : memref<288x256xf32, #tpu.memory_space<vmem>>, vector<32x256xf32>,
    %c0_7 = arith.constant 0 : index
    %c0_8 = arith.constant 0 : index
    %c2 = arith.constant 2 : index
    %6 = vector.load %arg1[%c0_7, %c0_8, %c2] : memref<1x32x384xf32, #tpu.memory_space<vmem>>, vector<1x32x256xf32>
    %7 = vector.shape_cast %6 : vector<1x32x256xf32> to vector<32x256xf32>
    %c64 = arith.constant 64 : index
    %c0_9 = arith.constant 0 : index
    %8 = vector.load %arg5[%c64, %c0_9] : memref<288x256xf32, #tpu.memory_space<vmem>>, vector<32x256xf32>
    tpu.vector_store %arg5[%c64, %c0_9], %7 {strides = array<i32>} : memref<288x256xf32, #tpu.memory_space<vmem>>, vector<32x256xf32>,
    %c0_10 = arith.constant 0 : index
    %c0_11 = arith.constant 0 : index
    %c10 = arith.constant 10 : index
    %9 = vector.load %arg1[%c0_10, %c0_11, %c10] : memref<1x32x384xf32, #tpu.memory_space<vmem>>, vector<1x32x256xf32>
    %10 = vector.shape_cast %9 : vector<1x32x256xf32> to vector<32x256xf32>
    %c96 = arith.constant 96 : index
    %c0_12 = arith.constant 0 : index
    %11 = vector.load %arg5[%c96, %c0_12] : memref<288x256xf32, #tpu.memory_space<vmem>>, vector<32x256xf32>
    tpu.vector_store %arg5[%c96, %c0_12], %10 {strides = array<i32>} : memref<288x256xf32, #tpu.memory_space<vmem>>, vector<32x256xf32>,
    %c0_13 = arith.constant 0 : index
    %c0_14 = arith.constant 0 : index
    %c11 = arith.constant 11 : index
    %12 = vector.load %arg1[%c0_13, %c0_14, %c11] : memref<1x32x384xf32, #tpu.memory_space<vmem>>, vector<1x32x256xf32>
    %13 = vector.shape_cast %12 : vector<1x32x256xf32> to vector<32x256xf32>
    %c128 = arith.constant 128 : index
    %c0_15 = arith.constant 0 : index
    %14 = vector.load %arg5[%c128, %c0_15] : memref<288x256xf32, #tpu.memory_space<vmem>>, vector<32x256xf32>
    tpu.vector_store %arg5[%c128, %c0_15], %13 {strides = array<i32>} : memref<288x256xf32, #tpu.memory_space<vmem>>, vector<32x256xf32>,
    %c0_16 = arith.constant 0 : index
    %c0_17 = arith.constant 0 : index
    %c12 = arith.constant 12 : index
    %15 = vector.load %arg1[%c0_16, %c0_17, %c12] : memref<1x32x384xf32, #tpu.memory_space<vmem>>, vector<1x32x256xf32>
    %16 = vector.shape_cast %15 : vector<1x32x256xf32> to vector<32x256xf32>
    %c160 = arith.constant 160 : index
    %c0_18 = arith.constant 0 : index
    %17 = vector.load %arg5[%c160, %c0_18] : memref<288x256xf32, #tpu.memory_space<vmem>>, vector<32x256xf32>
    tpu.vector_store %arg5[%c160, %c0_18], %16 {strides = array<i32>} : memref<288x256xf32, #tpu.memory_space<vmem>>, vector<32x256xf32>,
    %c0_19 = arith.constant 0 : index
    %c0_20 = arith.constant 0 : index
    %c20 = arith.constant 20 : index
    %18 = vector.load %arg1[%c0_19, %c0_20, %c20] : memref<1x32x384xf32, #tpu.memory_space<vmem>>, vector<1x32x256xf32>
    %19 = vector.shape_cast %18 : vector<1x32x256xf32> to vector<32x256xf32>
    %c192 = arith.constant 192 : index
    %c0_21 = arith.constant 0 : index
    %20 = vector.load %arg5[%c192, %c0_21] : memref<288x256xf32, #tpu.memory_space<vmem>>, vector<32x256xf32>
    tpu.vector_store %arg5[%c192, %c0_21], %19 {strides = array<i32>} : memref<288x256xf32, #tpu.memory_space<vmem>>, vector<32x256xf32>,
    %c0_22 = arith.constant 0 : index
    %c0_23 = arith.constant 0 : index
    %c21 = arith.constant 21 : index
    %21 = vector.load %arg1[%c0_22, %c0_23, %c21] : memref<1x32x384xf32, #tpu.memory_space<vmem>>, vector<1x32x256xf32>
    %22 = vector.shape_cast %21 : vector<1x32x256xf32> to vector<32x256xf32>
    %c224 = arith.constant 224 : index
    %c0_24 = arith.constant 0 : index
    %23 = vector.load %arg5[%c224, %c0_24] : memref<288x256xf32, #tpu.memory_space<vmem>>, vector<32x256xf32>
    tpu.vector_store %arg5[%c224, %c0_24], %22 {strides = array<i32>} : memref<288x256xf32, #tpu.memory_space<vmem>>, vector<32x256xf32>,
    %c0_25 = arith.constant 0 : index
    %c0_26 = arith.constant 0 : index
    %c22 = arith.constant 22 : index
    %24 = vector.load %arg1[%c0_25, %c0_26, %c22] : memref<1x32x384xf32, #tpu.memory_space<vmem>>, vector<1x32x256xf32>
    %25 = vector.shape_cast %24 : vector<1x32x256xf32> to vector<32x256xf32>
    %c256 = arith.constant 256 : index
    %c0_27 = arith.constant 0 : index
    %26 = vector.load %arg5[%c256, %c0_27] : memref<288x256xf32, #tpu.memory_space<vmem>>, vector<32x256xf32>
    tpu.vector_store %arg5[%c256, %c0_27], %25 {strides = array<i32>} : memref<288x256xf32, #tpu.memory_space<vmem>>, vector<32x256xf32>,
    %c0_28 = arith.constant 0 : index
    %c0_29 = arith.constant 0 : index
    %27 = vector.load %arg2[%c0_28, %c0_29] : memref<32x288xf32, #tpu.memory_space<vmem>>, vector<32x288xf32>
    %c0_30 = arith.constant 0 : index
    %c0_31 = arith.constant 0 : index
    %28 = vector.load %arg5[%c0_30, %c0_31] : memref<288x256xf32, #tpu.memory_space<vmem>>, vector<288x256xf32>
    %cst = arith.constant dense<0.000000e+00> : vector<32x256xf32>
    %29 = tpu.matmul %27, %28, %cst {dimension_numbers = #tpu.dot_dimension_numbers<[1], [0], [0], [1], [0, 0, 1, 1], [], []>} : vector<32x288xf32>, vector<288x256xf32>, vector<32x256xf32> -> vector<32x256xf32>
    %c0_32 = arith.constant 0 : index
    %c0_33 = arith.constant 0 : index
    %30 = vector.load %arg3[%c0_32, %c0_33] : memref<32x1xf32, #tpu.memory_space<vmem>>, vector<32x1xf32>
    %31 = vector.broadcast %30 : vector<32x1xf32> to vector<32x256xf32>
    %32 = arith.addf %29, %31 : vector<32x256xf32>
    %c0_34 = arith.constant 0 : index
    %c0_35 = arith.constant 0 : index
    %c0_36 = arith.constant 0 : index
    %33 = vector.load %arg4[%c0_34, %c0_35, %c0_36] : memref<1x32x256xf32, #tpu.memory_space<vmem>>, vector<1x32x256xf32>
    %34 = vector.shape_cast %33 : vector<1x32x256xf32> to vector<32x256xf32>
    %35 = vector.shape_cast %32 : vector<32x256xf32> to vector<1x32x256xf32>
    tpu.vector_store %arg4[%c0_34, %c0_35, %c0_36], %35 {strides = array<i32>} : memref<1x32x256xf32, #tpu.memory_space<vmem>>, vector<1x32x256xf32>,
    return
  }
  func.func @transform_0(%arg0: i32) -> (i32, i32, i32) {
    %c0_i32 = arith.constant 0 : i32
    %c0_i32_0 = arith.constant 0 : i32
    %c0_i32_1 = arith.constant 0 : i32
    return %arg0, %c0_i32, %c0_i32_0 : i32, i32, i32
  }
  func.func @transform_1(%arg0: i32) -> (i32, i32) {
    %c0_i32 = arith.constant 0 : i32
    %c0_i32_0 = arith.constant 0 : i32
    %c0_i32_1 = arith.constant 0 : i32
    return %c0_i32, %c0_i32_0 : i32, i32
  }
  func.func @transform_2(%arg0: i32) -> (i32, i32) {
    %c0_i32 = arith.constant 0 : i32
    %c0_i32_0 = arith.constant 0 : i32
    %c0_i32_1 = arith.constant 0 : i32
    return %c0_i32, %c0_i32_0 : i32, i32
  }
  func.func @transform_3(%arg0: i32) -> (i32, i32, i32) {
    %c0_i32 = arith.constant 0 : i32
    %c0_i32_0 = arith.constant 0 : i32
    %c0_i32_1 = arith.constant 0 : i32
    return %arg0, %c0_i32, %c0_i32_0 : i32, i32, i32
  }
}

</mosaic_0001>

<llo_original>
// kernel: split.0
$region0: #{split.0}
  #allocation0 [shape = 'u32[2048]{0}', space=vmem, size = 0x2000, scoped, tag = 'scoped memory for split.0']
  #allocation1 [shape = 'u32[2048]{0}', space=vmem, size = 0x2000, scoped, tag = 'scoped memory for split.0']
  #allocation2 [shape = 'u32[2048]{0}', space=vmem, size = 0x2000, scoped, tag = 'scoped memory for split.0']
  #allocation3 [shape = 'u32[2048]{0}', space=vmem, size = 0x2000, scoped, tag = 'scoped memory for split.0']
  #allocation4 [shape = 'u32[2048]{0}', space=vmem, size = 0x2000, scoped, tag = 'scoped memory for split.0']
  #allocation7 [shape = 's32[1]{0}', space=sflag, size = 0x4, scoped, tag = 'scoped memory for split.0']
  %s0 = inlined_call_operand.vmem [shape: f32[4,32,8,8], index: 0, kind: input, shape index: {}]
  %s1 = inlined_call_operand.hbm [shape: f32[2,32,8,8], index: 1, kind: output, shape index: {}]
  $region1: #{split.0} parent=0
    #allocation5 [shape = 'u8[65536]{0}', space=vmem, size = 0x10000, scoped, tag = 'operand span for operand 1']
    #allocation6 [shape = 's32[1]{0}', space=sflag, size = 0x4, scoped, tag = 'scoped memory for split.0']
    %2 = vsyncpa [#allocation6], 0
    %s3 = scalar_lea.vmem %s0, 128
    %s4 = scalar_lea.vmem %s0, 128
    %s5 = scalar_lea.vmem %s0, 128
    %v6 = vld [vmem:[%s5] sm:$0xff]
    %7 = vst [vmem:[#allocation5] sm:$0xff] %v6
    %s8 = scalar_lea.vmem %s5, 64
    %v9 = vld [vmem:[%s8] sm:$0xff]
    %s10 = scalar_lea.vmem [#allocation5], 64
    %11 = vst [vmem:[%s10] sm:$0xff] %v9
    %s12 = scalar_lea.vmem %s5, 8
    %v13 = vld [vmem:[%s12] sm:$0xff]
    %s14 = scalar_lea.vmem [#allocation5], 8
    %15 = vst [vmem:[%s14] sm:$0xff] %v13
    %s16 = scalar_lea.vmem %s5, 72
    %v17 = vld [vmem:[%s16] sm:$0xff]
    %s18 = scalar_lea.vmem [#allocation5], 72
    %19 = vst [vmem:[%s18] sm:$0xff] %v17
    %s20 = scalar_lea.vmem %s5, 16
    %v21 = vld [vmem:[%s20] sm:$0xff]
    %s22 = scalar_lea.vmem [#allocation5], 16
    %23 = vst [vmem:[%s22] sm:$0xff] %v21
    %s24 = scalar_lea.vmem %s5, 80
    %v25 = vld [vmem:[%s24] sm:$0xff]
    %s26 = scalar_lea.vmem [#allocation5], 80
    %27 = vst [vmem:[%s26] sm:$0xff] %v25
    %s28 = scalar_lea.vmem %s5, 24
    %v29 = vld [vmem:[%s28] sm:$0xff]
    %s30 = scalar_lea.vmem [#allocation5], 24
    %31 = vst [vmem:[%s30] sm:$0xff] %v29
    %s32 = scalar_lea.vmem %s5, 88
    %v33 = vld [vmem:[%s32] sm:$0xff]
    %s34 = scalar_lea.vmem [#allocation5], 88
    %35 = vst [vmem:[%s34] sm:$0xff] %v33
    %s36 = scalar_lea.vmem %s5, 32
    %v37 = vld [vmem:[%s36] sm:$0xff]
    %s38 = scalar_lea.vmem [#allocation5], 32
    %39 = vst [vmem:[%s38] sm:$0xff] %v37
    %s40 = scalar_lea.vmem %s5, 96
    %v41 = vld [vmem:[%s40] sm:$0xff]
    %s42 = scalar_lea.vmem [#allocation5], 96
    %43 = vst [vmem:[%s42] sm:$0xff] %v41
    %s44 = scalar_lea.vmem %s5, 40
    %v45 = vld [vmem:[%s44] sm:$0xff]
    %s46 = scalar_lea.vmem [#allocation5], 40
    %47 = vst [vmem:[%s46] sm:$0xff] %v45
    %s48 = scalar_lea.vmem %s5, 104
    %v49 = vld [vmem:[%s48] sm:$0xff]
    %s50 = scalar_lea.vmem [#allocation5], 104
    %51 = vst [vmem:[%s50] sm:$0xff] %v49
    %s52 = scalar_lea.vmem %s5, 48
    %v53 = vld [vmem:[%s52] sm:$0xff]
    %s54 = scalar_lea.vmem [#allocation5], 48
    %55 = vst [vmem:[%s54] sm:$0xff] %v53
    %s56 = scalar_lea.vmem %s5, 112
    %v57 = vld [vmem:[%s56] sm:$0xff]
    %s58 = scalar_lea.vmem [#allocation5], 112
    %59 = vst [vmem:[%s58] sm:$0xff] %v57
    %s60 = scalar_lea.vmem %s5, 56
    %v61 = vld [vmem:[%s60] sm:$0xff]
    %s62 = scalar_lea.vmem [#allocation5], 56
    %63 = vst [vmem:[%s62] sm:$0xff] %v61
    %s64 = scalar_lea.vmem %s5, 120
    %v65 = vld [vmem:[%s64] sm:$0xff]
    %s66 = scalar_lea.vmem [#allocation5], 120
    %67 = vst [vmem:[%s66] sm:$0xff] %v65
    %s69 = ssub.s32 2048, 2048
    %70 = vsyncadd [#allocation6], %s69
    %s71 = sshll.u32 [#allocation5], 4
    %s72 = int_to_ptr.vmem [resolvable:$true] %s71
    %77 = dma.vmem_to_hbm [thread:$0]  %s72, 2048, %s1, [#allocation6], 128, 128, 8
    %78 = dma.done [#allocation6], 2048
    %79 = vsyncpa [#allocation6], 1

// kernel: unary_mccnn_forward.4
$region0: #{unary_mccnn_forward.4}
  #allocation0 [shape = 'u32[]', space=smem, size = 0x4, offset = 0x4, fixed_abs, tag = 'smem constant byte address 0x4 - core index']
  #allocation1 [shape = 'u32[144,128]{1,0:T(1,128)}', space=vmem, size = 0x12000, scoped, tag = 'internal scratch']
  #allocation2 [shape = 'f32[72,768]{1,0:T(8,128)}', space=vmem, size = 0x36000, scoped, tag = 'scratch operand']
  %s0 = inlined_call_operand.vmem [shape: f32[2,8,896], index: 0, kind: input, shape index: {}]
  %s1 = inlined_call_operand.vmem [shape: f32[32,72], index: 1, kind: input, shape index: {}]
  %s2 = inlined_call_operand.vmem [shape: f32[32,1], index: 2, kind: input, shape index: {}]
  %s3 = inlined_call_operand.vmem [shape: f32[2,32,768], index: 3, kind: output, shape index: {}]
  %s4 = sld [smem:[#allocation0]]
  $region45: #{unary_mccnn_forward.4} parent=0
    _
  %s6 = ssub.s32 1, %s4
  %s7 = scalar_select 0, %s6, %s4
  loop: start=0, step=1, limit=4
  $region2: #{unary_mccnn_forward.4} parent=0 // loop_pre_header
    _
  $region3: #{unary_mccnn_forward.4} parent=0 // loop_header
    %s9 = sphi 0, %s13
    %p10 = scmp.ge.s32.totalorder %s9, 4
    %s19 = sphi 0, %s21
    %s22 = sphi 0, %s19
    %s23 = sphi 0, %s22
    %s39 = sphi 0, %s23
    %s43 = sphi 0, %s43
    %s45 = sphi 0, %s43
    %s46 = sphi 0, %s45
    %s60 = sphi 0, %s46
    %s64 = sphi 0, %s64
    %s66 = sphi 0, %s64
    %s67 = sphi 0, %s66
    %s81 = sphi 0, %s67
    %s87 = sphi 0, %s89
    %s90 = sphi 0, %s87
    %s91 = sphi 0, %s90
    %s107 = sphi 0, %s91
  $region4: #{unary_mccnn_forward.4} parent=0 // loop_header_branch
    %12 = sbr.rel (%p10) target = $region8
  $region5: #{unary_mccnn_forward.4} parent=0 // loop_body
    %s14 = ssub.s32 %s9, 1
    %s15 = ssub.s32 %s9, 2
    %s16 = sadd.s32 %s9, 1
    %s17 = ssub.s32 %s9, %s16
    %p18 = scmp.eq.s32.totalorder %s17, 0
    %s20 = sadd.s32 %s19, 1
    %s21 = scalar_select %p18, %s19, %s20
    %p24 = pneg %p18
    %p25 = scmp.eq.s32.totalorder %s9, 1
    %p26 = por %p24, %p25
    %p27 = scmp.ne.s32.totalorder %s19, %s22
    %p28 = scmp.eq.s32.totalorder %s9, 0
    %p29 = por %p27, %p28
    %p30 = scmp.ne.s32.totalorder %s19, %s22
    %p31 = scmp.eq.s32.totalorder %s14, 1
    %p32 = por %p30, %p31
    %p33 = scmp.ne.s32.totalorder %s22, %s23
    %p34 = scmp.eq.s32.totalorder %s14, 0
    %p35 = por %p33, %p34
    %p36 = scmp.ne.s32.totalorder %s22, %s23
    %p37 = scmp.eq.s32.totalorder %s15, 1
    %p38 = por %p36, %p37
    %p40 = scmp.ne.s32.totalorder %s23, %s39
    %p41 = scmp.eq.s32.totalorder %s15, 0
    %p42 = por %p40, %p41
    %s44 = sadd.s32 %s43, 1
    %p47 = scmp.eq.s32.totalorder %s9, 1
    %p48 = scmp.ne.s32.totalorder %s43, %s45
    %p49 = scmp.eq.s32.totalorder %s9, 0
    %p50 = por %p48, %p49
    %p51 = scmp.ne.s32.totalorder %s43, %s45
    %p52 = scmp.eq.s32.totalorder %s14, 1
    %p53 = por %p51, %p52
    %p54 = scmp.ne.s32.totalorder %s45, %s46
    %p55 = scmp.eq.s32.totalorder %s14, 0
    %p56 = por %p54, %p55
    %p57 = scmp.ne.s32.totalorder %s45, %s46
    %p58 = scmp.eq.s32.totalorder %s15, 1
    %p59 = por %p57, %p58
    %p61 = scmp.ne.s32.totalorder %s46, %s60
    %p62 = scmp.eq.s32.totalorder %s15, 0
    %p63 = por %p61, %p62
    %s65 = sadd.s32 %s64, 1
    %p68 = scmp.eq.s32.totalorder %s9, 1
    %p69 = scmp.ne.s32.totalorder %s64, %s66
    %p70 = scmp.eq.s32.totalorder %s9, 0
    %p71 = por %p69, %p70
    %p72 = scmp.ne.s32.totalorder %s64, %s66
    %p73 = scmp.eq.s32.totalorder %s14, 1
    %p74 = por %p72, %p73
    %p75 = scmp.ne.s32.totalorder %s66, %s67
    %p76 = scmp.eq.s32.totalorder %s14, 0
    %p77 = por %p75, %p76
    %p78 = scmp.ne.s32.totalorder %s66, %s67
    %p79 = scmp.eq.s32.totalorder %s15, 1
    %p80 = por %p78, %p79
    %p82 = scmp.ne.s32.totalorder %s67, %s81
    %p83 = scmp.eq.s32.totalorder %s15, 0
    %p84 = por %p82, %p83
    %s85 = ssub.s32 %s9, %s16
    %p86 = scmp.eq.s32.totalorder %s85, 0
    %s88 = sadd.s32 %s87, 1
    %s89 = scalar_select %p86, %s87, %s88
    %p92 = pneg %p86
    %p93 = scmp.eq.s32.totalorder %s9, 1
    %p94 = por %p92, %p93
    %p95 = scmp.ne.s32.totalorder %s87, %s90
    %p96 = scmp.eq.s32.totalorder %s9, 0
    %p97 = por %p95, %p96
    %p98 = scmp.ne.s32.totalorder %s87, %s90
    %p99 = scmp.eq.s32.totalorder %s14, 1
    %p100 = por %p98, %p99
    %p101 = scmp.ne.s32.totalorder %s90, %s91
    %p102 = scmp.eq.s32.totalorder %s14, 0
    %p103 = por %p101, %p102
    %p104 = scmp.ne.s32.totalorder %s90, %s91
    %p105 = scmp.eq.s32.totalorder %s15, 1
    %p106 = por %p104, %p105
    %p108 = scmp.ne.s32.totalorder %s91, %s107
    %p109 = scmp.eq.s32.totalorder %s15, 0
    %p110 = por %p108, %p109
    %p111 = scmp.le.s32.totalorder 1, %s9
    %p112 = scmp.lt.s32.totalorder %s9, 3
    %p113 = pnand %p111, %p112
    %p114 = pneg %p113
    // Predicated region
    $region9: #{unary_mccnn_forward.4} parent=5 // pred_check
      _
    $region10: #{unary_mccnn_forward.4} parent=5 // pred_check_branch
      %116 = sbr.rel (%p113) target = $region12
    $region11: #{unary_mccnn_forward.4} parent=5 // pred_region
      %s117 = ssub.s32 %s9, 1
      // Predicated region
      $region13: #{unary_mccnn_forward.4} parent=11 // pred_check
        %p118 = pneg %p56
      $region14: #{unary_mccnn_forward.4} parent=11 // pred_check_branch
        %120 = sbr.rel (%p118) target = $region16
      $region15: #{unary_mccnn_forward.4} parent=11 // pred_region
        _
      $region16: #{unary_mccnn_forward.4} parent=11 // pred_fallthru
        _
      // Predicated region
      $region17: #{unary_mccnn_forward.4} parent=11 // pred_check
        %p121 = pneg %p77
      $region18: #{unary_mccnn_forward.4} parent=11 // pred_check_branch
        %123 = sbr.rel (%p121) target = $region20
      $region19: #{unary_mccnn_forward.4} parent=11 // pred_region
        _
      $region20: #{unary_mccnn_forward.4} parent=11 // pred_fallthru
        _
    $region12: #{unary_mccnn_forward.4} parent=5 // pred_fallthru
      _
    %p124 = scmp.lt.s32.totalorder %s9, 2
    // Predicated region
    $region21: #{unary_mccnn_forward.4} parent=5 // pred_check
      %p125 = pneg %p124
    $region22: #{unary_mccnn_forward.4} parent=5 // pred_check_branch
      %127 = sbr.rel (%p125) target = $region24
    $region23: #{unary_mccnn_forward.4} parent=5 // pred_region
      // Predicated region
      $region25: #{unary_mccnn_forward.4} parent=23 // pred_check
        %p128 = pneg %p29
      $region26: #{unary_mccnn_forward.4} parent=23 // pred_check_branch
        %130 = sbr.rel (%p128) target = $region28
      $region27: #{unary_mccnn_forward.4} parent=23 // pred_region
        %p131 = scmp.lt.s32.totalorder %s9, 1
        %s132 = scalar_select %p131, %s9, 1
        %s133 = smul.addr %s132, 7
        %s134 = smul.addr %s133, 8
        %s135 = scalar_lea.vmem %s0, %s134
      $region28: #{unary_mccnn_forward.4} parent=23 // pred_fallthru
        _
    $region24: #{unary_mccnn_forward.4} parent=5 // pred_fallthru
      _
    %p136 = scmp.le.s32.totalorder 1, %s9
    %p137 = scmp.lt.s32.totalorder %s9, 3
    %p138 = pnand %p136, %p137
    %p139 = pneg %p138
    // Predicated region
    $region29: #{unary_mccnn_forward.4} parent=5 // pred_check
      _
    $region30: #{unary_mccnn_forward.4} parent=5 // pred_check_branch
      %141 = sbr.rel (%p138) target = $region32
    $region31: #{unary_mccnn_forward.4} parent=5 // pred_region
      %s142 = ssub.s32 %s9, 1
      %p143 = scmp.lt.s32.totalorder %s14, 1
      %s144 = scalar_select %p143, %s14, 1
      %s145 = smul.addr %s144, 7
      %s146 = smul.addr %s145, 8
      %s147 = scalar_lea.vmem %s0, %s146
      %p148 = pneg %p35
      %p149 = pneg %p32
      %p150 = pneg %p56
      %p151 = pneg %p53
      %p152 = pneg %p77
      %p153 = pneg %p74
      %p154 = pneg %p103
      %p155 = pneg %p100
      %p156 = scmp.lt.s32.totalorder %s14, 1
      %s157 = scalar_select %p156, %s14, 1
      %s158 = smul.addr %s157, 24
      %s159 = smul.addr %s158, 8
      %s160 = scalar_lea.vmem %s3, %s159
      %p161 = scmp.lt.s32.totalorder %s14, 1
      %s162 = scalar_select %p161, %s14, 1
      %s163 = smul.addr %s162, 7
      %s164 = smul.addr %s163, 8
      %s165 = scalar_lea.vmem %s0, %s164
      %p166 = scmp.lt.s32.totalorder %s14, 1
      %s167 = scalar_select %p166, %s14, 1
      %s168 = smul.addr %s167, 24
      %s169 = smul.addr %s168, 8
      %s170 = scalar_lea.vmem %s3, %s169
      %v171 = vld [vmem:[%s165] sm:$0xff]
      %v172 = vld [vmem:[%s165 + $0x8] sm:$0xff]
      %v173 = vld [vmem:[%s165 + $0x10] sm:$0xff]
      %v174 = vld [vmem:[%s165 + $0x18] sm:$0xff]
      %v175 = vld [vmem:[%s165 + $0x20] sm:$0xff]
      %v176 = vld [vmem:[%s165 + $0x28] sm:$0xff]
      %177 = vst [vmem:[#allocation2] sm:$0xff] %v171
      %178 = vst [vmem:[#allocation2 + $0x8] sm:$0xff] %v172
      %179 = vst [vmem:[#allocation2 + $0x10] sm:$0xff] %v173
      %180 = vst [vmem:[#allocation2 + $0x18] sm:$0xff] %v174
      %181 = vst [vmem:[#allocation2 + $0x20] sm:$0xff] %v175
      %182 = vst [vmem:[#allocation2 + $0x28] sm:$0xff] %v176
      %v183 = vld [vmem:[%s165] sm:$0xff]
      %v184 = vld [vmem:[%s165 + $0x8] sm:$0xff]
      %v185 = vld [vmem:[%s165 + $0x10] sm:$0xff]
      %v186 = vld [vmem:[%s165 + $0x18] sm:$0xff]
      %v187 = vld [vmem:[%s165 + $0x20] sm:$0xff]
      %v188 = vld [vmem:[%s165 + $0x28] sm:$0xff]
      %v189 = vld [vmem:[%s165 + $0x30] sm:$0xff]
      %197 = vrot.lane.b32.xlu0 %v183, 127
      %v198 = vpop.permute.xlu0 %197
      %199 = vrot.lane.b32.xlu0 %v184, 127
      %v200 = vpop.permute.xlu0 %199
      %201 = vrot.lane.b32.xlu0 %v185, 127
      %v202 = vpop.permute.xlu0 %201
      %203 = vrot.lane.b32.xlu0 %v186, 127
      %v204 = vpop.permute.xlu0 %203
      %205 = vrot.lane.b32.xlu0 %v187, 127
      %v206 = vpop.permute.xlu0 %205
      %207 = vrot.lane.b32.xlu0 %v188, 127
      %v208 = vpop.permute.xlu0 %207
      %209 = vrot.lane.b32.xlu0 %v189, 127
      %v210 = vpop.permute.xlu0 %209
      %vm211 = vcmask 1039360
      %v212 = vsel %vm211, %v198, %v200
      %v213 = vsel %vm211, %v200, %v202
      %v214 = vsel %vm211, %v202, %v204
      %v215 = vsel %vm211, %v204, %v206
      %v216 = vsel %vm211, %v206, %v208
      %v217 = vsel %vm211, %v208, %v210
      %224 = vst [vmem:[#allocation2 + $0x30] sm:$0xff] %v212
      %225 = vst [vmem:[#allocation2 + $0x38] sm:$0xff] %v213
      %226 = vst [vmem:[#allocation2 + $0x40] sm:$0xff] %v214
      %227 = vst [vmem:[#allocation2 + $0x48] sm:$0xff] %v215
      %228 = vst [vmem:[#allocation2 + $0x50] sm:$0xff] %v216
      %229 = vst [vmem:[#allocation2 + $0x58] sm:$0xff] %v217
      %v230 = vld [vmem:[%s165] sm:$0xff]
      %v231 = vld [vmem:[%s165 + $0x8] sm:$0xff]
      %v232 = vld [vmem:[%s165 + $0x10] sm:$0xff]
      %v233 = vld [vmem:[%s165 + $0x18] sm:$0xff]
      %v234 = vld [vmem:[%s165 + $0x20] sm:$0xff]
      %v235 = vld [vmem:[%s165 + $0x28] sm:$0xff]
      %v236 = vld [vmem:[%s165 + $0x30] sm:$0xff]
      %244 = vrot.lane.b32.xlu0 %v230, 126
      %v245 = vpop.permute.xlu0 %244
      %246 = vrot.lane.b32.xlu0 %v231, 126
      %v247 = vpop.permute.xlu0 %246
      %248 = vrot.lane.b32.xlu0 %v232, 126
      %v249 = vpop.permute.xlu0 %248
      %250 = vrot.lane.b32.xlu0 %v233, 126
      %v251 = vpop.permute.xlu0 %250
      %252 = vrot.lane.b32.xlu0 %v234, 126
      %v253 = vpop.permute.xlu0 %252
      %254 = vrot.lane.b32.xlu0 %v235, 126
      %v255 = vpop.permute.xlu0 %254
      %256 = vrot.lane.b32.xlu0 %v236, 126
      %v257 = vpop.permute.xlu0 %256
      %vm258 = vcmask 1031168
      %v259 = vsel %vm258, %v245, %v247
      %v260 = vsel %vm258, %v247, %v249
      %v261 = vsel %vm258, %v249, %v251
      %v262 = vsel %vm258, %v251, %v253
      %v263 = vsel %vm258, %v253, %v255
      %v264 = vsel %vm258, %v255, %v257
      %271 = vst [vmem:[#allocation2 + $0x60] sm:$0xff] %v259
      %272 = vst [vmem:[#allocation2 + $0x68] sm:$0xff] %v260
      %273 = vst [vmem:[#allocation2 + $0x70] sm:$0xff] %v261
      %274 = vst [vmem:[#allocation2 + $0x78] sm:$0xff] %v262
      %275 = vst [vmem:[#allocation2 + $0x80] sm:$0xff] %v263
      %276 = vst [vmem:[#allocation2 + $0x88] sm:$0xff] %v264
      %v277 = vld [vmem:[%s165] sm:$0xff]
      %v278 = vld [vmem:[%s165 + $0x8] sm:$0xff]
      %v279 = vld [vmem:[%s165 + $0x10] sm:$0xff]
      %v280 = vld [vmem:[%s165 + $0x18] sm:$0xff]
      %v281 = vld [vmem:[%s165 + $0x20] sm:$0xff]
      %v282 = vld [vmem:[%s165 + $0x28] sm:$0xff]
      %v283 = vld [vmem:[%s165 + $0x30] sm:$0xff]
      %291 = vrot.lane.b32.xlu0 %v277, 110
      %v292 = vpop.permute.xlu0 %291
      %293 = vrot.lane.b32.xlu0 %v278, 110
      %v294 = vpop.permute.xlu0 %293
      %295 = vrot.lane.b32.xlu0 %v279, 110
      %v296 = vpop.permute.xlu0 %295
      %297 = vrot.lane.b32.xlu0 %v280, 110
      %v298 = vpop.permute.xlu0 %297
      %299 = vrot.lane.b32.xlu0 %v281, 110
      %v300 = vpop.permute.xlu0 %299
      %301 = vrot.lane.b32.xlu0 %v282, 110
      %v302 = vpop.permute.xlu0 %301
      %303 = vrot.lane.b32.xlu0 %v283, 110
      %v304 = vpop.permute.xlu0 %303
      %vm305 = vcmask 900096
      %v306 = vsel %vm305, %v292, %v294
      %v307 = vsel %vm305, %v294, %v296
      %v308 = vsel %vm305, %v296, %v298
      %v309 = vsel %vm305, %v298, %v300
      %v310 = vsel %vm305, %v300, %v302
      %v311 = vsel %vm305, %v302, %v304
      %318 = vst [vmem:[#allocation2 + $0x90] sm:$0xff] %v306
      %319 = vst [vmem:[#allocation2 + $0x98] sm:$0xff] %v307
      %320 = vst [vmem:[#allocation2 + $0xa0] sm:$0xff] %v308
      %321 = vst [vmem:[#allocation2 + $0xa8] sm:$0xff] %v309
      %322 = vst [vmem:[#allocation2 + $0xb0] sm:$0xff] %v310
      %323 = vst [vmem:[#allocation2 + $0xb8] sm:$0xff] %v311
      %v324 = vld [vmem:[%s165] sm:$0xff]
      %v325 = vld [vmem:[%s165 + $0x8] sm:$0xff]
      %v326 = vld [vmem:[%s165 + $0x10] sm:$0xff]
      %v327 = vld [vmem:[%s165 + $0x18] sm:$0xff]
      %v328 = vld [vmem:[%s165 + $0x20] sm:$0xff]
      %v329 = vld [vmem:[%s165 + $0x28] sm:$0xff]
      %v330 = vld [vmem:[%s165 + $0x30] sm:$0xff]
      %338 = vrot.lane.b32.xlu0 %v324, 109
      %v339 = vpop.permute.xlu0 %338
      %340 = vrot.lane.b32.xlu0 %v325, 109
      %v341 = vpop.permute.xlu0 %340
      %342 = vrot.lane.b32.xlu0 %v326, 109
      %v343 = vpop.permute.xlu0 %342
      %344 = vrot.lane.b32.xlu0 %v327, 109
      %v345 = vpop.permute.xlu0 %344
      %346 = vrot.lane.b32.xlu0 %v328, 109
      %v347 = vpop.permute.xlu0 %346
      %348 = vrot.lane.b32.xlu0 %v329, 109
      %v349 = vpop.permute.xlu0 %348
      %350 = vrot.lane.b32.xlu0 %v330, 109
      %v351 = vpop.permute.xlu0 %350
      %vm352 = vcmask 891904
      %v353 = vsel %vm352, %v339, %v341
      %v354 = vsel %vm352, %v341, %v343
      %v355 = vsel %vm352, %v343, %v345
      %v356 = vsel %vm352, %v345, %v347
      %v357 = vsel %vm352, %v347, %v349
      %v358 = vsel %vm352, %v349, %v351
      %365 = vst [vmem:[#allocation2 + $0xc0] sm:$0xff] %v353
      %366 = vst [vmem:[#allocation2 + $0xc8] sm:$0xff] %v354
      %367 = vst [vmem:[#allocation2 + $0xd0] sm:$0xff] %v355
      %368 = vst [vmem:[#allocation2 + $0xd8] sm:$0xff] %v356
      %369 = vst [vmem:[#allocation2 + $0xe0] sm:$0xff] %v357
      %370 = vst [vmem:[#allocation2 + $0xe8] sm:$0xff] %v358
      %v371 = vld [vmem:[%s165] sm:$0xff]
      %v372 = vld [vmem:[%s165 + $0x8] sm:$0xff]
      %v373 = vld [vmem:[%s165 + $0x10] sm:$0xff]
      %v374 = vld [vmem:[%s165 + $0x18] sm:$0xff]
      %v375 = vld [vmem:[%s165 + $0x20] sm:$0xff]
      %v376 = vld [vmem:[%s165 + $0x28] sm:$0xff]
      %v377 = vld [vmem:[%s165 + $0x30] sm:$0xff]
      %385 = vrot.lane.b32.xlu0 %v371, 108
      %v386 = vpop.permute.xlu0 %385
      %387 = vrot.lane.b32.xlu0 %v372, 108
      %v388 = vpop.permute.xlu0 %387
      %389 = vrot.lane.b32.xlu0 %v373, 108
      %v390 = vpop.permute.xlu0 %389
      %391 = vrot.lane.b32.xlu0 %v374, 108
      %v392 = vpop.permute.xlu0 %391
      %393 = vrot.lane.b32.xlu0 %v375, 108
      %v394 = vpop.permute.xlu0 %393
      %395 = vrot.lane.b32.xlu0 %v376, 108
      %v396 = vpop.permute.xlu0 %395
      %397 = vrot.lane.b32.xlu0 %v377, 108
      %v398 = vpop.permute.xlu0 %397
      %vm399 = vcmask 883712
      %v400 = vsel %vm399, %v386, %v388
      %v401 = vsel %vm399, %v388, %v390
      %v402 = vsel %vm399, %v390, %v392
      %v403 = vsel %vm399, %v392, %v394
      %v404 = vsel %vm399, %v394, %v396
      %v405 = vsel %vm399, %v396, %v398
      %412 = vst [vmem:[#allocation2 + $0xf0] sm:$0xff] %v400
      %413 = vst [vmem:[#allocation2 + $0xf8] sm:$0xff] %v401
      %414 = vst [vmem:[#allocation2 + $0x100] sm:$0xff] %v402
      %415 = vst [vmem:[#allocation2 + $0x108] sm:$0xff] %v403
      %416 = vst [vmem:[#allocation2 + $0x110] sm:$0xff] %v404
      %417 = vst [vmem:[#allocation2 + $0x118] sm:$0xff] %v405
      %v418 = vld [vmem:[%s165] sm:$0xff]
      %v419 = vld [vmem:[%s165 + $0x8] sm:$0xff]
      %v420 = vld [vmem:[%s165 + $0x10] sm:$0xff]
      %v421 = vld [vmem:[%s165 + $0x18] sm:$0xff]
      %v422 = vld [vmem:[%s165 + $0x20] sm:$0xff]
      %v423 = vld [vmem:[%s165 + $0x28] sm:$0xff]
      %v424 = vld [vmem:[%s165 + $0x30] sm:$0xff]
      %432 = vrot.lane.b32.xlu0 %v418, 92
      %v433 = vpop.permute.xlu0 %432
      %434 = vrot.lane.b32.xlu0 %v419, 92
      %v435 = vpop.permute.xlu0 %434
      %436 = vrot.lane.b32.xlu0 %v420, 92
      %v437 = vpop.permute.xlu0 %436
      %438 = vrot.lane.b32.xlu0 %v421, 92
      %v439 = vpop.permute.xlu0 %438
      %440 = vrot.lane.b32.xlu0 %v422, 92
      %v441 = vpop.permute.xlu0 %440
      %442 = vrot.lane.b32.xlu0 %v423, 92
      %v443 = vpop.permute.xlu0 %442
      %444 = vrot.lane.b32.xlu0 %v424, 92
      %v445 = vpop.permute.xlu0 %444
      %vm446 = vcmask 752640
      %v447 = vsel %vm446, %v433, %v435
      %v448 = vsel %vm446, %v435, %v437
      %v449 = vsel %vm446, %v437, %v439
      %v450 = vsel %vm446, %v439, %v441
      %v451 = vsel %vm446, %v441, %v443
      %v452 = vsel %vm446, %v443, %v445
      %459 = vst [vmem:[#allocation2 + $0x120] sm:$0xff] %v447
      %460 = vst [vmem:[#allocation2 + $0x128] sm:$0xff] %v448
      %461 = vst [vmem:[#allocation2 + $0x130] sm:$0xff] %v449
      %462 = vst [vmem:[#allocation2 + $0x138] sm:$0xff] %v450
      %463 = vst [vmem:[#allocation2 + $0x140] sm:$0xff] %v451
      %464 = vst [vmem:[#allocation2 + $0x148] sm:$0xff] %v452
      %v465 = vld [vmem:[%s165] sm:$0xff]
      %v466 = vld [vmem:[%s165 + $0x8] sm:$0xff]
      %v467 = vld [vmem:[%s165 + $0x10] sm:$0xff]
      %v468 = vld [vmem:[%s165 + $0x18] sm:$0xff]
      %v469 = vld [vmem:[%s165 + $0x20] sm:$0xff]
      %v470 = vld [vmem:[%s165 + $0x28] sm:$0xff]
      %v471 = vld [vmem:[%s165 + $0x30] sm:$0xff]
      %479 = vrot.lane.b32.xlu0 %v465, 91
      %v480 = vpop.permute.xlu0 %479
      %481 = vrot.lane.b32.xlu0 %v466, 91
      %v482 = vpop.permute.xlu0 %481
      %483 = vrot.lane.b32.xlu0 %v467, 91
      %v484 = vpop.permute.xlu0 %483
      %485 = vrot.lane.b32.xlu0 %v468, 91
      %v486 = vpop.permute.xlu0 %485
      %487 = vrot.lane.b32.xlu0 %v469, 91
      %v488 = vpop.permute.xlu0 %487
      %489 = vrot.lane.b32.xlu0 %v470, 91
      %v490 = vpop.permute.xlu0 %489
      %491 = vrot.lane.b32.xlu0 %v471, 91
      %v492 = vpop.permute.xlu0 %491
      %vm493 = vcmask 744448
      %v494 = vsel %vm493, %v480, %v482
      %v495 = vsel %vm493, %v482, %v484
      %v496 = vsel %vm493, %v484, %v486
      %v497 = vsel %vm493, %v486, %v488
      %v498 = vsel %vm493, %v488, %v490
      %v499 = vsel %vm493, %v490, %v492
      %506 = vst [vmem:[#allocation2 + $0x150] sm:$0xff] %v494
      %507 = vst [vmem:[#allocation2 + $0x158] sm:$0xff] %v495
      %508 = vst [vmem:[#allocation2 + $0x160] sm:$0xff] %v496
      %509 = vst [vmem:[#allocation2 + $0x168] sm:$0xff] %v497
      %510 = vst [vmem:[#allocation2 + $0x170] sm:$0xff] %v498
      %511 = vst [vmem:[#allocation2 + $0x178] sm:$0xff] %v499
      %v512 = vld [vmem:[%s165] sm:$0xff]
      %v513 = vld [vmem:[%s165 + $0x8] sm:$0xff]
      %v514 = vld [vmem:[%s165 + $0x10] sm:$0xff]
      %v515 = vld [vmem:[%s165 + $0x18] sm:$0xff]
      %v516 = vld [vmem:[%s165 + $0x20] sm:$0xff]
      %v517 = vld [vmem:[%s165 + $0x28] sm:$0xff]
      %v518 = vld [vmem:[%s165 + $0x30] sm:$0xff]
      %526 = vrot.lane.b32.xlu0 %v512, 90
      %v527 = vpop.permute.xlu0 %526
      %528 = vrot.lane.b32.xlu0 %v513, 90
      %v529 = vpop.permute.xlu0 %528
      %530 = vrot.lane.b32.xlu0 %v514, 90
      %v531 = vpop.permute.xlu0 %530
      %532 = vrot.lane.b32.xlu0 %v515, 90
      %v533 = vpop.permute.xlu0 %532
      %534 = vrot.lane.b32.xlu0 %v516, 90
      %v535 = vpop.permute.xlu0 %534
      %536 = vrot.lane.b32.xlu0 %v517, 90
      %v537 = vpop.permute.xlu0 %536
      %538 = vrot.lane.b32.xlu0 %v518, 90
      %v539 = vpop.permute.xlu0 %538
      %vm540 = vcmask 736256
      %v541 = vsel %vm540, %v527, %v529
      %v542 = vsel %vm540, %v529, %v531
      %v543 = vsel %vm540, %v531, %v533
      %v544 = vsel %vm540, %v533, %v535
      %v545 = vsel %vm540, %v535, %v537
      %v546 = vsel %vm540, %v537, %v539
      %553 = vst [vmem:[#allocation2 + $0x180] sm:$0xff] %v541
      %554 = vst [vmem:[#allocation2 + $0x188] sm:$0xff] %v542
      %555 = vst [vmem:[#allocation2 + $0x190] sm:$0xff] %v543
      %556 = vst [vmem:[#allocation2 + $0x198] sm:$0xff] %v544
      %557 = vst [vmem:[#allocation2 + $0x1a0] sm:$0xff] %v545
      %558 = vst [vmem:[#allocation2 + $0x1a8] sm:$0xff] %v546
      %v559 = vld [vmem:[%s1] sm:$0xff]
      %v560 = vld [vmem:[%s1 + $0x8] sm:$0xff]
      %v561 = vld [vmem:[%s1 + $0x10] sm:$0xff]
      %v562 = vld [vmem:[%s1 + $0x18] sm:$0xff]
      %v563 = vld [vmem:[#allocation2] sm:$0xff]
      %v564 = vld [vmem:[#allocation2 + $0x8] sm:$0xff]
      %v565 = vld [vmem:[#allocation2 + $0x10] sm:$0xff]
      %v566 = vld [vmem:[#allocation2 + $0x18] sm:$0xff]
      %v567 = vld [vmem:[#allocation2 + $0x20] sm:$0xff]
      %v568 = vld [vmem:[#allocation2 + $0x28] sm:$0xff]
      %v569 = vld [vmem:[#allocation2 + $0x30] sm:$0xff]
      %v570 = vld [vmem:[#allocation2 + $0x38] sm:$0xff]
      %v571 = vld [vmem:[#allocation2 + $0x40] sm:$0xff]
      %v572 = vld [vmem:[#allocation2 + $0x48] sm:$0xff]
      %v573 = vld [vmem:[#allocation2 + $0x50] sm:$0xff]
      %v574 = vld [vmem:[#allocation2 + $0x58] sm:$0xff]
      %v575 = vld [vmem:[#allocation2 + $0x60] sm:$0xff]
      %v576 = vld [vmem:[#allocation2 + $0x68] sm:$0xff]
      %v577 = vld [vmem:[#allocation2 + $0x70] sm:$0xff]
      %v578 = vld [vmem:[#allocation2 + $0x78] sm:$0xff]
      %v579 = vld [vmem:[#allocation2 + $0x80] sm:$0xff]
      %v580 = vld [vmem:[#allocation2 + $0x88] sm:$0xff]
      %v581 = vld [vmem:[#allocation2 + $0x90] sm:$0xff]
      %v582 = vld [vmem:[#allocation2 + $0x98] sm:$0xff]
      %v583 = vld [vmem:[#allocation2 + $0xa0] sm:$0xff]
      %v584 = vld [vmem:[#allocation2 + $0xa8] sm:$0xff]
      %v585 = vld [vmem:[#allocation2 + $0xb0] sm:$0xff]
      %v586 = vld [vmem:[#allocation2 + $0xb8] sm:$0xff]
      %v587 = vld [vmem:[#allocation2 + $0xc0] sm:$0xff]
      %v588 = vld [vmem:[#allocation2 + $0xc8] sm:$0xff]
      %v589 = vld [vmem:[#allocation2 + $0xd0] sm:$0xff]
      %v590 = vld [vmem:[#allocation2 + $0xd8] sm:$0xff]
      %v591 = vld [vmem:[#allocation2 + $0xe0] sm:$0xff]
      %v592 = vld [vmem:[#allocation2 + $0xe8] sm:$0xff]
      %v593 = vld [vmem:[#allocation2 + $0xf0] sm:$0xff]
      %v594 = vld [vmem:[#allocation2 + $0xf8] sm:$0xff]
      %v595 = vld [vmem:[#allocation2 + $0x100] sm:$0xff]
      %v596 = vld [vmem:[#allocation2 + $0x108] sm:$0xff]
      %v597 = vld [vmem:[#allocation2 + $0x110] sm:$0xff]
      %v598 = vld [vmem:[#allocation2 + $0x118] sm:$0xff]
      %v599 = vld [vmem:[#allocation2 + $0x120] sm:$0xff]
      %v600 = vld [vmem:[#allocation2 + $0x128] sm:$0xff]
      %v601 = vld [vmem:[#allocation2 + $0x130] sm:$0xff]
      %v602 = vld [vmem:[#allocation2 + $0x138] sm:$0xff]
      %v603 = vld [vmem:[#allocation2 + $0x140] sm:$0xff]
      %v604 = vld [vmem:[#allocation2 + $0x148] sm:$0xff]
      %v605 = vld [vmem:[#allocation2 + $0x150] sm:$0xff]
      %v606 = vld [vmem:[#allocation2 + $0x158] sm:$0xff]
      %v607 = vld [vmem:[#allocation2 + $0x160] sm:$0xff]
      %v608 = vld [vmem:[#allocation2 + $0x168] sm:$0xff]
      %v609 = vld [vmem:[#allocation2 + $0x170] sm:$0xff]
      %v610 = vld [vmem:[#allocation2 + $0x178] sm:$0xff]
      %v611 = vld [vmem:[#allocation2 + $0x180] sm:$0xff]
      %v612 = vld [vmem:[#allocation2 + $0x188] sm:$0xff]
      %v613 = vld [vmem:[#allocation2 + $0x190] sm:$0xff]
      %v614 = vld [vmem:[#allocation2 + $0x198] sm:$0xff]
      %v615 = vld [vmem:[#allocation2 + $0x1a0] sm:$0xff]
      %v616 = vld [vmem:[#allocation2 + $0x1a8] sm:$0xff]
      %v617 = vld [vmem:[%s2] sm:$0xff]
      %v618 = vld [vmem:[%s2 + $0x8] sm:$0xff]
      %v619 = vld [vmem:[%s2 + $0x10] sm:$0xff]
      %v620 = vld [vmem:[%s2 + $0x18] sm:$0xff]
      %622 = vset.pattern.permute.xlu0 0
      %623 = vperm.xlu0 %622, %v617
      %v624 = vpop.permute.xlu0 %623
      %627 = vset.pattern.permute.xlu0 0
      %628 = vperm.xlu0 %627, %v618
      %v629 = vpop.permute.xlu0 %628
      %632 = vset.pattern.permute.xlu0 0
      %633 = vperm.xlu0 %632, %v619
      %v634 = vpop.permute.xlu0 %633
      %637 = vset.pattern.permute.xlu0 0
      %638 = vperm.xlu0 %637, %v620
      %v639 = vpop.permute.xlu0 %638
      %vm641 = vcmask 588800
      %v643 = vsel %vm641, %v559, 0
      %v646 = vsel %vm641, %v560, 0
      %v649 = vsel %vm641, %v561, 0
      %v652 = vsel %vm641, %v562, 0
      %654 = vmatprep.subr.mxu0 %v564
      %655 = vmatpush1.msra.mxu0 %v563
      %656 = vmatprep.subr.mxu0 %v570
      %657 = vmatpush1.msra.mxu0 %v569
      %658 = vmatprep.subr.mxu0 %v576
      %659 = vmatpush1.msra.mxu0 %v575
      %660 = vmatprep.subr.mxu0 %v582
      %661 = vmatpush1.msra.mxu0 %v581
      %662 = vmatprep.subr.mxu0 %v588
      %663 = vmatpush1.msra.mxu0 %v587
      %664 = vmatprep.subr.mxu0 %v594
      %665 = vmatpush1.msra.mxu0 %v593
      %666 = vmatprep.subr.mxu0 %v600
      %667 = vmatpush1.msra.mxu0 %v599
      %668 = vmatprep.subr.mxu0 %v606
      %669 = vmatpush1.msra.mxu0 %v605
      %670 = vmatprep.subr.mxu0 %v612
      %671 = vmatpush1.msra.mxu0 %v611
      %672 = vmatprep.subr.mxu0 0.0
      %673 = vmatpush1.msra.mxu0 0.0
      %674 = vmatprep.subr.mxu0 0.0
      %675 = vmatpush1.msra.mxu0 0.0
      %676 = vmatprep.subr.mxu0 0.0
      %677 = vmatpush1.msra.mxu0 0.0
      %678 = vmatprep.subr.mxu0 0.0
      %679 = vmatpush1.msra.mxu0 0.0
      %680 = vmatprep.subr.mxu0 0.0
      %681 = vmatpush1.msra.mxu0 0.0
      %682 = vmatprep.subr.mxu0 0.0
      %683 = vmatpush1.msra.mxu0 0.0
      %684 = vmatprep.subr.mxu0 0.0
      %685 = vmatpush1.msra.mxu0 0.0
      %686 = vmatprep.subr.mxu0 0.0
      %687 = vmatpush1.msra.mxu0 0.0
      %688 = vmatprep.subr.mxu0 0.0
      %689 = vmatpush1.msra.mxu0 0.0
      %690 = vmatprep.subr.mxu0 0.0
      %691 = vmatpush1.msra.mxu0 0.0
      %692 = vmatprep.subr.mxu0 0.0
      %693 = vmatpush1.msra.mxu0 0.0
      %694 = vmatprep.subr.mxu0 0.0
      %695 = vmatpush1.msra.mxu0 0.0
      %696 = vmatprep.subr.mxu0 0.0
      %697 = vmatpush1.msra.mxu0 0.0
      %698 = vmatprep.subr.mxu0 0.0
      %699 = vmatpush1.msra.mxu0 0.0
      %700 = vmatprep.subr.mxu0 0.0
      %701 = vmatpush1.msra.mxu0 0.0
      %702 = vmatprep.subr.mxu0 0.0
      %703 = vmatpush1.msra.mxu0 0.0
      %704 = vmatprep.subr.mxu0 0.0
      %705 = vmatpush1.msra.mxu0 0.0
      %706 = vmatprep.subr.mxu0 0.0
      %707 = vmatpush1.msra.mxu0 0.0
      %708 = vmatprep.subr.mxu0 0.0
      %709 = vmatpush1.msra.mxu0 0.0
      %710 = vmatprep.subr.mxu0 0.0
      %711 = vmatpush1.msra.mxu0 0.0
      %712 = vmatprep.subr.mxu0 0.0
      %713 = vmatpush1.msra.mxu0 0.0
      %714 = vmatprep.subr.mxu0 0.0
      %715 = vmatpush1.msra.mxu0 0.0
      %716 = vmatprep.subr.mxu0 0.0
      %717 = vmatpush1.msra.mxu0 0.0
      %718 = vmatprep.mubr.f32.mxu0 0.0
      %719 = vmatmul.mubr.f32.gmra.mrb[0].mxu0 %v643
      %v720 = vpop.f32.mrb[0].mxu0
      %v721 = vadd.f32 %v624, %v720
      %v722 = vpop.f32.mrb[0].mxu0
      %v723 = vadd.f32 %v624, %v722
      %724 = vmatprep.mubr.f32.mxu0 0.0
      %725 = vmatmul.mubr.f32.gmra.mrb[0].mxu0 %v646
      %v726 = vpop.f32.mrb[0].mxu0
      %v727 = vadd.f32 %v629, %v726
      %v728 = vpop.f32.mrb[0].mxu0
      %v729 = vadd.f32 %v629, %v728
      %730 = vmatprep.mubr.f32.mxu0 0.0
      %731 = vmatmul.mubr.f32.gmra.mrb[0].mxu0 %v649
      %v732 = vpop.f32.mrb[0].mxu0
      %v733 = vadd.f32 %v634, %v732
      %v734 = vpop.f32.mrb[0].mxu0
      %v735 = vadd.f32 %v634, %v734
      %736 = vmatprep.mubr.f32.mxu0 0.0
      %737 = vmatmul.mubr.f32.gmra.mrb[0].mxu0 %v652
      %v738 = vpop.f32.mrb[0].mxu0
      %v739 = vadd.f32 %v639, %v738
      %v740 = vpop.f32.mrb[0].mxu0
      %v741 = vadd.f32 %v639, %v740
      %742 = vdwg.mxu0
      %743 = vmatprep.subr.mxu0 %v566
      %744 = vmatpush1.msra.mxu0 %v565
      %745 = vmatprep.subr.mxu0 %v572
      %746 = vmatpush1.msra.mxu0 %v571
      %747 = vmatprep.subr.mxu0 %v578
      %748 = vmatpush1.msra.mxu0 %v577
      %749 = vmatprep.subr.mxu0 %v584
      %750 = vmatpush1.msra.mxu0 %v583
      %751 = vmatprep.subr.mxu0 %v590
      %752 = vmatpush1.msra.mxu0 %v589
      %753 = vmatprep.subr.mxu0 %v596
      %754 = vmatpush1.msra.mxu0 %v595
      %755 = vmatprep.subr.mxu0 %v602
      %756 = vmatpush1.msra.mxu0 %v601
      %757 = vmatprep.subr.mxu0 %v608
      %758 = vmatpush1.msra.mxu0 %v607
      %759 = vmatprep.subr.mxu0 %v614
      %760 = vmatpush1.msra.mxu0 %v613
      %761 = vmatprep.subr.mxu0 0.0
      %762 = vmatpush1.msra.mxu0 0.0
      %763 = vmatprep.subr.mxu0 0.0
      %764 = vmatpush1.msra.mxu0 0.0
      %765 = vmatprep.subr.mxu0 0.0
      %766 = vmatpush1.msra.mxu0 0.0
      %767 = vmatprep.subr.mxu0 0.0
      %768 = vmatpush1.msra.mxu0 0.0
      %769 = vmatprep.subr.mxu0 0.0
      %770 = vmatpush1.msra.mxu0 0.0
      %771 = vmatprep.subr.mxu0 0.0
      %772 = vmatpush1.msra.mxu0 0.0
      %773 = vmatprep.subr.mxu0 0.0
      %774 = vmatpush1.msra.mxu0 0.0
      %775 = vmatprep.subr.mxu0 0.0
      %776 = vmatpush1.msra.mxu0 0.0
      %777 = vmatprep.subr.mxu0 0.0
      %778 = vmatpush1.msra.mxu0 0.0
      %779 = vmatprep.subr.mxu0 0.0
      %780 = vmatpush1.msra.mxu0 0.0
      %781 = vmatprep.subr.mxu0 0.0
      %782 = vmatpush1.msra.mxu0 0.0
      %783 = vmatprep.subr.mxu0 0.0
      %784 = vmatpush1.msra.mxu0 0.0
      %785 = vmatprep.subr.mxu0 0.0
      %786 = vmatpush1.msra.mxu0 0.0
      %787 = vmatprep.subr.mxu0 0.0
      %788 = vmatpush1.msra.mxu0 0.0
      %789 = vmatprep.subr.mxu0 0.0
      %790 = vmatpush1.msra.mxu0 0.0
      %791 = vmatprep.subr.mxu0 0.0
      %792 = vmatpush1.msra.mxu0 0.0
      %793 = vmatprep.subr.mxu0 0.0
      %794 = vmatpush1.msra.mxu0 0.0
      %795 = vmatprep.subr.mxu0 0.0
      %796 = vmatpush1.msra.mxu0 0.0
      %797 = vmatprep.subr.mxu0 0.0
      %798 = vmatpush1.msra.mxu0 0.0
      %799 = vmatprep.subr.mxu0 0.0
      %800 = vmatpush1.msra.mxu0 0.0
      %801 = vmatprep.subr.mxu0 0.0
      %802 = vmatpush1.msra.mxu0 0.0
      %803 = vmatprep.subr.mxu0 0.0
      %804 = vmatpush1.msra.mxu0 0.0
      %805 = vmatprep.subr.mxu0 0.0
      %806 = vmatpush1.msra.mxu0 0.0
      %807 = vmatprep.mubr.f32.mxu0 0.0
      %808 = vmatmul.mubr.f32.gmra.mrb[0].mxu0 %v643
      %v809 = vpop.f32.mrb[0].mxu0
      %v810 = vadd.f32 %v624, %v809
      %v811 = vpop.f32.mrb[0].mxu0
      %v812 = vadd.f32 %v624, %v811
      %813 = vmatprep.mubr.f32.mxu0 0.0
      %814 = vmatmul.mubr.f32.gmra.mrb[0].mxu0 %v646
      %v815 = vpop.f32.mrb[0].mxu0
      %v816 = vadd.f32 %v629, %v815
      %v817 = vpop.f32.mrb[0].mxu0
      %v818 = vadd.f32 %v629, %v817
      %819 = vmatprep.mubr.f32.mxu0 0.0
      %820 = vmatmul.mubr.f32.gmra.mrb[0].mxu0 %v649
      %v821 = vpop.f32.mrb[0].mxu0
      %v822 = vadd.f32 %v634, %v821
      %v823 = vpop.f32.mrb[0].mxu0
      %v824 = vadd.f32 %v634, %v823
      %825 = vmatprep.mubr.f32.mxu0 0.0
      %826 = vmatmul.mubr.f32.gmra.mrb[0].mxu0 %v652
      %v827 = vpop.f32.mrb[0].mxu0
      %v828 = vadd.f32 %v639, %v827
      %v829 = vpop.f32.mrb[0].mxu0
      %v830 = vadd.f32 %v639, %v829
      %831 = vdwg.mxu0
      %832 = vmatprep.subr.mxu0 %v568
      %833 = vmatpush1.msra.mxu0 %v567
      %834 = vmatprep.subr.mxu0 %v574
      %835 = vmatpush1.msra.mxu0 %v573
      %836 = vmatprep.subr.mxu0 %v580
      %837 = vmatpush1.msra.mxu0 %v579
      %838 = vmatprep.subr.mxu0 %v586
      %839 = vmatpush1.msra.mxu0 %v585
      %840 = vmatprep.subr.mxu0 %v592
      %841 = vmatpush1.msra.mxu0 %v591
      %842 = vmatprep.subr.mxu0 %v598
      %843 = vmatpush1.msra.mxu0 %v597
      %844 = vmatprep.subr.mxu0 %v604
      %845 = vmatpush1.msra.mxu0 %v603
      %846 = vmatprep.subr.mxu0 %v610
      %847 = vmatpush1.msra.mxu0 %v609
      %848 = vmatprep.subr.mxu0 %v616
      %849 = vmatpush1.msra.mxu0 %v615
      %850 = vmatprep.subr.mxu0 0.0
      %851 = vmatpush1.msra.mxu0 0.0
      %852 = vmatprep.subr.mxu0 0.0
      %853 = vmatpush1.msra.mxu0 0.0
      %854 = vmatprep.subr.mxu0 0.0
      %855 = vmatpush1.msra.mxu0 0.0
      %856 = vmatprep.subr.mxu0 0.0
      %857 = vmatpush1.msra.mxu0 0.0
      %858 = vmatprep.subr.mxu0 0.0
      %859 = vmatpush1.msra.mxu0 0.0
      %860 = vmatprep.subr.mxu0 0.0
      %861 = vmatpush1.msra.mxu0 0.0
      %862 = vmatprep.subr.mxu0 0.0
      %863 = vmatpush1.msra.mxu0 0.0
      %864 = vmatprep.subr.mxu0 0.0
      %865 = vmatpush1.msra.mxu0 0.0
      %866 = vmatprep.subr.mxu0 0.0
      %867 = vmatpush1.msra.mxu0 0.0
      %868 = vmatprep.subr.mxu0 0.0
      %869 = vmatpush1.msra.mxu0 0.0
      %870 = vmatprep.subr.mxu0 0.0
      %871 = vmatpush1.msra.mxu0 0.0
      %872 = vmatprep.subr.mxu0 0.0
      %873 = vmatpush1.msra.mxu0 0.0
      %874 = vmatprep.subr.mxu0 0.0
      %875 = vmatpush1.msra.mxu0 0.0
      %876 = vmatprep.subr.mxu0 0.0
      %877 = vmatpush1.msra.mxu0 0.0
      %878 = vmatprep.subr.mxu0 0.0
      %879 = vmatpush1.msra.mxu0 0.0
      %880 = vmatprep.subr.mxu0 0.0
      %881 = vmatpush1.msra.mxu0 0.0
      %882 = vmatprep.subr.mxu0 0.0
      %883 = vmatpush1.msra.mxu0 0.0
      %884 = vmatprep.subr.mxu0 0.0
      %885 = vmatpush1.msra.mxu0 0.0
      %886 = vmatprep.subr.mxu0 0.0
      %887 = vmatpush1.msra.mxu0 0.0
      %888 = vmatprep.subr.mxu0 0.0
      %889 = vmatpush1.msra.mxu0 0.0
      %890 = vmatprep.subr.mxu0 0.0
      %891 = vmatpush1.msra.mxu0 0.0
      %892 = vmatprep.subr.mxu0 0.0
      %893 = vmatpush1.msra.mxu0 0.0
      %894 = vmatprep.subr.mxu0 0.0
      %895 = vmatpush1.msra.mxu0 0.0
      %896 = vmatprep.mubr.f32.mxu0 0.0
      %897 = vmatmul.mubr.f32.gmra.mrb[0].mxu0 %v643
      %v898 = vpop.f32.mrb[0].mxu0
      %v899 = vadd.f32 %v624, %v898
      %v900 = vpop.f32.mrb[0].mxu0
      %v901 = vadd.f32 %v624, %v900
      %902 = vmatprep.mubr.f32.mxu0 0.0
      %903 = vmatmul.mubr.f32.gmra.mrb[0].mxu0 %v646
      %v904 = vpop.f32.mrb[0].mxu0
      %v905 = vadd.f32 %v629, %v904
      %v906 = vpop.f32.mrb[0].mxu0
      %v907 = vadd.f32 %v629, %v906
      %908 = vmatprep.mubr.f32.mxu0 0.0
      %909 = vmatmul.mubr.f32.gmra.mrb[0].mxu0 %v649
      %v910 = vpop.f32.mrb[0].mxu0
      %v911 = vadd.f32 %v634, %v910
      %v912 = vpop.f32.mrb[0].mxu0
      %v913 = vadd.f32 %v634, %v912
      %914 = vmatprep.mubr.f32.mxu0 0.0
      %915 = vmatmul.mubr.f32.gmra.mrb[0].mxu0 %v652
      %v916 = vpop.f32.mrb[0].mxu0
      %v917 = vadd.f32 %v639, %v916
      %v918 = vpop.f32.mrb[0].mxu0
      %v919 = vadd.f32 %v639, %v918
      %920 = vdwg.mxu0
      %v921 = vmin.f32 %v721, 0.0
      %v922 = vmin.f32 %v723, 0.0
      %v923 = vmin.f32 %v810, 0.0
      %v924 = vmin.f32 %v812, 0.0
      %v925 = vmin.f32 %v899, 0.0
      %v926 = vmin.f32 %v901, 0.0
      %v927 = vmin.f32 %v727, 0.0
      %v928 = vmin.f32 %v729, 0.0
      %v929 = vmin.f32 %v816, 0.0
      %v930 = vmin.f32 %v818, 0.0
      %v931 = vmin.f32 %v905, 0.0
      %v932 = vmin.f32 %v907, 0.0
      %v933 = vmin.f32 %v733, 0.0
      %v934 = vmin.f32 %v735, 0.0
      %v935 = vmin.f32 %v822, 0.0
      %v936 = vmin.f32 %v824, 0.0
      %v937 = vmin.f32 %v911, 0.0
      %v938 = vmin.f32 %v913, 0.0
      %v939 = vmin.f32 %v739, 0.0
      %v940 = vmin.f32 %v741, 0.0
      %v941 = vmin.f32 %v828, 0.0
      %v942 = vmin.f32 %v830, 0.0
      %v943 = vmin.f32 %v917, 0.0
      %v944 = vmin.f32 %v919, 0.0
      %v945 = vmul.f32 %v921, 1.442695
      %v946 = vpow.pop %v945
      %v947 = vmul.f32 %v922, 1.442695
      %v948 = vpow.pop %v947
      %v949 = vmul.f32 %v923, 1.442695
      %v950 = vpow.pop %v949
      %v951 = vmul.f32 %v924, 1.442695
      %v952 = vpow.pop %v951
      %v953 = vmul.f32 %v925, 1.442695
      %v954 = vpow.pop %v953
      %v955 = vmul.f32 %v926, 1.442695
      %v956 = vpow.pop %v955
      %v957 = vmul.f32 %v927, 1.442695
      %v958 = vpow.pop %v957
      %v959 = vmul.f32 %v928, 1.442695
      %v960 = vpow.pop %v959
      %v961 = vmul.f32 %v929, 1.442695
      %v962 = vpow.pop %v961
      %v963 = vmul.f32 %v930, 1.442695
      %v964 = vpow.pop %v963
      %v965 = vmul.f32 %v931, 1.442695
      %v966 = vpow.pop %v965
      %v967 = vmul.f32 %v932, 1.442695
      %v968 = vpow.pop %v967
      %v969 = vmul.f32 %v933, 1.442695
      %v970 = vpow.pop %v969
      %v971 = vmul.f32 %v934, 1.442695
      %v972 = vpow.pop %v971
      %v973 = vmul.f32 %v935, 1.442695
      %v974 = vpow.pop %v973
      %v975 = vmul.f32 %v936, 1.442695
      %v976 = vpow.pop %v975
      %v977 = vmul.f32 %v937, 1.442695
      %v978 = vpow.pop %v977
      %v979 = vmul.f32 %v938, 1.442695
      %v980 = vpow.pop %v979
      %v981 = vmul.f32 %v939, 1.442695
      %v982 = vpow.pop %v981
      %v983 = vmul.f32 %v940, 1.442695
      %v984 = vpow.pop %v983
      %v985 = vmul.f32 %v941, 1.442695
      %v986 = vpow.pop %v985
      %v987 = vmul.f32 %v942, 1.442695
      %v988 = vpow.pop %v987
      %v989 = vmul.f32 %v943, 1.442695
      %v990 = vpow.pop %v989
      %v991 = vmul.f32 %v944, 1.442695
      %v992 = vpow.pop %v991
      %v993 = vsub.f32 %v946, 1.0
      %v994 = vsub.f32 %v948, 1.0
      %v995 = vsub.f32 %v950, 1.0
      %v996 = vsub.f32 %v952, 1.0
      %v997 = vsub.f32 %v954, 1.0
      %v998 = vsub.f32 %v956, 1.0
      %v999 = vsub.f32 %v958, 1.0
      %v1000 = vsub.f32 %v960, 1.0
      %v1001 = vsub.f32 %v962, 1.0
      %v1002 = vsub.f32 %v964, 1.0
      %v1003 = vsub.f32 %v966, 1.0
      %v1004 = vsub.f32 %v968, 1.0
      %v1005 = vsub.f32 %v970, 1.0
      %v1006 = vsub.f32 %v972, 1.0
      %v1007 = vsub.f32 %v974, 1.0
      %v1008 = vsub.f32 %v976, 1.0
      %v1009 = vsub.f32 %v978, 1.0
      %v1010 = vsub.f32 %v980, 1.0
      %v1011 = vsub.f32 %v982, 1.0
      %v1012 = vsub.f32 %v984, 1.0
      %v1013 = vsub.f32 %v986, 1.0
      %v1014 = vsub.f32 %v988, 1.0
      %v1015 = vsub.f32 %v990, 1.0
      %v1016 = vsub.f32 %v992, 1.0
      %v1017 = vmul.f32 %v993, 1.6732632
      %v1018 = vmul.f32 %v994, 1.6732632
      %v1019 = vmul.f32 %v995, 1.6732632
      %v1020 = vmul.f32 %v996, 1.6732632
      %v1021 = vmul.f32 %v997, 1.6732632
      %v1022 = vmul.f32 %v998, 1.6732632
      %v1023 = vmul.f32 %v999, 1.6732632
      %v1024 = vmul.f32 %v1000, 1.6732632
      %v1025 = vmul.f32 %v1001, 1.6732632
      %v1026 = vmul.f32 %v1002, 1.6732632
      %v1027 = vmul.f32 %v1003, 1.6732632
      %v1028 = vmul.f32 %v1004, 1.6732632
      %v1029 = vmul.f32 %v1005, 1.6732632
      %v1030 = vmul.f32 %v1006, 1.6732632
      %v1031 = vmul.f32 %v1007, 1.6732632
      %v1032 = vmul.f32 %v1008, 1.6732632
      %v1033 = vmul.f32 %v1009, 1.6732632
      %v1034 = vmul.f32 %v1010, 1.6732632
      %v1035 = vmul.f32 %v1011, 1.6732632
      %v1036 = vmul.f32 %v1012, 1.6732632
      %v1037 = vmul.f32 %v1013, 1.6732632
      %v1038 = vmul.f32 %v1014, 1.6732632
      %v1039 = vmul.f32 %v1015, 1.6732632
      %v1040 = vmul.f32 %v1016, 1.6732632
      %vm1041 = vcmp.gt.f32.partialorder %v721, 0.0
      %vm1042 = vcmp.gt.f32.partialorder %v723, 0.0
      %vm1043 = vcmp.gt.f32.partialorder %v810, 0.0
      %vm1044 = vcmp.gt.f32.partialorder %v812, 0.0
      %vm1045 = vcmp.gt.f32.partialorder %v899, 0.0
      %vm1046 = vcmp.gt.f32.partialorder %v901, 0.0
      %vm1047 = vcmp.gt.f32.partialorder %v727, 0.0
      %vm1048 = vcmp.gt.f32.partialorder %v729, 0.0
      %vm1049 = vcmp.gt.f32.partialorder %v816, 0.0
      %vm1050 = vcmp.gt.f32.partialorder %v818, 0.0
      %vm1051 = vcmp.gt.f32.partialorder %v905, 0.0
      %vm1052 = vcmp.gt.f32.partialorder %v907, 0.0
      %vm1053 = vcmp.gt.f32.partialorder %v733, 0.0
      %vm1054 = vcmp.gt.f32.partialorder %v735, 0.0
      %vm1055 = vcmp.gt.f32.partialorder %v822, 0.0
      %vm1056 = vcmp.gt.f32.partialorder %v824, 0.0
      %vm1057 = vcmp.gt.f32.partialorder %v911, 0.0
      %vm1058 = vcmp.gt.f32.partialorder %v913, 0.0
      %vm1059 = vcmp.gt.f32.partialorder %v739, 0.0
      %vm1060 = vcmp.gt.f32.partialorder %v741, 0.0
      %vm1061 = vcmp.gt.f32.partialorder %v828, 0.0
      %vm1062 = vcmp.gt.f32.partialorder %v830, 0.0
      %vm1063 = vcmp.gt.f32.partialorder %v917, 0.0
      %vm1064 = vcmp.gt.f32.partialorder %v919, 0.0
      %v1065 = vsel %vm1041, %v721, %v1017
      %v1066 = vsel %vm1042, %v723, %v1018
      %v1067 = vsel %vm1043, %v810, %v1019
      %v1068 = vsel %vm1044, %v812, %v1020
      %v1069 = vsel %vm1045, %v899, %v1021
      %v1070 = vsel %vm1046, %v901, %v1022
      %v1071 = vsel %vm1047, %v727, %v1023
      %v1072 = vsel %vm1048, %v729, %v1024
      %v1073 = vsel %vm1049, %v816, %v1025
      %v1074 = vsel %vm1050, %v818, %v1026
      %v1075 = vsel %vm1051, %v905, %v1027
      %v1076 = vsel %vm1052, %v907, %v1028
      %v1077 = vsel %vm1053, %v733, %v1029
      %v1078 = vsel %vm1054, %v735, %v1030
      %v1079 = vsel %vm1055, %v822, %v1031
      %v1080 = vsel %vm1056, %v824, %v1032
      %v1081 = vsel %vm1057, %v911, %v1033
      %v1082 = vsel %vm1058, %v913, %v1034
      %v1083 = vsel %vm1059, %v739, %v1035
      %v1084 = vsel %vm1060, %v741, %v1036
      %v1085 = vsel %vm1061, %v828, %v1037
      %v1086 = vsel %vm1062, %v830, %v1038
      %v1087 = vsel %vm1063, %v917, %v1039
      %v1088 = vsel %vm1064, %v919, %v1040
      %v1089 = vmul.f32 %v1065, 1.050701
      %v1090 = vmul.f32 %v1066, 1.050701
      %v1091 = vmul.f32 %v1067, 1.050701
      %v1092 = vmul.f32 %v1068, 1.050701
      %v1093 = vmul.f32 %v1069, 1.050701
      %v1094 = vmul.f32 %v1070, 1.050701
      %v1095 = vmul.f32 %v1071, 1.050701
      %v1096 = vmul.f32 %v1072, 1.050701
      %v1097 = vmul.f32 %v1073, 1.050701
      %v1098 = vmul.f32 %v1074, 1.050701
      %v1099 = vmul.f32 %v1075, 1.050701
      %v1100 = vmul.f32 %v1076, 1.050701
      %v1101 = vmul.f32 %v1077, 1.050701
      %v1102 = vmul.f32 %v1078, 1.050701
      %v1103 = vmul.f32 %v1079, 1.050701
      %v1104 = vmul.f32 %v1080, 1.050701
      %v1105 = vmul.f32 %v1081, 1.050701
      %v1106 = vmul.f32 %v1082, 1.050701
      %v1107 = vmul.f32 %v1083, 1.050701
      %v1108 = vmul.f32 %v1084, 1.050701
      %v1109 = vmul.f32 %v1085, 1.050701
      %v1110 = vmul.f32 %v1086, 1.050701
      %v1111 = vmul.f32 %v1087, 1.050701
      %v1112 = vmul.f32 %v1088, 1.050701
      %1113 = vst [vmem:[%s170] sm:$0xff] %v1089
      %1114 = vst [vmem:[%s170 + $0x8] sm:$0xff] %v1090
      %1115 = vst [vmem:[%s170 + $0x10] sm:$0xff] %v1091
      %1116 = vst [vmem:[%s170 + $0x18] sm:$0xff] %v1092
      %1117 = vst [vmem:[%s170 + $0x20] sm:$0xff] %v1093
      %1118 = vst [vmem:[%s170 + $0x28] sm:$0xff] %v1094
      %1119 = vst [vmem:[%s170 + $0x30] sm:$0xff] %v1095
      %1120 = vst [vmem:[%s170 + $0x38] sm:$0xff] %v1096
      %1121 = vst [vmem:[%s170 + $0x40] sm:$0xff] %v1097
      %1122 = vst [vmem:[%s170 + $0x48] sm:$0xff] %v1098
      %1123 = vst [vmem:[%s170 + $0x50] sm:$0xff] %v1099
      %1124 = vst [vmem:[%s170 + $0x58] sm:$0xff] %v1100
      %1125 = vst [vmem:[%s170 + $0x60] sm:$0xff] %v1101
      %1126 = vst [vmem:[%s170 + $0x68] sm:$0xff] %v1102
      %1127 = vst [vmem:[%s170 + $0x70] sm:$0xff] %v1103
      %1128 = vst [vmem:[%s170 + $0x78] sm:$0xff] %v1104
      %1129 = vst [vmem:[%s170 + $0x80] sm:$0xff] %v1105
      %1130 = vst [vmem:[%s170 + $0x88] sm:$0xff] %v1106
      %1131 = vst [vmem:[%s170 + $0x90] sm:$0xff] %v1107
      %1132 = vst [vmem:[%s170 + $0x98] sm:$0xff] %v1108
      %1133 = vst [vmem:[%s170 + $0xa0] sm:$0xff] %v1109
      %1134 = vst [vmem:[%s170 + $0xa8] sm:$0xff] %v1110
      %1135 = vst [vmem:[%s170 + $0xb0] sm:$0xff] %v1111
      %1136 = vst [vmem:[%s170 + $0xb8] sm:$0xff] %v1112
      %p1137 = scmp.lt.s32.totalorder %s14, 1
      %s1138 = scalar_select %p1137, %s14, 1
      %s1139 = smul.addr %s1138, 24
      %s1140 = smul.addr %s1139, 8
      %s1141 = scalar_lea.vmem %s3, %s1140
      // Predicated region
      $region33: #{unary_mccnn_forward.4} parent=31 // pred_check
        %p1142 = pneg %p100
      $region34: #{unary_mccnn_forward.4} parent=31 // pred_check_branch
        %1144 = sbr.rel (%p1142) target = $region36
      $region35: #{unary_mccnn_forward.4} parent=31 // pred_region
        _
      $region36: #{unary_mccnn_forward.4} parent=31 // pred_fallthru
        _
    $region32: #{unary_mccnn_forward.4} parent=5 // pred_fallthru
      _
    %p1145 = scmp.le.s32.totalorder 2, %s9
    // Predicated region
    $region37: #{unary_mccnn_forward.4} parent=5 // pred_check
      %p1146 = pneg %p1145
    $region38: #{unary_mccnn_forward.4} parent=5 // pred_check_branch
      %1148 = sbr.rel (%p1146) target = $region40
    $region39: #{unary_mccnn_forward.4} parent=5 // pred_region
      %s1149 = ssub.s32 %s9, 2
      // Predicated region
      $region41: #{unary_mccnn_forward.4} parent=39 // pred_check
        %p1150 = pneg %p106
      $region42: #{unary_mccnn_forward.4} parent=39 // pred_check_branch
        %1152 = sbr.rel (%p1150) target = $region44
      $region43: #{unary_mccnn_forward.4} parent=39 // pred_region
        %p1153 = scmp.lt.s32.totalorder %s15, 1
        %s1154 = scalar_select %p1153, %s15, 1
        %s1155 = smul.addr %s1154, 24
        %s1156 = smul.addr %s1155, 8
        %s1157 = scalar_lea.vmem %s3, %s1156
      $region44: #{unary_mccnn_forward.4} parent=39 // pred_fallthru
        _
    $region40: #{unary_mccnn_forward.4} parent=5 // pred_fallthru
      _
  $region6: #{unary_mccnn_forward.4} parent=0 // loop_footer
    %s13 = sadd.s32 1, %s9
  $region7: #{unary_mccnn_forward.4} parent=0 // loop_footer_branch
    %8 = sbr.rel target = $region3
  $region8: #{unary_mccnn_forward.4} parent=0 // loop_exit
    _

// kernel: unary_mccnn_forward.5
$region0: #{unary_mccnn_forward.5}
  #allocation0 [shape = 'u32[]', space=smem, size = 0x4, offset = 0x4, fixed_abs, tag = 'smem constant byte address 0x4 - core index']
  #allocation1 [shape = 'u32[144,128]{1,0:T(1,128)}', space=vmem, size = 0x12000, scoped, tag = 'internal scratch']
  #allocation2 [shape = 'f32[288,256]{1,0:T(8,128)}', space=vmem, size = 0x48000, scoped, tag = 'scratch operand']
  %s0 = inlined_call_operand.vmem [shape: f32[2,32,384], index: 0, kind: input, shape index: {}]
  %s1 = inlined_call_operand.vmem [shape: f32[32,288], index: 1, kind: input, shape index: {}]
  %s2 = inlined_call_operand.vmem [shape: f32[32,1], index: 2, kind: input, shape index: {}]
  %s3 = inlined_call_operand.vmem [shape: f32[2,32,256], index: 3, kind: output, shape index: {}]
  %s4 = sld [smem:[#allocation0]]
  $region45: #{unary_mccnn_forward.5} parent=0
    _
  %s6 = ssub.s32 1, %s4
  %s7 = scalar_select 0, %s6, %s4
  loop: start=0, step=1, limit=4
  $region2: #{unary_mccnn_forward.5} parent=0 // loop_pre_header
    _
  $region3: #{unary_mccnn_forward.5} parent=0 // loop_header
    %s9 = sphi 0, %s13
    %p10 = scmp.ge.s32.totalorder %s9, 4
    %s19 = sphi 0, %s21
    %s22 = sphi 0, %s19
    %s23 = sphi 0, %s22
    %s39 = sphi 0, %s23
    %s43 = sphi 0, %s43
    %s45 = sphi 0, %s43
    %s46 = sphi 0, %s45
    %s60 = sphi 0, %s46
    %s64 = sphi 0, %s64
    %s66 = sphi 0, %s64
    %s67 = sphi 0, %s66
    %s81 = sphi 0, %s67
    %s87 = sphi 0, %s89
    %s90 = sphi 0, %s87
    %s91 = sphi 0, %s90
    %s107 = sphi 0, %s91
  $region4: #{unary_mccnn_forward.5} parent=0 // loop_header_branch
    %12 = sbr.rel (%p10) target = $region8
  $region5: #{unary_mccnn_forward.5} parent=0 // loop_body
    %s14 = ssub.s32 %s9, 1
    %s15 = ssub.s32 %s9, 2
    %s16 = sadd.s32 %s9, 1
    %s17 = ssub.s32 %s9, %s16
    %p18 = scmp.eq.s32.totalorder %s17, 0
    %s20 = sadd.s32 %s19, 1
    %s21 = scalar_select %p18, %s19, %s20
    %p24 = pneg %p18
    %p25 = scmp.eq.s32.totalorder %s9, 1
    %p26 = por %p24, %p25
    %p27 = scmp.ne.s32.totalorder %s19, %s22
    %p28 = scmp.eq.s32.totalorder %s9, 0
    %p29 = por %p27, %p28
    %p30 = scmp.ne.s32.totalorder %s19, %s22
    %p31 = scmp.eq.s32.totalorder %s14, 1
    %p32 = por %p30, %p31
    %p33 = scmp.ne.s32.totalorder %s22, %s23
    %p34 = scmp.eq.s32.totalorder %s14, 0
    %p35 = por %p33, %p34
    %p36 = scmp.ne.s32.totalorder %s22, %s23
    %p37 = scmp.eq.s32.totalorder %s15, 1
    %p38 = por %p36, %p37
    %p40 = scmp.ne.s32.totalorder %s23, %s39
    %p41 = scmp.eq.s32.totalorder %s15, 0
    %p42 = por %p40, %p41
    %s44 = sadd.s32 %s43, 1
    %p47 = scmp.eq.s32.totalorder %s9, 1
    %p48 = scmp.ne.s32.totalorder %s43, %s45
    %p49 = scmp.eq.s32.totalorder %s9, 0
    %p50 = por %p48, %p49
    %p51 = scmp.ne.s32.totalorder %s43, %s45
    %p52 = scmp.eq.s32.totalorder %s14, 1
    %p53 = por %p51, %p52
    %p54 = scmp.ne.s32.totalorder %s45, %s46
    %p55 = scmp.eq.s32.totalorder %s14, 0
    %p56 = por %p54, %p55
    %p57 = scmp.ne.s32.totalorder %s45, %s46
    %p58 = scmp.eq.s32.totalorder %s15, 1
    %p59 = por %p57, %p58
    %p61 = scmp.ne.s32.totalorder %s46, %s60
    %p62 = scmp.eq.s32.totalorder %s15, 0
    %p63 = por %p61, %p62
    %s65 = sadd.s32 %s64, 1
    %p68 = scmp.eq.s32.totalorder %s9, 1
    %p69 = scmp.ne.s32.totalorder %s64, %s66
    %p70 = scmp.eq.s32.totalorder %s9, 0
    %p71 = por %p69, %p70
    %p72 = scmp.ne.s32.totalorder %s64, %s66
    %p73 = scmp.eq.s32.totalorder %s14, 1
    %p74 = por %p72, %p73
    %p75 = scmp.ne.s32.totalorder %s66, %s67
    %p76 = scmp.eq.s32.totalorder %s14, 0
    %p77 = por %p75, %p76
    %p78 = scmp.ne.s32.totalorder %s66, %s67
    %p79 = scmp.eq.s32.totalorder %s15, 1
    %p80 = por %p78, %p79
    %p82 = scmp.ne.s32.totalorder %s67, %s81
    %p83 = scmp.eq.s32.totalorder %s15, 0
    %p84 = por %p82, %p83
    %s85 = ssub.s32 %s9, %s16
    %p86 = scmp.eq.s32.totalorder %s85, 0
    %s88 = sadd.s32 %s87, 1
    %s89 = scalar_select %p86, %s87, %s88
    %p92 = pneg %p86
    %p93 = scmp.eq.s32.totalorder %s9, 1
    %p94 = por %p92, %p93
    %p95 = scmp.ne.s32.totalorder %s87, %s90
    %p96 = scmp.eq.s32.totalorder %s9, 0
    %p97 = por %p95, %p96
    %p98 = scmp.ne.s32.totalorder %s87, %s90
    %p99 = scmp.eq.s32.totalorder %s14, 1
    %p100 = por %p98, %p99
    %p101 = scmp.ne.s32.totalorder %s90, %s91
    %p102 = scmp.eq.s32.totalorder %s14, 0
    %p103 = por %p101, %p102
    %p104 = scmp.ne.s32.totalorder %s90, %s91
    %p105 = scmp.eq.s32.totalorder %s15, 1
    %p106 = por %p104, %p105
    %p108 = scmp.ne.s32.totalorder %s91, %s107
    %p109 = scmp.eq.s32.totalorder %s15, 0
    %p110 = por %p108, %p109
    %p111 = scmp.le.s32.totalorder 1, %s9
    %p112 = scmp.lt.s32.totalorder %s9, 3
    %p113 = pnand %p111, %p112
    %p114 = pneg %p113
    // Predicated region
    $region9: #{unary_mccnn_forward.5} parent=5 // pred_check
      _
    $region10: #{unary_mccnn_forward.5} parent=5 // pred_check_branch
      %116 = sbr.rel (%p113) target = $region12
    $region11: #{unary_mccnn_forward.5} parent=5 // pred_region
      %s117 = ssub.s32 %s9, 1
      // Predicated region
      $region13: #{unary_mccnn_forward.5} parent=11 // pred_check
        %p118 = pneg %p56
      $region14: #{unary_mccnn_forward.5} parent=11 // pred_check_branch
        %120 = sbr.rel (%p118) target = $region16
      $region15: #{unary_mccnn_forward.5} parent=11 // pred_region
        _
      $region16: #{unary_mccnn_forward.5} parent=11 // pred_fallthru
        _
      // Predicated region
      $region17: #{unary_mccnn_forward.5} parent=11 // pred_check
        %p121 = pneg %p77
      $region18: #{unary_mccnn_forward.5} parent=11 // pred_check_branch
        %123 = sbr.rel (%p121) target = $region20
      $region19: #{unary_mccnn_forward.5} parent=11 // pred_region
        _
      $region20: #{unary_mccnn_forward.5} parent=11 // pred_fallthru
        _
    $region12: #{unary_mccnn_forward.5} parent=5 // pred_fallthru
      _
    %p124 = scmp.lt.s32.totalorder %s9, 2
    // Predicated region
    $region21: #{unary_mccnn_forward.5} parent=5 // pred_check
      %p125 = pneg %p124
    $region22: #{unary_mccnn_forward.5} parent=5 // pred_check_branch
      %127 = sbr.rel (%p125) target = $region24
    $region23: #{unary_mccnn_forward.5} parent=5 // pred_region
      // Predicated region
      $region25: #{unary_mccnn_forward.5} parent=23 // pred_check
        %p128 = pneg %p29
      $region26: #{unary_mccnn_forward.5} parent=23 // pred_check_branch
        %130 = sbr.rel (%p128) target = $region28
      $region27: #{unary_mccnn_forward.5} parent=23 // pred_region
        %p131 = scmp.lt.s32.totalorder %s9, 1
        %s132 = scalar_select %p131, %s9, 1
        %s133 = smul.addr %s132, 12
        %s134 = smul.addr %s133, 8
        %s135 = scalar_lea.vmem %s0, %s134
      $region28: #{unary_mccnn_forward.5} parent=23 // pred_fallthru
        _
    $region24: #{unary_mccnn_forward.5} parent=5 // pred_fallthru
      _
    %p136 = scmp.le.s32.totalorder 1, %s9
    %p137 = scmp.lt.s32.totalorder %s9, 3
    %p138 = pnand %p136, %p137
    %p139 = pneg %p138
    // Predicated region
    $region29: #{unary_mccnn_forward.5} parent=5 // pred_check
      _
    $region30: #{unary_mccnn_forward.5} parent=5 // pred_check_branch
      %141 = sbr.rel (%p138) target = $region32
    $region31: #{unary_mccnn_forward.5} parent=5 // pred_region
      %s142 = ssub.s32 %s9, 1
      %p143 = scmp.lt.s32.totalorder %s14, 1
      %s144 = scalar_select %p143, %s14, 1
      %s145 = smul.addr %s144, 12
      %s146 = smul.addr %s145, 8
      %s147 = scalar_lea.vmem %s0, %s146
      %p148 = pneg %p35
      %p149 = pneg %p32
      %p150 = pneg %p56
      %p151 = pneg %p53
      %p152 = pneg %p77
      %p153 = pneg %p74
      %p154 = pneg %p103
      %p155 = pneg %p100
      %p156 = scmp.lt.s32.totalorder %s14, 1
      %s157 = scalar_select %p156, %s14, 1
      %s158 = smul.addr %s157, 8
      %s159 = smul.addr %s158, 8
      %s160 = scalar_lea.vmem %s3, %s159
      %p161 = scmp.lt.s32.totalorder %s14, 1
      %s162 = scalar_select %p161, %s14, 1
      %s163 = smul.addr %s162, 12
      %s164 = smul.addr %s163, 8
      %s165 = scalar_lea.vmem %s0, %s164
      %p166 = scmp.lt.s32.totalorder %s14, 1
      %s167 = scalar_select %p166, %s14, 1
      %s168 = smul.addr %s167, 8
      %s169 = smul.addr %s168, 8
      %s170 = scalar_lea.vmem %s3, %s169
      %v171 = vld [vmem:[%s165] sm:$0xff]
      %v172 = vld [vmem:[%s165 + $0x8] sm:$0xff]
      %v173 = vld [vmem:[%s165 + $0x18] sm:$0xff]
      %v174 = vld [vmem:[%s165 + $0x20] sm:$0xff]
      %v175 = vld [vmem:[%s165 + $0x30] sm:$0xff]
      %v176 = vld [vmem:[%s165 + $0x38] sm:$0xff]
      %v177 = vld [vmem:[%s165 + $0x48] sm:$0xff]
      %v178 = vld [vmem:[%s165 + $0x50] sm:$0xff]
      %179 = vst [vmem:[#allocation2] sm:$0xff] %v171
      %180 = vst [vmem:[#allocation2 + $0x8] sm:$0xff] %v172
      %181 = vst [vmem:[#allocation2 + $0x10] sm:$0xff] %v173
      %182 = vst [vmem:[#allocation2 + $0x18] sm:$0xff] %v174
      %183 = vst [vmem:[#allocation2 + $0x20] sm:$0xff] %v175
      %184 = vst [vmem:[#allocation2 + $0x28] sm:$0xff] %v176
      %185 = vst [vmem:[#allocation2 + $0x30] sm:$0xff] %v177
      %186 = vst [vmem:[#allocation2 + $0x38] sm:$0xff] %v178
      %v187 = vld [vmem:[%s165] sm:$0xff]
      %v188 = vld [vmem:[%s165 + $0x8] sm:$0xff]
      %v189 = vld [vmem:[%s165 + $0x10] sm:$0xff]
      %v190 = vld [vmem:[%s165 + $0x18] sm:$0xff]
      %v191 = vld [vmem:[%s165 + $0x20] sm:$0xff]
      %v192 = vld [vmem:[%s165 + $0x28] sm:$0xff]
      %v193 = vld [vmem:[%s165 + $0x30] sm:$0xff]
      %v194 = vld [vmem:[%s165 + $0x38] sm:$0xff]
      %v195 = vld [vmem:[%s165 + $0x40] sm:$0xff]
      %v196 = vld [vmem:[%s165 + $0x48] sm:$0xff]
      %v197 = vld [vmem:[%s165 + $0x50] sm:$0xff]
      %v198 = vld [vmem:[%s165 + $0x58] sm:$0xff]
      %211 = vrot.lane.b32.xlu0 %v187, 127
      %v212 = vpop.permute.xlu0 %211
      %213 = vrot.lane.b32.xlu0 %v188, 127
      %v214 = vpop.permute.xlu0 %213
      %215 = vrot.lane.b32.xlu0 %v189, 127
      %v216 = vpop.permute.xlu0 %215
      %217 = vrot.lane.b32.xlu0 %v190, 127
      %v218 = vpop.permute.xlu0 %217
      %219 = vrot.lane.b32.xlu0 %v191, 127
      %v220 = vpop.permute.xlu0 %219
      %221 = vrot.lane.b32.xlu0 %v192, 127
      %v222 = vpop.permute.xlu0 %221
      %223 = vrot.lane.b32.xlu0 %v193, 127
      %v224 = vpop.permute.xlu0 %223
      %225 = vrot.lane.b32.xlu0 %v194, 127
      %v226 = vpop.permute.xlu0 %225
      %227 = vrot.lane.b32.xlu0 %v195, 127
      %v228 = vpop.permute.xlu0 %227
      %229 = vrot.lane.b32.xlu0 %v196, 127
      %v230 = vpop.permute.xlu0 %229
      %231 = vrot.lane.b32.xlu0 %v197, 127
      %v232 = vpop.permute.xlu0 %231
      %233 = vrot.lane.b32.xlu0 %v198, 127
      %v234 = vpop.permute.xlu0 %233
      %vm235 = vcmask 1039360
      %v236 = vsel %vm235, %v212, %v214
      %v237 = vsel %vm235, %v214, %v216
      %v238 = vsel %vm235, %v218, %v220
      %v239 = vsel %vm235, %v220, %v222
      %v240 = vsel %vm235, %v224, %v226
      %v241 = vsel %vm235, %v226, %v228
      %v242 = vsel %vm235, %v230, %v232
      %v243 = vsel %vm235, %v232, %v234
      %252 = vst [vmem:[#allocation2 + $0x40] sm:$0xff] %v236
      %253 = vst [vmem:[#allocation2 + $0x48] sm:$0xff] %v237
      %254 = vst [vmem:[#allocation2 + $0x50] sm:$0xff] %v238
      %255 = vst [vmem:[#allocation2 + $0x58] sm:$0xff] %v239
      %256 = vst [vmem:[#allocation2 + $0x60] sm:$0xff] %v240
      %257 = vst [vmem:[#allocation2 + $0x68] sm:$0xff] %v241
      %258 = vst [vmem:[#allocation2 + $0x70] sm:$0xff] %v242
      %259 = vst [vmem:[#allocation2 + $0x78] sm:$0xff] %v243
      %v260 = vld [vmem:[%s165] sm:$0xff]
      %v261 = vld [vmem:[%s165 + $0x8] sm:$0xff]
      %v262 = vld [vmem:[%s165 + $0x10] sm:$0xff]
      %v263 = vld [vmem:[%s165 + $0x18] sm:$0xff]
      %v264 = vld [vmem:[%s165 + $0x20] sm:$0xff]
      %v265 = vld [vmem:[%s165 + $0x28] sm:$0xff]
      %v266 = vld [vmem:[%s165 + $0x30] sm:$0xff]
      %v267 = vld [vmem:[%s165 + $0x38] sm:$0xff]
      %v268 = vld [vmem:[%s165 + $0x40] sm:$0xff]
      %v269 = vld [vmem:[%s165 + $0x48] sm:$0xff]
      %v270 = vld [vmem:[%s165 + $0x50] sm:$0xff]
      %v271 = vld [vmem:[%s165 + $0x58] sm:$0xff]
      %284 = vrot.lane.b32.xlu0 %v260, 126
      %v285 = vpop.permute.xlu0 %284
      %286 = vrot.lane.b32.xlu0 %v261, 126
      %v287 = vpop.permute.xlu0 %286
      %288 = vrot.lane.b32.xlu0 %v262, 126
      %v289 = vpop.permute.xlu0 %288
      %290 = vrot.lane.b32.xlu0 %v263, 126
      %v291 = vpop.permute.xlu0 %290
      %292 = vrot.lane.b32.xlu0 %v264, 126
      %v293 = vpop.permute.xlu0 %292
      %294 = vrot.lane.b32.xlu0 %v265, 126
      %v295 = vpop.permute.xlu0 %294
      %296 = vrot.lane.b32.xlu0 %v266, 126
      %v297 = vpop.permute.xlu0 %296
      %298 = vrot.lane.b32.xlu0 %v267, 126
      %v299 = vpop.permute.xlu0 %298
      %300 = vrot.lane.b32.xlu0 %v268, 126
      %v301 = vpop.permute.xlu0 %300
      %302 = vrot.lane.b32.xlu0 %v269, 126
      %v303 = vpop.permute.xlu0 %302
      %304 = vrot.lane.b32.xlu0 %v270, 126
      %v305 = vpop.permute.xlu0 %304
      %306 = vrot.lane.b32.xlu0 %v271, 126
      %v307 = vpop.permute.xlu0 %306
      %vm308 = vcmask 1031168
      %v309 = vsel %vm308, %v285, %v287
      %v310 = vsel %vm308, %v287, %v289
      %v311 = vsel %vm308, %v291, %v293
      %v312 = vsel %vm308, %v293, %v295
      %v313 = vsel %vm308, %v297, %v299
      %v314 = vsel %vm308, %v299, %v301
      %v315 = vsel %vm308, %v303, %v305
      %v316 = vsel %vm308, %v305, %v307
      %325 = vst [vmem:[#allocation2 + $0x80] sm:$0xff] %v309
      %326 = vst [vmem:[#allocation2 + $0x88] sm:$0xff] %v310
      %327 = vst [vmem:[#allocation2 + $0x90] sm:$0xff] %v311
      %328 = vst [vmem:[#allocation2 + $0x98] sm:$0xff] %v312
      %329 = vst [vmem:[#allocation2 + $0xa0] sm:$0xff] %v313
      %330 = vst [vmem:[#allocation2 + $0xa8] sm:$0xff] %v314
      %331 = vst [vmem:[#allocation2 + $0xb0] sm:$0xff] %v315
      %332 = vst [vmem:[#allocation2 + $0xb8] sm:$0xff] %v316
      %v333 = vld [vmem:[%s165] sm:$0xff]
      %v334 = vld [vmem:[%s165 + $0x8] sm:$0xff]
      %v335 = vld [vmem:[%s165 + $0x10] sm:$0xff]
      %v336 = vld [vmem:[%s165 + $0x18] sm:$0xff]
      %v337 = vld [vmem:[%s165 + $0x20] sm:$0xff]
      %v338 = vld [vmem:[%s165 + $0x28] sm:$0xff]
      %v339 = vld [vmem:[%s165 + $0x30] sm:$0xff]
      %v340 = vld [vmem:[%s165 + $0x38] sm:$0xff]
      %v341 = vld [vmem:[%s165 + $0x40] sm:$0xff]
      %v342 = vld [vmem:[%s165 + $0x48] sm:$0xff]
      %v343 = vld [vmem:[%s165 + $0x50] sm:$0xff]
      %v344 = vld [vmem:[%s165 + $0x58] sm:$0xff]
      %357 = vrot.lane.b32.xlu0 %v333, 118
      %v358 = vpop.permute.xlu0 %357
      %359 = vrot.lane.b32.xlu0 %v334, 118
      %v360 = vpop.permute.xlu0 %359
      %361 = vrot.lane.b32.xlu0 %v335, 118
      %v362 = vpop.permute.xlu0 %361
      %363 = vrot.lane.b32.xlu0 %v336, 118
      %v364 = vpop.permute.xlu0 %363
      %365 = vrot.lane.b32.xlu0 %v337, 118
      %v366 = vpop.permute.xlu0 %365
      %367 = vrot.lane.b32.xlu0 %v338, 118
      %v368 = vpop.permute.xlu0 %367
      %369 = vrot.lane.b32.xlu0 %v339, 118
      %v370 = vpop.permute.xlu0 %369
      %371 = vrot.lane.b32.xlu0 %v340, 118
      %v372 = vpop.permute.xlu0 %371
      %373 = vrot.lane.b32.xlu0 %v341, 118
      %v374 = vpop.permute.xlu0 %373
      %375 = vrot.lane.b32.xlu0 %v342, 118
      %v376 = vpop.permute.xlu0 %375
      %377 = vrot.lane.b32.xlu0 %v343, 118
      %v378 = vpop.permute.xlu0 %377
      %379 = vrot.lane.b32.xlu0 %v344, 118
      %v380 = vpop.permute.xlu0 %379
      %vm381 = vcmask 965632
      %v382 = vsel %vm381, %v358, %v360
      %v383 = vsel %vm381, %v360, %v362
      %v384 = vsel %vm381, %v364, %v366
      %v385 = vsel %vm381, %v366, %v368
      %v386 = vsel %vm381, %v370, %v372
      %v387 = vsel %vm381, %v372, %v374
      %v388 = vsel %vm381, %v376, %v378
      %v389 = vsel %vm381, %v378, %v380
      %398 = vst [vmem:[#allocation2 + $0xc0] sm:$0xff] %v382
      %399 = vst [vmem:[#allocation2 + $0xc8] sm:$0xff] %v383
      %400 = vst [vmem:[#allocation2 + $0xd0] sm:$0xff] %v384
      %401 = vst [vmem:[#allocation2 + $0xd8] sm:$0xff] %v385
      %402 = vst [vmem:[#allocation2 + $0xe0] sm:$0xff] %v386
      %403 = vst [vmem:[#allocation2 + $0xe8] sm:$0xff] %v387
      %404 = vst [vmem:[#allocation2 + $0xf0] sm:$0xff] %v388
      %405 = vst [vmem:[#allocation2 + $0xf8] sm:$0xff] %v389
      %v406 = vld [vmem:[%s165] sm:$0xff]
      %v407 = vld [vmem:[%s165 + $0x8] sm:$0xff]
      %v408 = vld [vmem:[%s165 + $0x10] sm:$0xff]
      %v409 = vld [vmem:[%s165 + $0x18] sm:$0xff]
      %v410 = vld [vmem:[%s165 + $0x20] sm:$0xff]
      %v411 = vld [vmem:[%s165 + $0x28] sm:$0xff]
      %v412 = vld [vmem:[%s165 + $0x30] sm:$0xff]
      %v413 = vld [vmem:[%s165 + $0x38] sm:$0xff]
      %v414 = vld [vmem:[%s165 + $0x40] sm:$0xff]
      %v415 = vld [vmem:[%s165 + $0x48] sm:$0xff]
      %v416 = vld [vmem:[%s165 + $0x50] sm:$0xff]
      %v417 = vld [vmem:[%s165 + $0x58] sm:$0xff]
      %430 = vrot.lane.b32.xlu0 %v406, 117
      %v431 = vpop.permute.xlu0 %430
      %432 = vrot.lane.b32.xlu0 %v407, 117
      %v433 = vpop.permute.xlu0 %432
      %434 = vrot.lane.b32.xlu0 %v408, 117
      %v435 = vpop.permute.xlu0 %434
      %436 = vrot.lane.b32.xlu0 %v409, 117
      %v437 = vpop.permute.xlu0 %436
      %438 = vrot.lane.b32.xlu0 %v410, 117
      %v439 = vpop.permute.xlu0 %438
      %440 = vrot.lane.b32.xlu0 %v411, 117
      %v441 = vpop.permute.xlu0 %440
      %442 = vrot.lane.b32.xlu0 %v412, 117
      %v443 = vpop.permute.xlu0 %442
      %444 = vrot.lane.b32.xlu0 %v413, 117
      %v445 = vpop.permute.xlu0 %444
      %446 = vrot.lane.b32.xlu0 %v414, 117
      %v447 = vpop.permute.xlu0 %446
      %448 = vrot.lane.b32.xlu0 %v415, 117
      %v449 = vpop.permute.xlu0 %448
      %450 = vrot.lane.b32.xlu0 %v416, 117
      %v451 = vpop.permute.xlu0 %450
      %452 = vrot.lane.b32.xlu0 %v417, 117
      %v453 = vpop.permute.xlu0 %452
      %vm454 = vcmask 957440
      %v455 = vsel %vm454, %v431, %v433
      %v456 = vsel %vm454, %v433, %v435
      %v457 = vsel %vm454, %v437, %v439
      %v458 = vsel %vm454, %v439, %v441
      %v459 = vsel %vm454, %v443, %v445
      %v460 = vsel %vm454, %v445, %v447
      %v461 = vsel %vm454, %v449, %v451
      %v462 = vsel %vm454, %v451, %v453
      %471 = vst [vmem:[#allocation2 + $0x100] sm:$0xff] %v455
      %472 = vst [vmem:[#allocation2 + $0x108] sm:$0xff] %v456
      %473 = vst [vmem:[#allocation2 + $0x110] sm:$0xff] %v457
      %474 = vst [vmem:[#allocation2 + $0x118] sm:$0xff] %v458
      %475 = vst [vmem:[#allocation2 + $0x120] sm:$0xff] %v459
      %476 = vst [vmem:[#allocation2 + $0x128] sm:$0xff] %v460
      %477 = vst [vmem:[#allocation2 + $0x130] sm:$0xff] %v461
      %478 = vst [vmem:[#allocation2 + $0x138] sm:$0xff] %v462
      %v479 = vld [vmem:[%s165] sm:$0xff]
      %v480 = vld [vmem:[%s165 + $0x8] sm:$0xff]
      %v481 = vld [vmem:[%s165 + $0x10] sm:$0xff]
      %v482 = vld [vmem:[%s165 + $0x18] sm:$0xff]
      %v483 = vld [vmem:[%s165 + $0x20] sm:$0xff]
      %v484 = vld [vmem:[%s165 + $0x28] sm:$0xff]
      %v485 = vld [vmem:[%s165 + $0x30] sm:$0xff]
      %v486 = vld [vmem:[%s165 + $0x38] sm:$0xff]
      %v487 = vld [vmem:[%s165 + $0x40] sm:$0xff]
      %v488 = vld [vmem:[%s165 + $0x48] sm:$0xff]
      %v489 = vld [vmem:[%s165 + $0x50] sm:$0xff]
      %v490 = vld [vmem:[%s165 + $0x58] sm:$0xff]
      %503 = vrot.lane.b32.xlu0 %v479, 116
      %v504 = vpop.permute.xlu0 %503
      %505 = vrot.lane.b32.xlu0 %v480, 116
      %v506 = vpop.permute.xlu0 %505
      %507 = vrot.lane.b32.xlu0 %v481, 116
      %v508 = vpop.permute.xlu0 %507
      %509 = vrot.lane.b32.xlu0 %v482, 116
      %v510 = vpop.permute.xlu0 %509
      %511 = vrot.lane.b32.xlu0 %v483, 116
      %v512 = vpop.permute.xlu0 %511
      %513 = vrot.lane.b32.xlu0 %v484, 116
      %v514 = vpop.permute.xlu0 %513
      %515 = vrot.lane.b32.xlu0 %v485, 116
      %v516 = vpop.permute.xlu0 %515
      %517 = vrot.lane.b32.xlu0 %v486, 116
      %v518 = vpop.permute.xlu0 %517
      %519 = vrot.lane.b32.xlu0 %v487, 116
      %v520 = vpop.permute.xlu0 %519
      %521 = vrot.lane.b32.xlu0 %v488, 116
      %v522 = vpop.permute.xlu0 %521
      %523 = vrot.lane.b32.xlu0 %v489, 116
      %v524 = vpop.permute.xlu0 %523
      %525 = vrot.lane.b32.xlu0 %v490, 116
      %v526 = vpop.permute.xlu0 %525
      %vm527 = vcmask 949248
      %v528 = vsel %vm527, %v504, %v506
      %v529 = vsel %vm527, %v506, %v508
      %v530 = vsel %vm527, %v510, %v512
      %v531 = vsel %vm527, %v512, %v514
      %v532 = vsel %vm527, %v516, %v518
      %v533 = vsel %vm527, %v518, %v520
      %v534 = vsel %vm527, %v522, %v524
      %v535 = vsel %vm527, %v524, %v526
      %544 = vst [vmem:[#allocation2 + $0x140] sm:$0xff] %v528
      %545 = vst [vmem:[#allocation2 + $0x148] sm:$0xff] %v529
      %546 = vst [vmem:[#allocation2 + $0x150] sm:$0xff] %v530
      %547 = vst [vmem:[#allocation2 + $0x158] sm:$0xff] %v531
      %548 = vst [vmem:[#allocation2 + $0x160] sm:$0xff] %v532
      %549 = vst [vmem:[#allocation2 + $0x168] sm:$0xff] %v533
      %550 = vst [vmem:[#allocation2 + $0x170] sm:$0xff] %v534
      %551 = vst [vmem:[#allocation2 + $0x178] sm:$0xff] %v535
      %v552 = vld [vmem:[%s165] sm:$0xff]
      %v553 = vld [vmem:[%s165 + $0x8] sm:$0xff]
      %v554 = vld [vmem:[%s165 + $0x10] sm:$0xff]
      %v555 = vld [vmem:[%s165 + $0x18] sm:$0xff]
      %v556 = vld [vmem:[%s165 + $0x20] sm:$0xff]
      %v557 = vld [vmem:[%s165 + $0x28] sm:$0xff]
      %v558 = vld [vmem:[%s165 + $0x30] sm:$0xff]
      %v559 = vld [vmem:[%s165 + $0x38] sm:$0xff]
      %v560 = vld [vmem:[%s165 + $0x40] sm:$0xff]
      %v561 = vld [vmem:[%s165 + $0x48] sm:$0xff]
      %v562 = vld [vmem:[%s165 + $0x50] sm:$0xff]
      %v563 = vld [vmem:[%s165 + $0x58] sm:$0xff]
      %576 = vrot.lane.b32.xlu0 %v552, 108
      %v577 = vpop.permute.xlu0 %576
      %578 = vrot.lane.b32.xlu0 %v553, 108
      %v579 = vpop.permute.xlu0 %578
      %580 = vrot.lane.b32.xlu0 %v554, 108
      %v581 = vpop.permute.xlu0 %580
      %582 = vrot.lane.b32.xlu0 %v555, 108
      %v583 = vpop.permute.xlu0 %582
      %584 = vrot.lane.b32.xlu0 %v556, 108
      %v585 = vpop.permute.xlu0 %584
      %586 = vrot.lane.b32.xlu0 %v557, 108
      %v587 = vpop.permute.xlu0 %586
      %588 = vrot.lane.b32.xlu0 %v558, 108
      %v589 = vpop.permute.xlu0 %588
      %590 = vrot.lane.b32.xlu0 %v559, 108
      %v591 = vpop.permute.xlu0 %590
      %592 = vrot.lane.b32.xlu0 %v560, 108
      %v593 = vpop.permute.xlu0 %592
      %594 = vrot.lane.b32.xlu0 %v561, 108
      %v595 = vpop.permute.xlu0 %594
      %596 = vrot.lane.b32.xlu0 %v562, 108
      %v597 = vpop.permute.xlu0 %596
      %598 = vrot.lane.b32.xlu0 %v563, 108
      %v599 = vpop.permute.xlu0 %598
      %vm600 = vcmask 883712
      %v601 = vsel %vm600, %v577, %v579
      %v602 = vsel %vm600, %v579, %v581
      %v603 = vsel %vm600, %v583, %v585
      %v604 = vsel %vm600, %v585, %v587
      %v605 = vsel %vm600, %v589, %v591
      %v606 = vsel %vm600, %v591, %v593
      %v607 = vsel %vm600, %v595, %v597
      %v608 = vsel %vm600, %v597, %v599
      %617 = vst [vmem:[#allocation2 + $0x180] sm:$0xff] %v601
      %618 = vst [vmem:[#allocation2 + $0x188] sm:$0xff] %v602
      %619 = vst [vmem:[#allocation2 + $0x190] sm:$0xff] %v603
      %620 = vst [vmem:[#allocation2 + $0x198] sm:$0xff] %v604
      %621 = vst [vmem:[#allocation2 + $0x1a0] sm:$0xff] %v605
      %622 = vst [vmem:[#allocation2 + $0x1a8] sm:$0xff] %v606
      %623 = vst [vmem:[#allocation2 + $0x1b0] sm:$0xff] %v607
      %624 = vst [vmem:[#allocation2 + $0x1b8] sm:$0xff] %v608
      %v625 = vld [vmem:[%s165] sm:$0xff]
      %v626 = vld [vmem:[%s165 + $0x8] sm:$0xff]
      %v627 = vld [vmem:[%s165 + $0x10] sm:$0xff]
      %v628 = vld [vmem:[%s165 + $0x18] sm:$0xff]
      %v629 = vld [vmem:[%s165 + $0x20] sm:$0xff]
      %v630 = vld [vmem:[%s165 + $0x28] sm:$0xff]
      %v631 = vld [vmem:[%s165 + $0x30] sm:$0xff]
      %v632 = vld [vmem:[%s165 + $0x38] sm:$0xff]
      %v633 = vld [vmem:[%s165 + $0x40] sm:$0xff]
      %v634 = vld [vmem:[%s165 + $0x48] sm:$0xff]
      %v635 = vld [vmem:[%s165 + $0x50] sm:$0xff]
      %v636 = vld [vmem:[%s165 + $0x58] sm:$0xff]
      %649 = vrot.lane.b32.xlu0 %v625, 107
      %v650 = vpop.permute.xlu0 %649
      %651 = vrot.lane.b32.xlu0 %v626, 107
      %v652 = vpop.permute.xlu0 %651
      %653 = vrot.lane.b32.xlu0 %v627, 107
      %v654 = vpop.permute.xlu0 %653
      %655 = vrot.lane.b32.xlu0 %v628, 107
      %v656 = vpop.permute.xlu0 %655
      %657 = vrot.lane.b32.xlu0 %v629, 107
      %v658 = vpop.permute.xlu0 %657
      %659 = vrot.lane.b32.xlu0 %v630, 107
      %v660 = vpop.permute.xlu0 %659
      %661 = vrot.lane.b32.xlu0 %v631, 107
      %v662 = vpop.permute.xlu0 %661
      %663 = vrot.lane.b32.xlu0 %v632, 107
      %v664 = vpop.permute.xlu0 %663
      %665 = vrot.lane.b32.xlu0 %v633, 107
      %v666 = vpop.permute.xlu0 %665
      %667 = vrot.lane.b32.xlu0 %v634, 107
      %v668 = vpop.permute.xlu0 %667
      %669 = vrot.lane.b32.xlu0 %v635, 107
      %v670 = vpop.permute.xlu0 %669
      %671 = vrot.lane.b32.xlu0 %v636, 107
      %v672 = vpop.permute.xlu0 %671
      %vm673 = vcmask 875520
      %v674 = vsel %vm673, %v650, %v652
      %v675 = vsel %vm673, %v652, %v654
      %v676 = vsel %vm673, %v656, %v658
      %v677 = vsel %vm673, %v658, %v660
      %v678 = vsel %vm673, %v662, %v664
      %v679 = vsel %vm673, %v664, %v666
      %v680 = vsel %vm673, %v668, %v670
      %v681 = vsel %vm673, %v670, %v672
      %690 = vst [vmem:[#allocation2 + $0x1c0] sm:$0xff] %v674
      %691 = vst [vmem:[#allocation2 + $0x1c8] sm:$0xff] %v675
      %692 = vst [vmem:[#allocation2 + $0x1d0] sm:$0xff] %v676
      %693 = vst [vmem:[#allocation2 + $0x1d8] sm:$0xff] %v677
      %694 = vst [vmem:[#allocation2 + $0x1e0] sm:$0xff] %v678
      %695 = vst [vmem:[#allocation2 + $0x1e8] sm:$0xff] %v679
      %696 = vst [vmem:[#allocation2 + $0x1f0] sm:$0xff] %v680
      %697 = vst [vmem:[#allocation2 + $0x1f8] sm:$0xff] %v681
      %v698 = vld [vmem:[%s165] sm:$0xff]
      %v699 = vld [vmem:[%s165 + $0x8] sm:$0xff]
      %v700 = vld [vmem:[%s165 + $0x10] sm:$0xff]
      %v701 = vld [vmem:[%s165 + $0x18] sm:$0xff]
      %v702 = vld [vmem:[%s165 + $0x20] sm:$0xff]
      %v703 = vld [vmem:[%s165 + $0x28] sm:$0xff]
      %v704 = vld [vmem:[%s165 + $0x30] sm:$0xff]
      %v705 = vld [vmem:[%s165 + $0x38] sm:$0xff]
      %v706 = vld [vmem:[%s165 + $0x40] sm:$0xff]
      %v707 = vld [vmem:[%s165 + $0x48] sm:$0xff]
      %v708 = vld [vmem:[%s165 + $0x50] sm:$0xff]
      %v709 = vld [vmem:[%s165 + $0x58] sm:$0xff]
      %722 = vrot.lane.b32.xlu0 %v698, 106
      %v723 = vpop.permute.xlu0 %722
      %724 = vrot.lane.b32.xlu0 %v699, 106
      %v725 = vpop.permute.xlu0 %724
      %726 = vrot.lane.b32.xlu0 %v700, 106
      %v727 = vpop.permute.xlu0 %726
      %728 = vrot.lane.b32.xlu0 %v701, 106
      %v729 = vpop.permute.xlu0 %728
      %730 = vrot.lane.b32.xlu0 %v702, 106
      %v731 = vpop.permute.xlu0 %730
      %732 = vrot.lane.b32.xlu0 %v703, 106
      %v733 = vpop.permute.xlu0 %732
      %734 = vrot.lane.b32.xlu0 %v704, 106
      %v735 = vpop.permute.xlu0 %734
      %736 = vrot.lane.b32.xlu0 %v705, 106
      %v737 = vpop.permute.xlu0 %736
      %738 = vrot.lane.b32.xlu0 %v706, 106
      %v739 = vpop.permute.xlu0 %738
      %740 = vrot.lane.b32.xlu0 %v707, 106
      %v741 = vpop.permute.xlu0 %740
      %742 = vrot.lane.b32.xlu0 %v708, 106
      %v743 = vpop.permute.xlu0 %742
      %744 = vrot.lane.b32.xlu0 %v709, 106
      %v745 = vpop.permute.xlu0 %744
      %vm746 = vcmask 867328
      %v747 = vsel %vm746, %v723, %v725
      %v748 = vsel %vm746, %v725, %v727
      %v749 = vsel %vm746, %v729, %v731
      %v750 = vsel %vm746, %v731, %v733
      %v751 = vsel %vm746, %v735, %v737
      %v752 = vsel %vm746, %v737, %v739
      %v753 = vsel %vm746, %v741, %v743
      %v754 = vsel %vm746, %v743, %v745
      %763 = vst [vmem:[#allocation2 + $0x200] sm:$0xff] %v747
      %764 = vst [vmem:[#allocation2 + $0x208] sm:$0xff] %v748
      %765 = vst [vmem:[#allocation2 + $0x210] sm:$0xff] %v749
      %766 = vst [vmem:[#allocation2 + $0x218] sm:$0xff] %v750
      %767 = vst [vmem:[#allocation2 + $0x220] sm:$0xff] %v751
      %768 = vst [vmem:[#allocation2 + $0x228] sm:$0xff] %v752
      %769 = vst [vmem:[#allocation2 + $0x230] sm:$0xff] %v753
      %770 = vst [vmem:[#allocation2 + $0x238] sm:$0xff] %v754
      %v771 = vld [vmem:[%s1] sm:$0xff]
      %v772 = vld [vmem:[%s1 + $0x8] sm:$0xff]
      %v773 = vld [vmem:[%s1 + $0x10] sm:$0xff]
      %v774 = vld [vmem:[%s1 + $0x18] sm:$0xff]
      %v775 = vld [vmem:[%s1 + $0x20] sm:$0xff]
      %v776 = vld [vmem:[%s1 + $0x28] sm:$0xff]
      %v777 = vld [vmem:[%s1 + $0x30] sm:$0xff]
      %v778 = vld [vmem:[%s1 + $0x38] sm:$0xff]
      %v779 = vld [vmem:[%s1 + $0x40] sm:$0xff]
      %v780 = vld [vmem:[%s1 + $0x48] sm:$0xff]
      %v781 = vld [vmem:[%s1 + $0x50] sm:$0xff]
      %v782 = vld [vmem:[%s1 + $0x58] sm:$0xff]
      %v783 = vld [vmem:[#allocation2] sm:$0xff]
      %v784 = vld [vmem:[#allocation2 + $0x8] sm:$0xff]
      %v785 = vld [vmem:[#allocation2 + $0x10] sm:$0xff]
      %v786 = vld [vmem:[#allocation2 + $0x18] sm:$0xff]
      %v787 = vld [vmem:[#allocation2 + $0x20] sm:$0xff]
      %v788 = vld [vmem:[#allocation2 + $0x28] sm:$0xff]
      %v789 = vld [vmem:[#allocation2 + $0x30] sm:$0xff]
      %v790 = vld [vmem:[#allocation2 + $0x38] sm:$0xff]
      %v791 = vld [vmem:[#allocation2 + $0x40] sm:$0xff]
      %v792 = vld [vmem:[#allocation2 + $0x48] sm:$0xff]
      %v793 = vld [vmem:[#allocation2 + $0x50] sm:$0xff]
      %v794 = vld [vmem:[#allocation2 + $0x58] sm:$0xff]
      %v795 = vld [vmem:[#allocation2 + $0x60] sm:$0xff]
      %v796 = vld [vmem:[#allocation2 + $0x68] sm:$0xff]
      %v797 = vld [vmem:[#allocation2 + $0x70] sm:$0xff]
      %v798 = vld [vmem:[#allocation2 + $0x78] sm:$0xff]
      %v799 = vld [vmem:[#allocation2 + $0x80] sm:$0xff]
      %v800 = vld [vmem:[#allocation2 + $0x88] sm:$0xff]
      %v801 = vld [vmem:[#allocation2 + $0x90] sm:$0xff]
      %v802 = vld [vmem:[#allocation2 + $0x98] sm:$0xff]
      %v803 = vld [vmem:[#allocation2 + $0xa0] sm:$0xff]
      %v804 = vld [vmem:[#allocation2 + $0xa8] sm:$0xff]
      %v805 = vld [vmem:[#allocation2 + $0xb0] sm:$0xff]
      %v806 = vld [vmem:[#allocation2 + $0xb8] sm:$0xff]
      %v807 = vld [vmem:[#allocation2 + $0xc0] sm:$0xff]
      %v808 = vld [vmem:[#allocation2 + $0xc8] sm:$0xff]
      %v809 = vld [vmem:[#allocation2 + $0xd0] sm:$0xff]
      %v810 = vld [vmem:[#allocation2 + $0xd8] sm:$0xff]
      %v811 = vld [vmem:[#allocation2 + $0xe0] sm:$0xff]
      %v812 = vld [vmem:[#allocation2 + $0xe8] sm:$0xff]
      %v813 = vld [vmem:[#allocation2 + $0xf0] sm:$0xff]
      %v814 = vld [vmem:[#allocation2 + $0xf8] sm:$0xff]
      %v815 = vld [vmem:[#allocation2 + $0x100] sm:$0xff]
      %v816 = vld [vmem:[#allocation2 + $0x108] sm:$0xff]
      %v817 = vld [vmem:[#allocation2 + $0x110] sm:$0xff]
      %v818 = vld [vmem:[#allocation2 + $0x118] sm:$0xff]
      %v819 = vld [vmem:[#allocation2 + $0x120] sm:$0xff]
      %v820 = vld [vmem:[#allocation2 + $0x128] sm:$0xff]
      %v821 = vld [vmem:[#allocation2 + $0x130] sm:$0xff]
      %v822 = vld [vmem:[#allocation2 + $0x138] sm:$0xff]
      %v823 = vld [vmem:[#allocation2 + $0x140] sm:$0xff]
      %v824 = vld [vmem:[#allocation2 + $0x148] sm:$0xff]
      %v825 = vld [vmem:[#allocation2 + $0x150] sm:$0xff]
      %v826 = vld [vmem:[#allocation2 + $0x158] sm:$0xff]
      %v827 = vld [vmem:[#allocation2 + $0x160] sm:$0xff]
      %v828 = vld [vmem:[#allocation2 + $0x168] sm:$0xff]
      %v829 = vld [vmem:[#allocation2 + $0x170] sm:$0xff]
      %v830 = vld [vmem:[#allocation2 + $0x178] sm:$0xff]
      %v831 = vld [vmem:[#allocation2 + $0x180] sm:$0xff]
      %v832 = vld [vmem:[#allocation2 + $0x188] sm:$0xff]
      %v833 = vld [vmem:[#allocation2 + $0x190] sm:$0xff]
      %v834 = vld [vmem:[#allocation2 + $0x198] sm:$0xff]
      %v835 = vld [vmem:[#allocation2 + $0x1a0] sm:$0xff]
      %v836 = vld [vmem:[#allocation2 + $0x1a8] sm:$0xff]
      %v837 = vld [vmem:[#allocation2 + $0x1b0] sm:$0xff]
      %v838 = vld [vmem:[#allocation2 + $0x1b8] sm:$0xff]
      %v839 = vld [vmem:[#allocation2 + $0x1c0] sm:$0xff]
      %v840 = vld [vmem:[#allocation2 + $0x1c8] sm:$0xff]
      %v841 = vld [vmem:[#allocation2 + $0x1d0] sm:$0xff]
      %v842 = vld [vmem:[#allocation2 + $0x1d8] sm:$0xff]
      %v843 = vld [vmem:[#allocation2 + $0x1e0] sm:$0xff]
      %v844 = vld [vmem:[#allocation2 + $0x1e8] sm:$0xff]
      %v845 = vld [vmem:[#allocation2 + $0x1f0] sm:$0xff]
      %v846 = vld [vmem:[#allocation2 + $0x1f8] sm:$0xff]
      %v847 = vld [vmem:[#allocation2 + $0x200] sm:$0xff]
      %v848 = vld [vmem:[#allocation2 + $0x208] sm:$0xff]
      %v849 = vld [vmem:[#allocation2 + $0x210] sm:$0xff]
      %v850 = vld [vmem:[#allocation2 + $0x218] sm:$0xff]
      %v851 = vld [vmem:[#allocation2 + $0x220] sm:$0xff]
      %v852 = vld [vmem:[#allocation2 + $0x228] sm:$0xff]
      %v853 = vld [vmem:[#allocation2 + $0x230] sm:$0xff]
      %v854 = vld [vmem:[#allocation2 + $0x238] sm:$0xff]
      %v855 = vld [vmem:[%s2] sm:$0xff]
      %v856 = vld [vmem:[%s2 + $0x8] sm:$0xff]
      %v857 = vld [vmem:[%s2 + $0x10] sm:$0xff]
      %v858 = vld [vmem:[%s2 + $0x18] sm:$0xff]
      %860 = vset.pattern.permute.xlu0 0
      %861 = vperm.xlu0 %860, %v855
      %v862 = vpop.permute.xlu0 %861
      %865 = vset.pattern.permute.xlu0 0
      %866 = vperm.xlu0 %865, %v856
      %v867 = vpop.permute.xlu0 %866
      %870 = vset.pattern.permute.xlu0 0
      %871 = vperm.xlu0 %870, %v857
      %v872 = vpop.permute.xlu0 %871
      %875 = vset.pattern.permute.xlu0 0
      %876 = vperm.xlu0 %875, %v858
      %v877 = vpop.permute.xlu0 %876
      %vm879 = vcmask 261120
      %v881 = vsel %vm879, %v773, 0
      %v884 = vsel %vm879, %v776, 0
      %v887 = vsel %vm879, %v779, 0
      %v890 = vsel %vm879, %v782, 0
      %892 = vmatprep.subr.mxu0 %v784
      %893 = vmatpush1.msra.mxu0 %v783
      %894 = vmatprep.subr.mxu0 %v786
      %895 = vmatpush1.msra.mxu0 %v785
      %896 = vmatprep.subr.mxu0 %v788
      %897 = vmatpush1.msra.mxu0 %v787
      %898 = vmatprep.subr.mxu0 %v790
      %899 = vmatpush1.msra.mxu0 %v789
      %900 = vmatprep.subr.mxu0 %v792
      %901 = vmatpush1.msra.mxu0 %v791
      %902 = vmatprep.subr.mxu0 %v794
      %903 = vmatpush1.msra.mxu0 %v793
      %904 = vmatprep.subr.mxu0 %v796
      %905 = vmatpush1.msra.mxu0 %v795
      %906 = vmatprep.subr.mxu0 %v798
      %907 = vmatpush1.msra.mxu0 %v797
      %908 = vmatprep.subr.mxu0 %v800
      %909 = vmatpush1.msra.mxu0 %v799
      %910 = vmatprep.subr.mxu0 %v802
      %911 = vmatpush1.msra.mxu0 %v801
      %912 = vmatprep.subr.mxu0 %v804
      %913 = vmatpush1.msra.mxu0 %v803
      %914 = vmatprep.subr.mxu0 %v806
      %915 = vmatpush1.msra.mxu0 %v805
      %916 = vmatprep.subr.mxu0 %v808
      %917 = vmatpush1.msra.mxu0 %v807
      %918 = vmatprep.subr.mxu0 %v810
      %919 = vmatpush1.msra.mxu0 %v809
      %920 = vmatprep.subr.mxu0 %v812
      %921 = vmatpush1.msra.mxu0 %v811
      %922 = vmatprep.subr.mxu0 %v814
      %923 = vmatpush1.msra.mxu0 %v813
      %924 = vmatprep.subr.mxu0 %v816
      %925 = vmatpush1.msra.mxu0 %v815
      %926 = vmatprep.subr.mxu0 %v818
      %927 = vmatpush1.msra.mxu0 %v817
      %928 = vmatprep.subr.mxu0 %v820
      %929 = vmatpush1.msra.mxu0 %v819
      %930 = vmatprep.subr.mxu0 %v822
      %931 = vmatpush1.msra.mxu0 %v821
      %932 = vmatprep.subr.mxu0 %v824
      %933 = vmatpush1.msra.mxu0 %v823
      %934 = vmatprep.subr.mxu0 %v826
      %935 = vmatpush1.msra.mxu0 %v825
      %936 = vmatprep.subr.mxu0 %v828
      %937 = vmatpush1.msra.mxu0 %v827
      %938 = vmatprep.subr.mxu0 %v830
      %939 = vmatpush1.msra.mxu0 %v829
      %940 = vmatprep.subr.mxu0 %v832
      %941 = vmatpush1.msra.mxu0 %v831
      %942 = vmatprep.subr.mxu0 %v834
      %943 = vmatpush1.msra.mxu0 %v833
      %944 = vmatprep.subr.mxu0 %v836
      %945 = vmatpush1.msra.mxu0 %v835
      %946 = vmatprep.subr.mxu0 %v838
      %947 = vmatpush1.msra.mxu0 %v837
      %948 = vmatprep.subr.mxu0 %v840
      %949 = vmatpush1.msra.mxu0 %v839
      %950 = vmatprep.subr.mxu0 %v842
      %951 = vmatpush1.msra.mxu0 %v841
      %952 = vmatprep.subr.mxu0 %v844
      %953 = vmatpush1.msra.mxu0 %v843
      %954 = vmatprep.subr.mxu0 %v846
      %955 = vmatpush1.msra.mxu0 %v845
      %956 = vmatprep.mubr.f32.mxu0 %v772
      %957 = vmatmul.mubr.f32.gmra.mrb[0].mxu0 %v771
      %v958 = vpop.f32.mrb[0].mxu0
      %v959 = vadd.f32 %v862, %v958
      %v960 = vpop.f32.mrb[0].mxu0
      %v961 = vadd.f32 %v862, %v960
      %962 = vmatprep.mubr.f32.mxu0 %v775
      %963 = vmatmul.mubr.f32.gmra.mrb[0].mxu0 %v774
      %v964 = vpop.f32.mrb[0].mxu0
      %v965 = vadd.f32 %v867, %v964
      %v966 = vpop.f32.mrb[0].mxu0
      %v967 = vadd.f32 %v867, %v966
      %968 = vmatprep.mubr.f32.mxu0 %v778
      %969 = vmatmul.mubr.f32.gmra.mrb[0].mxu0 %v777
      %v970 = vpop.f32.mrb[0].mxu0
      %v971 = vadd.f32 %v872, %v970
      %v972 = vpop.f32.mrb[0].mxu0
      %v973 = vadd.f32 %v872, %v972
      %974 = vmatprep.mubr.f32.mxu0 %v781
      %975 = vmatmul.mubr.f32.gmra.mrb[0].mxu0 %v780
      %v976 = vpop.f32.mrb[0].mxu0
      %v977 = vadd.f32 %v877, %v976
      %v978 = vpop.f32.mrb[0].mxu0
      %v979 = vadd.f32 %v877, %v978
      %980 = vdwg.mxu0
      %981 = vmatprep.subr.mxu0 %v848
      %982 = vmatpush1.msra.mxu0 %v847
      %983 = vmatprep.subr.mxu0 %v850
      %984 = vmatpush1.msra.mxu0 %v849
      %985 = vmatprep.subr.mxu0 %v852
      %986 = vmatpush1.msra.mxu0 %v851
      %987 = vmatprep.subr.mxu0 %v854
      %988 = vmatpush1.msra.mxu0 %v853
      %989 = vmatprep.subr.mxu0 0.0
      %990 = vmatpush1.msra.mxu0 0.0
      %991 = vmatprep.subr.mxu0 0.0
      %992 = vmatpush1.msra.mxu0 0.0
      %993 = vmatprep.subr.mxu0 0.0
      %994 = vmatpush1.msra.mxu0 0.0
      %995 = vmatprep.subr.mxu0 0.0
      %996 = vmatpush1.msra.mxu0 0.0
      %997 = vmatprep.subr.mxu0 0.0
      %998 = vmatpush1.msra.mxu0 0.0
      %999 = vmatprep.subr.mxu0 0.0
      %1000 = vmatpush1.msra.mxu0 0.0
      %1001 = vmatprep.subr.mxu0 0.0
      %1002 = vmatpush1.msra.mxu0 0.0
      %1003 = vmatprep.subr.mxu0 0.0
      %1004 = vmatpush1.msra.mxu0 0.0
      %1005 = vmatprep.subr.mxu0 0.0
      %1006 = vmatpush1.msra.mxu0 0.0
      %1007 = vmatprep.subr.mxu0 0.0
      %1008 = vmatpush1.msra.mxu0 0.0
      %1009 = vmatprep.subr.mxu0 0.0
      %1010 = vmatpush1.msra.mxu0 0.0
      %1011 = vmatprep.subr.mxu0 0.0
      %1012 = vmatpush1.msra.mxu0 0.0
      %1013 = vmatprep.subr.mxu0 0.0
      %1014 = vmatpush1.msra.mxu0 0.0
      %1015 = vmatprep.subr.mxu0 0.0
      %1016 = vmatpush1.msra.mxu0 0.0
      %1017 = vmatprep.subr.mxu0 0.0
      %1018 = vmatpush1.msra.mxu0 0.0
      %1019 = vmatprep.subr.mxu0 0.0
      %1020 = vmatpush1.msra.mxu0 0.0
      %1021 = vmatprep.subr.mxu0 0.0
      %1022 = vmatpush1.msra.mxu0 0.0
      %1023 = vmatprep.subr.mxu0 0.0
      %1024 = vmatpush1.msra.mxu0 0.0
      %1025 = vmatprep.subr.mxu0 0.0
      %1026 = vmatpush1.msra.mxu0 0.0
      %1027 = vmatprep.subr.mxu0 0.0
      %1028 = vmatpush1.msra.mxu0 0.0
      %1029 = vmatprep.subr.mxu0 0.0
      %1030 = vmatpush1.msra.mxu0 0.0
      %1031 = vmatprep.subr.mxu0 0.0
      %1032 = vmatpush1.msra.mxu0 0.0
      %1033 = vmatprep.subr.mxu0 0.0
      %1034 = vmatpush1.msra.mxu0 0.0
      %1035 = vmatprep.subr.mxu0 0.0
      %1036 = vmatpush1.msra.mxu0 0.0
      %1037 = vmatprep.subr.mxu0 0.0
      %1038 = vmatpush1.msra.mxu0 0.0
      %1039 = vmatprep.subr.mxu0 0.0
      %1040 = vmatpush1.msra.mxu0 0.0
      %1041 = vmatprep.subr.mxu0 0.0
      %1042 = vmatpush1.msra.mxu0 0.0
      %1043 = vmatprep.subr.mxu0 0.0
      %1044 = vmatpush1.msra.mxu0 0.0
      %1045 = vmatprep.mubr.f32.mxu0 0.0
      %1046 = vmatmul.mubr.f32.gmra.mrb[0].mxu0 %v881
      %v1047 = vpop.f32.mrb[0].mxu0
      %v1048 = vadd.f32 %v959, %v1047
      %v1049 = vpop.f32.mrb[0].mxu0
      %v1050 = vadd.f32 %v961, %v1049
      %1051 = vmatprep.mubr.f32.mxu0 0.0
      %1052 = vmatmul.mubr.f32.gmra.mrb[0].mxu0 %v884
      %v1053 = vpop.f32.mrb[0].mxu0
      %v1054 = vadd.f32 %v965, %v1053
      %v1055 = vpop.f32.mrb[0].mxu0
      %v1056 = vadd.f32 %v967, %v1055
      %1057 = vmatprep.mubr.f32.mxu0 0.0
      %1058 = vmatmul.mubr.f32.gmra.mrb[0].mxu0 %v887
      %v1059 = vpop.f32.mrb[0].mxu0
      %v1060 = vadd.f32 %v971, %v1059
      %v1061 = vpop.f32.mrb[0].mxu0
      %v1062 = vadd.f32 %v973, %v1061
      %1063 = vmatprep.mubr.f32.mxu0 0.0
      %1064 = vmatmul.mubr.f32.gmra.mrb[0].mxu0 %v890
      %v1065 = vpop.f32.mrb[0].mxu0
      %v1066 = vadd.f32 %v977, %v1065
      %v1067 = vpop.f32.mrb[0].mxu0
      %v1068 = vadd.f32 %v979, %v1067
      %1069 = vdwg.mxu0
      %v1070 = vmin.f32 %v1048, 0.0
      %v1071 = vmin.f32 %v1050, 0.0
      %v1072 = vmin.f32 %v1054, 0.0
      %v1073 = vmin.f32 %v1056, 0.0
      %v1074 = vmin.f32 %v1060, 0.0
      %v1075 = vmin.f32 %v1062, 0.0
      %v1076 = vmin.f32 %v1066, 0.0
      %v1077 = vmin.f32 %v1068, 0.0
      %v1078 = vmul.f32 %v1070, 1.442695
      %v1079 = vpow.pop %v1078
      %v1080 = vmul.f32 %v1071, 1.442695
      %v1081 = vpow.pop %v1080
      %v1082 = vmul.f32 %v1072, 1.442695
      %v1083 = vpow.pop %v1082
      %v1084 = vmul.f32 %v1073, 1.442695
      %v1085 = vpow.pop %v1084
      %v1086 = vmul.f32 %v1074, 1.442695
      %v1087 = vpow.pop %v1086
      %v1088 = vmul.f32 %v1075, 1.442695
      %v1089 = vpow.pop %v1088
      %v1090 = vmul.f32 %v1076, 1.442695
      %v1091 = vpow.pop %v1090
      %v1092 = vmul.f32 %v1077, 1.442695
      %v1093 = vpow.pop %v1092
      %v1094 = vsub.f32 %v1079, 1.0
      %v1095 = vsub.f32 %v1081, 1.0
      %v1096 = vsub.f32 %v1083, 1.0
      %v1097 = vsub.f32 %v1085, 1.0
      %v1098 = vsub.f32 %v1087, 1.0
      %v1099 = vsub.f32 %v1089, 1.0
      %v1100 = vsub.f32 %v1091, 1.0
      %v1101 = vsub.f32 %v1093, 1.0
      %v1102 = vmul.f32 %v1094, 1.6732632
      %v1103 = vmul.f32 %v1095, 1.6732632
      %v1104 = vmul.f32 %v1096, 1.6732632
      %v1105 = vmul.f32 %v1097, 1.6732632
      %v1106 = vmul.f32 %v1098, 1.6732632
      %v1107 = vmul.f32 %v1099, 1.6732632
      %v1108 = vmul.f32 %v1100, 1.6732632
      %v1109 = vmul.f32 %v1101, 1.6732632
      %vm1110 = vcmp.gt.f32.partialorder %v1048, 0.0
      %vm1111 = vcmp.gt.f32.partialorder %v1050, 0.0
      %vm1112 = vcmp.gt.f32.partialorder %v1054, 0.0
      %vm1113 = vcmp.gt.f32.partialorder %v1056, 0.0
      %vm1114 = vcmp.gt.f32.partialorder %v1060, 0.0
      %vm1115 = vcmp.gt.f32.partialorder %v1062, 0.0
      %vm1116 = vcmp.gt.f32.partialorder %v1066, 0.0
      %vm1117 = vcmp.gt.f32.partialorder %v1068, 0.0
      %v1118 = vsel %vm1110, %v1048, %v1102
      %v1119 = vsel %vm1111, %v1050, %v1103
      %v1120 = vsel %vm1112, %v1054, %v1104
      %v1121 = vsel %vm1113, %v1056, %v1105
      %v1122 = vsel %vm1114, %v1060, %v1106
      %v1123 = vsel %vm1115, %v1062, %v1107
      %v1124 = vsel %vm1116, %v1066, %v1108
      %v1125 = vsel %vm1117, %v1068, %v1109
      %v1126 = vmul.f32 %v1118, 1.050701
      %v1127 = vmul.f32 %v1119, 1.050701
      %v1128 = vmul.f32 %v1120, 1.050701
      %v1129 = vmul.f32 %v1121, 1.050701
      %v1130 = vmul.f32 %v1122, 1.050701
      %v1131 = vmul.f32 %v1123, 1.050701
      %v1132 = vmul.f32 %v1124, 1.050701
      %v1133 = vmul.f32 %v1125, 1.050701
      %1134 = vst [vmem:[%s170] sm:$0xff] %v1126
      %1135 = vst [vmem:[%s170 + $0x8] sm:$0xff] %v1127
      %1136 = vst [vmem:[%s170 + $0x10] sm:$0xff] %v1128
      %1137 = vst [vmem:[%s170 + $0x18] sm:$0xff] %v1129
      %1138 = vst [vmem:[%s170 + $0x20] sm:$0xff] %v1130
      %1139 = vst [vmem:[%s170 + $0x28] sm:$0xff] %v1131
      %1140 = vst [vmem:[%s170 + $0x30] sm:$0xff] %v1132
      %1141 = vst [vmem:[%s170 + $0x38] sm:$0xff] %v1133
      %p1142 = scmp.lt.s32.totalorder %s14, 1
      %s1143 = scalar_select %p1142, %s14, 1
      %s1144 = smul.addr %s1143, 8
      %s1145 = smul.addr %s1144, 8
      %s1146 = scalar_lea.vmem %s3, %s1145
      // Predicated region
      $region33: #{unary_mccnn_forward.5} parent=31 // pred_check
        %p1147 = pneg %p100
      $region34: #{unary_mccnn_forward.5} parent=31 // pred_check_branch
        %1149 = sbr.rel (%p1147) target = $region36
      $region35: #{unary_mccnn_forward.5} parent=31 // pred_region
        _
      $region36: #{unary_mccnn_forward.5} parent=31 // pred_fallthru
        _
    $region32: #{unary_mccnn_forward.5} parent=5 // pred_fallthru
      _
    %p1150 = scmp.le.s32.totalorder 2, %s9
    // Predicated region
    $region37: #{unary_mccnn_forward.5} parent=5 // pred_check
      %p1151 = pneg %p1150
    $region38: #{unary_mccnn_forward.5} parent=5 // pred_check_branch
      %1153 = sbr.rel (%p1151) target = $region40
    $region39: #{unary_mccnn_forward.5} parent=5 // pred_region
      %s1154 = ssub.s32 %s9, 2
      // Predicated region
      $region41: #{unary_mccnn_forward.5} parent=39 // pred_check
        %p1155 = pneg %p106
      $region42: #{unary_mccnn_forward.5} parent=39 // pred_check_branch
        %1157 = sbr.rel (%p1155) target = $region44
      $region43: #{unary_mccnn_forward.5} parent=39 // pred_region
        %p1158 = scmp.lt.s32.totalorder %s15, 1
        %s1159 = scalar_select %p1158, %s15, 1
        %s1160 = smul.addr %s1159, 8
        %s1161 = smul.addr %s1160, 8
        %s1162 = scalar_lea.vmem %s3, %s1161
      $region44: #{unary_mccnn_forward.5} parent=39 // pred_fallthru
        _
    $region40: #{unary_mccnn_forward.5} parent=5 // pred_fallthru
      _
  $region6: #{unary_mccnn_forward.5} parent=0 // loop_footer
    %s13 = sadd.s32 1, %s9
  $region7: #{unary_mccnn_forward.5} parent=0 // loop_footer_branch
    %8 = sbr.rel target = $region3
  $region8: #{unary_mccnn_forward.5} parent=0 // loop_exit
    _

// kernel: unary_mccnn_forward.7
$region0: #{unary_mccnn_forward.7}
  #allocation0 [shape = 'u32[]', space=smem, size = 0x4, offset = 0x4, fixed_abs, tag = 'smem constant byte address 0x4 - core index']
  #allocation1 [shape = 'u32[144,128]{1,0:T(1,128)}', space=vmem, size = 0x12000, scoped, tag = 'internal scratch']
  #allocation2 [shape = 'f32[288,256]{1,0:T(8,128)}', space=vmem, size = 0x48000, scoped, tag = 'scratch operand']
  %s0 = inlined_call_operand.vmem [shape: f32[2,32,384], index: 0, kind: input, shape index: {}]
  %s1 = inlined_call_operand.vmem [shape: f32[32,288], index: 1, kind: input, shape index: {}]
  %s2 = inlined_call_operand.vmem [shape: f32[32,1], index: 2, kind: input, shape index: {}]
  %s3 = inlined_call_operand.vmem [shape: f32[2,32,256], index: 3, kind: output, shape index: {}]
  %s4 = sld [smem:[#allocation0]]
  $region45: #{unary_mccnn_forward.7} parent=0
    _
  %s6 = ssub.s32 1, %s4
  %s7 = scalar_select 0, %s6, %s4
  loop: start=0, step=1, limit=4
  $region2: #{unary_mccnn_forward.7} parent=0 // loop_pre_header
    _
  $region3: #{unary_mccnn_forward.7} parent=0 // loop_header
    %s9 = sphi 0, %s13
    %p10 = scmp.ge.s32.totalorder %s9, 4
    %s19 = sphi 0, %s21
    %s22 = sphi 0, %s19
    %s23 = sphi 0, %s22
    %s39 = sphi 0, %s23
    %s43 = sphi 0, %s43
    %s45 = sphi 0, %s43
    %s46 = sphi 0, %s45
    %s60 = sphi 0, %s46
    %s64 = sphi 0, %s64
    %s66 = sphi 0, %s64
    %s67 = sphi 0, %s66
    %s81 = sphi 0, %s67
    %s87 = sphi 0, %s89
    %s90 = sphi 0, %s87
    %s91 = sphi 0, %s90
    %s107 = sphi 0, %s91
  $region4: #{unary_mccnn_forward.7} parent=0 // loop_header_branch
    %12 = sbr.rel (%p10) target = $region8
  $region5: #{unary_mccnn_forward.7} parent=0 // loop_body
    %s14 = ssub.s32 %s9, 1
    %s15 = ssub.s32 %s9, 2
    %s16 = sadd.s32 %s9, 1
    %s17 = ssub.s32 %s9, %s16
    %p18 = scmp.eq.s32.totalorder %s17, 0
    %s20 = sadd.s32 %s19, 1
    %s21 = scalar_select %p18, %s19, %s20
    %p24 = pneg %p18
    %p25 = scmp.eq.s32.totalorder %s9, 1
    %p26 = por %p24, %p25
    %p27 = scmp.ne.s32.totalorder %s19, %s22
    %p28 = scmp.eq.s32.totalorder %s9, 0
    %p29 = por %p27, %p28
    %p30 = scmp.ne.s32.totalorder %s19, %s22
    %p31 = scmp.eq.s32.totalorder %s14, 1
    %p32 = por %p30, %p31
    %p33 = scmp.ne.s32.totalorder %s22, %s23
    %p34 = scmp.eq.s32.totalorder %s14, 0
    %p35 = por %p33, %p34
    %p36 = scmp.ne.s32.totalorder %s22, %s23
    %p37 = scmp.eq.s32.totalorder %s15, 1
    %p38 = por %p36, %p37
    %p40 = scmp.ne.s32.totalorder %s23, %s39
    %p41 = scmp.eq.s32.totalorder %s15, 0
    %p42 = por %p40, %p41
    %s44 = sadd.s32 %s43, 1
    %p47 = scmp.eq.s32.totalorder %s9, 1
    %p48 = scmp.ne.s32.totalorder %s43, %s45
    %p49 = scmp.eq.s32.totalorder %s9, 0
    %p50 = por %p48, %p49
    %p51 = scmp.ne.s32.totalorder %s43, %s45
    %p52 = scmp.eq.s32.totalorder %s14, 1
    %p53 = por %p51, %p52
    %p54 = scmp.ne.s32.totalorder %s45, %s46
    %p55 = scmp.eq.s32.totalorder %s14, 0
    %p56 = por %p54, %p55
    %p57 = scmp.ne.s32.totalorder %s45, %s46
    %p58 = scmp.eq.s32.totalorder %s15, 1
    %p59 = por %p57, %p58
    %p61 = scmp.ne.s32.totalorder %s46, %s60
    %p62 = scmp.eq.s32.totalorder %s15, 0
    %p63 = por %p61, %p62
    %s65 = sadd.s32 %s64, 1
    %p68 = scmp.eq.s32.totalorder %s9, 1
    %p69 = scmp.ne.s32.totalorder %s64, %s66
    %p70 = scmp.eq.s32.totalorder %s9, 0
    %p71 = por %p69, %p70
    %p72 = scmp.ne.s32.totalorder %s64, %s66
    %p73 = scmp.eq.s32.totalorder %s14, 1
    %p74 = por %p72, %p73
    %p75 = scmp.ne.s32.totalorder %s66, %s67
    %p76 = scmp.eq.s32.totalorder %s14, 0
    %p77 = por %p75, %p76
    %p78 = scmp.ne.s32.totalorder %s66, %s67
    %p79 = scmp.eq.s32.totalorder %s15, 1
    %p80 = por %p78, %p79
    %p82 = scmp.ne.s32.totalorder %s67, %s81
    %p83 = scmp.eq.s32.totalorder %s15, 0
    %p84 = por %p82, %p83
    %s85 = ssub.s32 %s9, %s16
    %p86 = scmp.eq.s32.totalorder %s85, 0
    %s88 = sadd.s32 %s87, 1
    %s89 = scalar_select %p86, %s87, %s88
    %p92 = pneg %p86
    %p93 = scmp.eq.s32.totalorder %s9, 1
    %p94 = por %p92, %p93
    %p95 = scmp.ne.s32.totalorder %s87, %s90
    %p96 = scmp.eq.s32.totalorder %s9, 0
    %p97 = por %p95, %p96
    %p98 = scmp.ne.s32.totalorder %s87, %s90
    %p99 = scmp.eq.s32.totalorder %s14, 1
    %p100 = por %p98, %p99
    %p101 = scmp.ne.s32.totalorder %s90, %s91
    %p102 = scmp.eq.s32.totalorder %s14, 0
    %p103 = por %p101, %p102
    %p104 = scmp.ne.s32.totalorder %s90, %s91
    %p105 = scmp.eq.s32.totalorder %s15, 1
    %p106 = por %p104, %p105
    %p108 = scmp.ne.s32.totalorder %s91, %s107
    %p109 = scmp.eq.s32.totalorder %s15, 0
    %p110 = por %p108, %p109
    %p111 = scmp.le.s32.totalorder 1, %s9
    %p112 = scmp.lt.s32.totalorder %s9, 3
    %p113 = pnand %p111, %p112
    %p114 = pneg %p113
    // Predicated region
    $region9: #{unary_mccnn_forward.7} parent=5 // pred_check
      _
    $region10: #{unary_mccnn_forward.7} parent=5 // pred_check_branch
      %116 = sbr.rel (%p113) target = $region12
    $region11: #{unary_mccnn_forward.7} parent=5 // pred_region
      %s117 = ssub.s32 %s9, 1
      // Predicated region
      $region13: #{unary_mccnn_forward.7} parent=11 // pred_check
        %p118 = pneg %p56
      $region14: #{unary_mccnn_forward.7} parent=11 // pred_check_branch
        %120 = sbr.rel (%p118) target = $region16
      $region15: #{unary_mccnn_forward.7} parent=11 // pred_region
        _
      $region16: #{unary_mccnn_forward.7} parent=11 // pred_fallthru
        _
      // Predicated region
      $region17: #{unary_mccnn_forward.7} parent=11 // pred_check
        %p121 = pneg %p77
      $region18: #{unary_mccnn_forward.7} parent=11 // pred_check_branch
        %123 = sbr.rel (%p121) target = $region20
      $region19: #{unary_mccnn_forward.7} parent=11 // pred_region
        _
      $region20: #{unary_mccnn_forward.7} parent=11 // pred_fallthru
        _
    $region12: #{unary_mccnn_forward.7} parent=5 // pred_fallthru
      _
    %p124 = scmp.lt.s32.totalorder %s9, 2
    // Predicated region
    $region21: #{unary_mccnn_forward.7} parent=5 // pred_check
      %p125 = pneg %p124
    $region22: #{unary_mccnn_forward.7} parent=5 // pred_check_branch
      %127 = sbr.rel (%p125) target = $region24
    $region23: #{unary_mccnn_forward.7} parent=5 // pred_region
      // Predicated region
      $region25: #{unary_mccnn_forward.7} parent=23 // pred_check
        %p128 = pneg %p29
      $region26: #{unary_mccnn_forward.7} parent=23 // pred_check_branch
        %130 = sbr.rel (%p128) target = $region28
      $region27: #{unary_mccnn_forward.7} parent=23 // pred_region
        %p131 = scmp.lt.s32.totalorder %s9, 1
        %s132 = scalar_select %p131, %s9, 1
        %s133 = smul.addr %s132, 12
        %s134 = smul.addr %s133, 8
        %s135 = scalar_lea.vmem %s0, %s134
      $region28: #{unary_mccnn_forward.7} parent=23 // pred_fallthru
        _
    $region24: #{unary_mccnn_forward.7} parent=5 // pred_fallthru
      _
    %p136 = scmp.le.s32.totalorder 1, %s9
    %p137 = scmp.lt.s32.totalorder %s9, 3
    %p138 = pnand %p136, %p137
    %p139 = pneg %p138
    // Predicated region
    $region29: #{unary_mccnn_forward.7} parent=5 // pred_check
      _
    $region30: #{unary_mccnn_forward.7} parent=5 // pred_check_branch
      %141 = sbr.rel (%p138) target = $region32
    $region31: #{unary_mccnn_forward.7} parent=5 // pred_region
      %s142 = ssub.s32 %s9, 1
      %p143 = scmp.lt.s32.totalorder %s14, 1
      %s144 = scalar_select %p143, %s14, 1
      %s145 = smul.addr %s144, 12
      %s146 = smul.addr %s145, 8
      %s147 = scalar_lea.vmem %s0, %s146
      %p148 = pneg %p35
      %p149 = pneg %p32
      %p150 = pneg %p56
      %p151 = pneg %p53
      %p152 = pneg %p77
      %p153 = pneg %p74
      %p154 = pneg %p103
      %p155 = pneg %p100
      %p156 = scmp.lt.s32.totalorder %s14, 1
      %s157 = scalar_select %p156, %s14, 1
      %s158 = smul.addr %s157, 8
      %s159 = smul.addr %s158, 8
      %s160 = scalar_lea.vmem %s3, %s159
      %p161 = scmp.lt.s32.totalorder %s14, 1
      %s162 = scalar_select %p161, %s14, 1
      %s163 = smul.addr %s162, 12
      %s164 = smul.addr %s163, 8
      %s165 = scalar_lea.vmem %s0, %s164
      %p166 = scmp.lt.s32.totalorder %s14, 1
      %s167 = scalar_select %p166, %s14, 1
      %s168 = smul.addr %s167, 8
      %s169 = smul.addr %s168, 8
      %s170 = scalar_lea.vmem %s3, %s169
      %v171 = vld [vmem:[%s165] sm:$0xff]
      %v172 = vld [vmem:[%s165 + $0x8] sm:$0xff]
      %v173 = vld [vmem:[%s165 + $0x18] sm:$0xff]
      %v174 = vld [vmem:[%s165 + $0x20] sm:$0xff]
      %v175 = vld [vmem:[%s165 + $0x30] sm:$0xff]
      %v176 = vld [vmem:[%s165 + $0x38] sm:$0xff]
      %v177 = vld [vmem:[%s165 + $0x48] sm:$0xff]
      %v178 = vld [vmem:[%s165 + $0x50] sm:$0xff]
      %179 = vst [vmem:[#allocation2] sm:$0xff] %v171
      %180 = vst [vmem:[#allocation2 + $0x8] sm:$0xff] %v172
      %181 = vst [vmem:[#allocation2 + $0x10] sm:$0xff] %v173
      %182 = vst [vmem:[#allocation2 + $0x18] sm:$0xff] %v174
      %183 = vst [vmem:[#allocation2 + $0x20] sm:$0xff] %v175
      %184 = vst [vmem:[#allocation2 + $0x28] sm:$0xff] %v176
      %185 = vst [vmem:[#allocation2 + $0x30] sm:$0xff] %v177
      %186 = vst [vmem:[#allocation2 + $0x38] sm:$0xff] %v178
      %v187 = vld [vmem:[%s165] sm:$0xff]
      %v188 = vld [vmem:[%s165 + $0x8] sm:$0xff]
      %v189 = vld [vmem:[%s165 + $0x10] sm:$0xff]
      %v190 = vld [vmem:[%s165 + $0x18] sm:$0xff]
      %v191 = vld [vmem:[%s165 + $0x20] sm:$0xff]
      %v192 = vld [vmem:[%s165 + $0x28] sm:$0xff]
      %v193 = vld [vmem:[%s165 + $0x30] sm:$0xff]
      %v194 = vld [vmem:[%s165 + $0x38] sm:$0xff]
      %v195 = vld [vmem:[%s165 + $0x40] sm:$0xff]
      %v196 = vld [vmem:[%s165 + $0x48] sm:$0xff]
      %v197 = vld [vmem:[%s165 + $0x50] sm:$0xff]
      %v198 = vld [vmem:[%s165 + $0x58] sm:$0xff]
      %211 = vrot.lane.b32.xlu0 %v187, 127
      %v212 = vpop.permute.xlu0 %211
      %213 = vrot.lane.b32.xlu0 %v188, 127
      %v214 = vpop.permute.xlu0 %213
      %215 = vrot.lane.b32.xlu0 %v189, 127
      %v216 = vpop.permute.xlu0 %215
      %217 = vrot.lane.b32.xlu0 %v190, 127
      %v218 = vpop.permute.xlu0 %217
      %219 = vrot.lane.b32.xlu0 %v191, 127
      %v220 = vpop.permute.xlu0 %219
      %221 = vrot.lane.b32.xlu0 %v192, 127
      %v222 = vpop.permute.xlu0 %221
      %223 = vrot.lane.b32.xlu0 %v193, 127
      %v224 = vpop.permute.xlu0 %223
      %225 = vrot.lane.b32.xlu0 %v194, 127
      %v226 = vpop.permute.xlu0 %225
      %227 = vrot.lane.b32.xlu0 %v195, 127
      %v228 = vpop.permute.xlu0 %227
      %229 = vrot.lane.b32.xlu0 %v196, 127
      %v230 = vpop.permute.xlu0 %229
      %231 = vrot.lane.b32.xlu0 %v197, 127
      %v232 = vpop.permute.xlu0 %231
      %233 = vrot.lane.b32.xlu0 %v198, 127
      %v234 = vpop.permute.xlu0 %233
      %vm235 = vcmask 1039360
      %v236 = vsel %vm235, %v212, %v214
      %v237 = vsel %vm235, %v214, %v216
      %v238 = vsel %vm235, %v218, %v220
      %v239 = vsel %vm235, %v220, %v222
      %v240 = vsel %vm235, %v224, %v226
      %v241 = vsel %vm235, %v226, %v228
      %v242 = vsel %vm235, %v230, %v232
      %v243 = vsel %vm235, %v232, %v234
      %252 = vst [vmem:[#allocation2 + $0x40] sm:$0xff] %v236
      %253 = vst [vmem:[#allocation2 + $0x48] sm:$0xff] %v237
      %254 = vst [vmem:[#allocation2 + $0x50] sm:$0xff] %v238
      %255 = vst [vmem:[#allocation2 + $0x58] sm:$0xff] %v239
      %256 = vst [vmem:[#allocation2 + $0x60] sm:$0xff] %v240
      %257 = vst [vmem:[#allocation2 + $0x68] sm:$0xff] %v241
      %258 = vst [vmem:[#allocation2 + $0x70] sm:$0xff] %v242
      %259 = vst [vmem:[#allocation2 + $0x78] sm:$0xff] %v243
      %v260 = vld [vmem:[%s165] sm:$0xff]
      %v261 = vld [vmem:[%s165 + $0x8] sm:$0xff]
      %v262 = vld [vmem:[%s165 + $0x10] sm:$0xff]
      %v263 = vld [vmem:[%s165 + $0x18] sm:$0xff]
      %v264 = vld [vmem:[%s165 + $0x20] sm:$0xff]
      %v265 = vld [vmem:[%s165 + $0x28] sm:$0xff]
      %v266 = vld [vmem:[%s165 + $0x30] sm:$0xff]
      %v267 = vld [vmem:[%s165 + $0x38] sm:$0xff]
      %v268 = vld [vmem:[%s165 + $0x40] sm:$0xff]
      %v269 = vld [vmem:[%s165 + $0x48] sm:$0xff]
      %v270 = vld [vmem:[%s165 + $0x50] sm:$0xff]
      %v271 = vld [vmem:[%s165 + $0x58] sm:$0xff]
      %284 = vrot.lane.b32.xlu0 %v260, 126
      %v285 = vpop.permute.xlu0 %284
      %286 = vrot.lane.b32.xlu0 %v261, 126
      %v287 = vpop.permute.xlu0 %286
      %288 = vrot.lane.b32.xlu0 %v262, 126
      %v289 = vpop.permute.xlu0 %288
      %290 = vrot.lane.b32.xlu0 %v263, 126
      %v291 = vpop.permute.xlu0 %290
      %292 = vrot.lane.b32.xlu0 %v264, 126
      %v293 = vpop.permute.xlu0 %292
      %294 = vrot.lane.b32.xlu0 %v265, 126
      %v295 = vpop.permute.xlu0 %294
      %296 = vrot.lane.b32.xlu0 %v266, 126
      %v297 = vpop.permute.xlu0 %296
      %298 = vrot.lane.b32.xlu0 %v267, 126
      %v299 = vpop.permute.xlu0 %298
      %300 = vrot.lane.b32.xlu0 %v268, 126
      %v301 = vpop.permute.xlu0 %300
      %302 = vrot.lane.b32.xlu0 %v269, 126
      %v303 = vpop.permute.xlu0 %302
      %304 = vrot.lane.b32.xlu0 %v270, 126
      %v305 = vpop.permute.xlu0 %304
      %306 = vrot.lane.b32.xlu0 %v271, 126
      %v307 = vpop.permute.xlu0 %306
      %vm308 = vcmask 1031168
      %v309 = vsel %vm308, %v285, %v287
      %v310 = vsel %vm308, %v287, %v289
      %v311 = vsel %vm308, %v291, %v293
      %v312 = vsel %vm308, %v293, %v295
      %v313 = vsel %vm308, %v297, %v299
      %v314 = vsel %vm308, %v299, %v301
      %v315 = vsel %vm308, %v303, %v305
      %v316 = vsel %vm308, %v305, %v307
      %325 = vst [vmem:[#allocation2 + $0x80] sm:$0xff] %v309
      %326 = vst [vmem:[#allocation2 + $0x88] sm:$0xff] %v310
      %327 = vst [vmem:[#allocation2 + $0x90] sm:$0xff] %v311
      %328 = vst [vmem:[#allocation2 + $0x98] sm:$0xff] %v312
      %329 = vst [vmem:[#allocation2 + $0xa0] sm:$0xff] %v313
      %330 = vst [vmem:[#allocation2 + $0xa8] sm:$0xff] %v314
      %331 = vst [vmem:[#allocation2 + $0xb0] sm:$0xff] %v315
      %332 = vst [vmem:[#allocation2 + $0xb8] sm:$0xff] %v316
      %v333 = vld [vmem:[%s165] sm:$0xff]
      %v334 = vld [vmem:[%s165 + $0x8] sm:$0xff]
      %v335 = vld [vmem:[%s165 + $0x10] sm:$0xff]
      %v336 = vld [vmem:[%s165 + $0x18] sm:$0xff]
      %v337 = vld [vmem:[%s165 + $0x20] sm:$0xff]
      %v338 = vld [vmem:[%s165 + $0x28] sm:$0xff]
      %v339 = vld [vmem:[%s165 + $0x30] sm:$0xff]
      %v340 = vld [vmem:[%s165 + $0x38] sm:$0xff]
      %v341 = vld [vmem:[%s165 + $0x40] sm:$0xff]
      %v342 = vld [vmem:[%s165 + $0x48] sm:$0xff]
      %v343 = vld [vmem:[%s165 + $0x50] sm:$0xff]
      %v344 = vld [vmem:[%s165 + $0x58] sm:$0xff]
      %357 = vrot.lane.b32.xlu0 %v333, 118
      %v358 = vpop.permute.xlu0 %357
      %359 = vrot.lane.b32.xlu0 %v334, 118
      %v360 = vpop.permute.xlu0 %359
      %361 = vrot.lane.b32.xlu0 %v335, 118
      %v362 = vpop.permute.xlu0 %361
      %363 = vrot.lane.b32.xlu0 %v336, 118
      %v364 = vpop.permute.xlu0 %363
      %365 = vrot.lane.b32.xlu0 %v337, 118
      %v366 = vpop.permute.xlu0 %365
      %367 = vrot.lane.b32.xlu0 %v338, 118
      %v368 = vpop.permute.xlu0 %367
      %369 = vrot.lane.b32.xlu0 %v339, 118
      %v370 = vpop.permute.xlu0 %369
      %371 = vrot.lane.b32.xlu0 %v340, 118
      %v372 = vpop.permute.xlu0 %371
      %373 = vrot.lane.b32.xlu0 %v341, 118
      %v374 = vpop.permute.xlu0 %373
      %375 = vrot.lane.b32.xlu0 %v342, 118
      %v376 = vpop.permute.xlu0 %375
      %377 = vrot.lane.b32.xlu0 %v343, 118
      %v378 = vpop.permute.xlu0 %377
      %379 = vrot.lane.b32.xlu0 %v344, 118
      %v380 = vpop.permute.xlu0 %379
      %vm381 = vcmask 965632
      %v382 = vsel %vm381, %v358, %v360
      %v383 = vsel %vm381, %v360, %v362
      %v384 = vsel %vm381, %v364, %v366
      %v385 = vsel %vm381, %v366, %v368
      %v386 = vsel %vm381, %v370, %v372
      %v387 = vsel %vm381, %v372, %v374
      %v388 = vsel %vm381, %v376, %v378
      %v389 = vsel %vm381, %v378, %v380
      %398 = vst [vmem:[#allocation2 + $0xc0] sm:$0xff] %v382
      %399 = vst [vmem:[#allocation2 + $0xc8] sm:$0xff] %v383
      %400 = vst [vmem:[#allocation2 + $0xd0] sm:$0xff] %v384
      %401 = vst [vmem:[#allocation2 + $0xd8] sm:$0xff] %v385
      %402 = vst [vmem:[#allocation2 + $0xe0] sm:$0xff] %v386
      %403 = vst [vmem:[#allocation2 + $0xe8] sm:$0xff] %v387
      %404 = vst [vmem:[#allocation2 + $0xf0] sm:$0xff] %v388
      %405 = vst [vmem:[#allocation2 + $0xf8] sm:$0xff] %v389
      %v406 = vld [vmem:[%s165] sm:$0xff]
      %v407 = vld [vmem:[%s165 + $0x8] sm:$0xff]
      %v408 = vld [vmem:[%s165 + $0x10] sm:$0xff]
      %v409 = vld [vmem:[%s165 + $0x18] sm:$0xff]
      %v410 = vld [vmem:[%s165 + $0x20] sm:$0xff]
      %v411 = vld [vmem:[%s165 + $0x28] sm:$0xff]
      %v412 = vld [vmem:[%s165 + $0x30] sm:$0xff]
      %v413 = vld [vmem:[%s165 + $0x38] sm:$0xff]
      %v414 = vld [vmem:[%s165 + $0x40] sm:$0xff]
      %v415 = vld [vmem:[%s165 + $0x48] sm:$0xff]
      %v416 = vld [vmem:[%s165 + $0x50] sm:$0xff]
      %v417 = vld [vmem:[%s165 + $0x58] sm:$0xff]
      %430 = vrot.lane.b32.xlu0 %v406, 117
      %v431 = vpop.permute.xlu0 %430
      %432 = vrot.lane.b32.xlu0 %v407, 117
      %v433 = vpop.permute.xlu0 %432
      %434 = vrot.lane.b32.xlu0 %v408, 117
      %v435 = vpop.permute.xlu0 %434
      %436 = vrot.lane.b32.xlu0 %v409, 117
      %v437 = vpop.permute.xlu0 %436
      %438 = vrot.lane.b32.xlu0 %v410, 117
      %v439 = vpop.permute.xlu0 %438
      %440 = vrot.lane.b32.xlu0 %v411, 117
      %v441 = vpop.permute.xlu0 %440
      %442 = vrot.lane.b32.xlu0 %v412, 117
      %v443 = vpop.permute.xlu0 %442
      %444 = vrot.lane.b32.xlu0 %v413, 117
      %v445 = vpop.permute.xlu0 %444
      %446 = vrot.lane.b32.xlu0 %v414, 117
      %v447 = vpop.permute.xlu0 %446
      %448 = vrot.lane.b32.xlu0 %v415, 117
      %v449 = vpop.permute.xlu0 %448
      %450 = vrot.lane.b32.xlu0 %v416, 117
      %v451 = vpop.permute.xlu0 %450
      %452 = vrot.lane.b32.xlu0 %v417, 117
      %v453 = vpop.permute.xlu0 %452
      %vm454 = vcmask 957440
      %v455 = vsel %vm454, %v431, %v433
      %v456 = vsel %vm454, %v433, %v435
      %v457 = vsel %vm454, %v437, %v439
      %v458 = vsel %vm454, %v439, %v441
      %v459 = vsel %vm454, %v443, %v445
      %v460 = vsel %vm454, %v445, %v447
      %v461 = vsel %vm454, %v449, %v451
      %v462 = vsel %vm454, %v451, %v453
      %471 = vst [vmem:[#allocation2 + $0x100] sm:$0xff] %v455
      %472 = vst [vmem:[#allocation2 + $0x108] sm:$0xff] %v456
      %473 = vst [vmem:[#allocation2 + $0x110] sm:$0xff] %v457
      %474 = vst [vmem:[#allocation2 + $0x118] sm:$0xff] %v458
      %475 = vst [vmem:[#allocation2 + $0x120] sm:$0xff] %v459
      %476 = vst [vmem:[#allocation2 + $0x128] sm:$0xff] %v460
      %477 = vst [vmem:[#allocation2 + $0x130] sm:$0xff] %v461
      %478 = vst [vmem:[#allocation2 + $0x138] sm:$0xff] %v462
      %v479 = vld [vmem:[%s165] sm:$0xff]
      %v480 = vld [vmem:[%s165 + $0x8] sm:$0xff]
      %v481 = vld [vmem:[%s165 + $0x10] sm:$0xff]
      %v482 = vld [vmem:[%s165 + $0x18] sm:$0xff]
      %v483 = vld [vmem:[%s165 + $0x20] sm:$0xff]
      %v484 = vld [vmem:[%s165 + $0x28] sm:$0xff]
      %v485 = vld [vmem:[%s165 + $0x30] sm:$0xff]
      %v486 = vld [vmem:[%s165 + $0x38] sm:$0xff]
      %v487 = vld [vmem:[%s165 + $0x40] sm:$0xff]
      %v488 = vld [vmem:[%s165 + $0x48] sm:$0xff]
      %v489 = vld [vmem:[%s165 + $0x50] sm:$0xff]
      %v490 = vld [vmem:[%s165 + $0x58] sm:$0xff]
      %503 = vrot.lane.b32.xlu0 %v479, 116
      %v504 = vpop.permute.xlu0 %503
      %505 = vrot.lane.b32.xlu0 %v480, 116
      %v506 = vpop.permute.xlu0 %505
      %507 = vrot.lane.b32.xlu0 %v481, 116
      %v508 = vpop.permute.xlu0 %507
      %509 = vrot.lane.b32.xlu0 %v482, 116
      %v510 = vpop.permute.xlu0 %509
      %511 = vrot.lane.b32.xlu0 %v483, 116
      %v512 = vpop.permute.xlu0 %511
      %513 = vrot.lane.b32.xlu0 %v484, 116
      %v514 = vpop.permute.xlu0 %513
      %515 = vrot.lane.b32.xlu0 %v485, 116
      %v516 = vpop.permute.xlu0 %515
      %517 = vrot.lane.b32.xlu0 %v486, 116
      %v518 = vpop.permute.xlu0 %517
      %519 = vrot.lane.b32.xlu0 %v487, 116
      %v520 = vpop.permute.xlu0 %519
      %521 = vrot.lane.b32.xlu0 %v488, 116
      %v522 = vpop.permute.xlu0 %521
      %523 = vrot.lane.b32.xlu0 %v489, 116
      %v524 = vpop.permute.xlu0 %523
      %525 = vrot.lane.b32.xlu0 %v490, 116
      %v526 = vpop.permute.xlu0 %525
      %vm527 = vcmask 949248
      %v528 = vsel %vm527, %v504, %v506
      %v529 = vsel %vm527, %v506, %v508
      %v530 = vsel %vm527, %v510, %v512
      %v531 = vsel %vm527, %v512, %v514
      %v532 = vsel %vm527, %v516, %v518
      %v533 = vsel %vm527, %v518, %v520
      %v534 = vsel %vm527, %v522, %v524
      %v535 = vsel %vm527, %v524, %v526
      %544 = vst [vmem:[#allocation2 + $0x140] sm:$0xff] %v528
      %545 = vst [vmem:[#allocation2 + $0x148] sm:$0xff] %v529
      %546 = vst [vmem:[#allocation2 + $0x150] sm:$0xff] %v530
      %547 = vst [vmem:[#allocation2 + $0x158] sm:$0xff] %v531
      %548 = vst [vmem:[#allocation2 + $0x160] sm:$0xff] %v532
      %549 = vst [vmem:[#allocation2 + $0x168] sm:$0xff] %v533
      %550 = vst [vmem:[#allocation2 + $0x170] sm:$0xff] %v534
      %551 = vst [vmem:[#allocation2 + $0x178] sm:$0xff] %v535
      %v552 = vld [vmem:[%s165] sm:$0xff]
      %v553 = vld [vmem:[%s165 + $0x8] sm:$0xff]
      %v554 = vld [vmem:[%s165 + $0x10] sm:$0xff]
      %v555 = vld [vmem:[%s165 + $0x18] sm:$0xff]
      %v556 = vld [vmem:[%s165 + $0x20] sm:$0xff]
      %v557 = vld [vmem:[%s165 + $0x28] sm:$0xff]
      %v558 = vld [vmem:[%s165 + $0x30] sm:$0xff]
      %v559 = vld [vmem:[%s165 + $0x38] sm:$0xff]
      %v560 = vld [vmem:[%s165 + $0x40] sm:$0xff]
      %v561 = vld [vmem:[%s165 + $0x48] sm:$0xff]
      %v562 = vld [vmem:[%s165 + $0x50] sm:$0xff]
      %v563 = vld [vmem:[%s165 + $0x58] sm:$0xff]
      %576 = vrot.lane.b32.xlu0 %v552, 108
      %v577 = vpop.permute.xlu0 %576
      %578 = vrot.lane.b32.xlu0 %v553, 108
      %v579 = vpop.permute.xlu0 %578
      %580 = vrot.lane.b32.xlu0 %v554, 108
      %v581 = vpop.permute.xlu0 %580
      %582 = vrot.lane.b32.xlu0 %v555, 108
      %v583 = vpop.permute.xlu0 %582
      %584 = vrot.lane.b32.xlu0 %v556, 108
      %v585 = vpop.permute.xlu0 %584
      %586 = vrot.lane.b32.xlu0 %v557, 108
      %v587 = vpop.permute.xlu0 %586
      %588 = vrot.lane.b32.xlu0 %v558, 108
      %v589 = vpop.permute.xlu0 %588
      %590 = vrot.lane.b32.xlu0 %v559, 108
      %v591 = vpop.permute.xlu0 %590
      %592 = vrot.lane.b32.xlu0 %v560, 108
      %v593 = vpop.permute.xlu0 %592
      %594 = vrot.lane.b32.xlu0 %v561, 108
      %v595 = vpop.permute.xlu0 %594
      %596 = vrot.lane.b32.xlu0 %v562, 108
      %v597 = vpop.permute.xlu0 %596
      %598 = vrot.lane.b32.xlu0 %v563, 108
      %v599 = vpop.permute.xlu0 %598
      %vm600 = vcmask 883712
      %v601 = vsel %vm600, %v577, %v579
      %v602 = vsel %vm600, %v579, %v581
      %v603 = vsel %vm600, %v583, %v585
      %v604 = vsel %vm600, %v585, %v587
      %v605 = vsel %vm600, %v589, %v591
      %v606 = vsel %vm600, %v591, %v593
      %v607 = vsel %vm600, %v595, %v597
      %v608 = vsel %vm600, %v597, %v599
      %617 = vst [vmem:[#allocation2 + $0x180] sm:$0xff] %v601
      %618 = vst [vmem:[#allocation2 + $0x188] sm:$0xff] %v602
      %619 = vst [vmem:[#allocation2 + $0x190] sm:$0xff] %v603
      %620 = vst [vmem:[#allocation2 + $0x198] sm:$0xff] %v604
      %621 = vst [vmem:[#allocation2 + $0x1a0] sm:$0xff] %v605
      %622 = vst [vmem:[#allocation2 + $0x1a8] sm:$0xff] %v606
      %623 = vst [vmem:[#allocation2 + $0x1b0] sm:$0xff] %v607
      %624 = vst [vmem:[#allocation2 + $0x1b8] sm:$0xff] %v608
      %v625 = vld [vmem:[%s165] sm:$0xff]
      %v626 = vld [vmem:[%s165 + $0x8] sm:$0xff]
      %v627 = vld [vmem:[%s165 + $0x10] sm:$0xff]
      %v628 = vld [vmem:[%s165 + $0x18] sm:$0xff]
      %v629 = vld [vmem:[%s165 + $0x20] sm:$0xff]
      %v630 = vld [vmem:[%s165 + $0x28] sm:$0xff]
      %v631 = vld [vmem:[%s165 + $0x30] sm:$0xff]
      %v632 = vld [vmem:[%s165 + $0x38] sm:$0xff]
      %v633 = vld [vmem:[%s165 + $0x40] sm:$0xff]
      %v634 = vld [vmem:[%s165 + $0x48] sm:$0xff]
      %v635 = vld [vmem:[%s165 + $0x50] sm:$0xff]
      %v636 = vld [vmem:[%s165 + $0x58] sm:$0xff]
      %649 = vrot.lane.b32.xlu0 %v625, 107
      %v650 = vpop.permute.xlu0 %649
      %651 = vrot.lane.b32.xlu0 %v626, 107
      %v652 = vpop.permute.xlu0 %651
      %653 = vrot.lane.b32.xlu0 %v627, 107
      %v654 = vpop.permute.xlu0 %653
      %655 = vrot.lane.b32.xlu0 %v628, 107
      %v656 = vpop.permute.xlu0 %655
      %657 = vrot.lane.b32.xlu0 %v629, 107
      %v658 = vpop.permute.xlu0 %657
      %659 = vrot.lane.b32.xlu0 %v630, 107
      %v660 = vpop.permute.xlu0 %659
      %661 = vrot.lane.b32.xlu0 %v631, 107
      %v662 = vpop.permute.xlu0 %661
      %663 = vrot.lane.b32.xlu0 %v632, 107
      %v664 = vpop.permute.xlu0 %663
      %665 = vrot.lane.b32.xlu0 %v633, 107
      %v666 = vpop.permute.xlu0 %665
      %667 = vrot.lane.b32.xlu0 %v634, 107
      %v668 = vpop.permute.xlu0 %667
      %669 = vrot.lane.b32.xlu0 %v635, 107
      %v670 = vpop.permute.xlu0 %669
      %671 = vrot.lane.b32.xlu0 %v636, 107
      %v672 = vpop.permute.xlu0 %671
      %vm673 = vcmask 875520
      %v674 = vsel %vm673, %v650, %v652
      %v675 = vsel %vm673, %v652, %v654
      %v676 = vsel %vm673, %v656, %v658
      %v677 = vsel %vm673, %v658, %v660
      %v678 = vsel %vm673, %v662, %v664
      %v679 = vsel %vm673, %v664, %v666
      %v680 = vsel %vm673, %v668, %v670
      %v681 = vsel %vm673, %v670, %v672
      %690 = vst [vmem:[#allocation2 + $0x1c0] sm:$0xff] %v674
      %691 = vst [vmem:[#allocation2 + $0x1c8] sm:$0xff] %v675
      %692 = vst [vmem:[#allocation2 + $0x1d0] sm:$0xff] %v676
      %693 = vst [vmem:[#allocation2 + $0x1d8] sm:$0xff] %v677
      %694 = vst [vmem:[#allocation2 + $0x1e0] sm:$0xff] %v678
      %695 = vst [vmem:[#allocation2 + $0x1e8] sm:$0xff] %v679
      %696 = vst [vmem:[#allocation2 + $0x1f0] sm:$0xff] %v680
      %697 = vst [vmem:[#allocation2 + $0x1f8] sm:$0xff] %v681
      %v698 = vld [vmem:[%s165] sm:$0xff]
      %v699 = vld [vmem:[%s165 + $0x8] sm:$0xff]
      %v700 = vld [vmem:[%s165 + $0x10] sm:$0xff]
      %v701 = vld [vmem:[%s165 + $0x18] sm:$0xff]
      %v702 = vld [vmem:[%s165 + $0x20] sm:$0xff]
      %v703 = vld [vmem:[%s165 + $0x28] sm:$0xff]
      %v704 = vld [vmem:[%s165 + $0x30] sm:$0xff]
      %v705 = vld [vmem:[%s165 + $0x38] sm:$0xff]
      %v706 = vld [vmem:[%s165 + $0x40] sm:$0xff]
      %v707 = vld [vmem:[%s165 + $0x48] sm:$0xff]
      %v708 = vld [vmem:[%s165 + $0x50] sm:$0xff]
      %v709 = vld [vmem:[%s165 + $0x58] sm:$0xff]
      %722 = vrot.lane.b32.xlu0 %v698, 106
      %v723 = vpop.permute.xlu0 %722
      %724 = vrot.lane.b32.xlu0 %v699, 106
      %v725 = vpop.permute.xlu0 %724
      %726 = vrot.lane.b32.xlu0 %v700, 106
      %v727 = vpop.permute.xlu0 %726
      %728 = vrot.lane.b32.xlu0 %v701, 106
      %v729 = vpop.permute.xlu0 %728
      %730 = vrot.lane.b32.xlu0 %v702, 106
      %v731 = vpop.permute.xlu0 %730
      %732 = vrot.lane.b32.xlu0 %v703, 106
      %v733 = vpop.permute.xlu0 %732
      %734 = vrot.lane.b32.xlu0 %v704, 106
      %v735 = vpop.permute.xlu0 %734
      %736 = vrot.lane.b32.xlu0 %v705, 106
      %v737 = vpop.permute.xlu0 %736
      %738 = vrot.lane.b32.xlu0 %v706, 106
      %v739 = vpop.permute.xlu0 %738
      %740 = vrot.lane.b32.xlu0 %v707, 106
      %v741 = vpop.permute.xlu0 %740
      %742 = vrot.lane.b32.xlu0 %v708, 106
      %v743 = vpop.permute.xlu0 %742
      %744 = vrot.lane.b32.xlu0 %v709, 106
      %v745 = vpop.permute.xlu0 %744
      %vm746 = vcmask 867328
      %v747 = vsel %vm746, %v723, %v725
      %v748 = vsel %vm746, %v725, %v727
      %v749 = vsel %vm746, %v729, %v731
      %v750 = vsel %vm746, %v731, %v733
      %v751 = vsel %vm746, %v735, %v737
      %v752 = vsel %vm746, %v737, %v739
      %v753 = vsel %vm746, %v741, %v743
      %v754 = vsel %vm746, %v743, %v745
      %763 = vst [vmem:[#allocation2 + $0x200] sm:$0xff] %v747
      %764 = vst [vmem:[#allocation2 + $0x208] sm:$0xff] %v748
      %765 = vst [vmem:[#allocation2 + $0x210] sm:$0xff] %v749
      %766 = vst [vmem:[#allocation2 + $0x218] sm:$0xff] %v750
      %767 = vst [vmem:[#allocation2 + $0x220] sm:$0xff] %v751
      %768 = vst [vmem:[#allocation2 + $0x228] sm:$0xff] %v752
      %769 = vst [vmem:[#allocation2 + $0x230] sm:$0xff] %v753
      %770 = vst [vmem:[#allocation2 + $0x238] sm:$0xff] %v754
      %v771 = vld [vmem:[%s1] sm:$0xff]
      %v772 = vld [vmem:[%s1 + $0x8] sm:$0xff]
      %v773 = vld [vmem:[%s1 + $0x10] sm:$0xff]
      %v774 = vld [vmem:[%s1 + $0x18] sm:$0xff]
      %v775 = vld [vmem:[%s1 + $0x20] sm:$0xff]
      %v776 = vld [vmem:[%s1 + $0x28] sm:$0xff]
      %v777 = vld [vmem:[%s1 + $0x30] sm:$0xff]
      %v778 = vld [vmem:[%s1 + $0x38] sm:$0xff]
      %v779 = vld [vmem:[%s1 + $0x40] sm:$0xff]
      %v780 = vld [vmem:[%s1 + $0x48] sm:$0xff]
      %v781 = vld [vmem:[%s1 + $0x50] sm:$0xff]
      %v782 = vld [vmem:[%s1 + $0x58] sm:$0xff]
      %v783 = vld [vmem:[#allocation2] sm:$0xff]
      %v784 = vld [vmem:[#allocation2 + $0x8] sm:$0xff]
      %v785 = vld [vmem:[#allocation2 + $0x10] sm:$0xff]
      %v786 = vld [vmem:[#allocation2 + $0x18] sm:$0xff]
      %v787 = vld [vmem:[#allocation2 + $0x20] sm:$0xff]
      %v788 = vld [vmem:[#allocation2 + $0x28] sm:$0xff]
      %v789 = vld [vmem:[#allocation2 + $0x30] sm:$0xff]
      %v790 = vld [vmem:[#allocation2 + $0x38] sm:$0xff]
      %v791 = vld [vmem:[#allocation2 + $0x40] sm:$0xff]
      %v792 = vld [vmem:[#allocation2 + $0x48] sm:$0xff]
      %v793 = vld [vmem:[#allocation2 + $0x50] sm:$0xff]
      %v794 = vld [vmem:[#allocation2 + $0x58] sm:$0xff]
      %v795 = vld [vmem:[#allocation2 + $0x60] sm:$0xff]
      %v796 = vld [vmem:[#allocation2 + $0x68] sm:$0xff]
      %v797 = vld [vmem:[#allocation2 + $0x70] sm:$0xff]
      %v798 = vld [vmem:[#allocation2 + $0x78] sm:$0xff]
      %v799 = vld [vmem:[#allocation2 + $0x80] sm:$0xff]
      %v800 = vld [vmem:[#allocation2 + $0x88] sm:$0xff]
      %v801 = vld [vmem:[#allocation2 + $0x90] sm:$0xff]
      %v802 = vld [vmem:[#allocation2 + $0x98] sm:$0xff]
      %v803 = vld [vmem:[#allocation2 + $0xa0] sm:$0xff]
      %v804 = vld [vmem:[#allocation2 + $0xa8] sm:$0xff]
      %v805 = vld [vmem:[#allocation2 + $0xb0] sm:$0xff]
      %v806 = vld [vmem:[#allocation2 + $0xb8] sm:$0xff]
      %v807 = vld [vmem:[#allocation2 + $0xc0] sm:$0xff]
      %v808 = vld [vmem:[#allocation2 + $0xc8] sm:$0xff]
      %v809 = vld [vmem:[#allocation2 + $0xd0] sm:$0xff]
      %v810 = vld [vmem:[#allocation2 + $0xd8] sm:$0xff]
      %v811 = vld [vmem:[#allocation2 + $0xe0] sm:$0xff]
      %v812 = vld [vmem:[#allocation2 + $0xe8] sm:$0xff]
      %v813 = vld [vmem:[#allocation2 + $0xf0] sm:$0xff]
      %v814 = vld [vmem:[#allocation2 + $0xf8] sm:$0xff]
      %v815 = vld [vmem:[#allocation2 + $0x100] sm:$0xff]
      %v816 = vld [vmem:[#allocation2 + $0x108] sm:$0xff]
      %v817 = vld [vmem:[#allocation2 + $0x110] sm:$0xff]
      %v818 = vld [vmem:[#allocation2 + $0x118] sm:$0xff]
      %v819 = vld [vmem:[#allocation2 + $0x120] sm:$0xff]
      %v820 = vld [vmem:[#allocation2 + $0x128] sm:$0xff]
      %v821 = vld [vmem:[#allocation2 + $0x130] sm:$0xff]
      %v822 = vld [vmem:[#allocation2 + $0x138] sm:$0xff]
      %v823 = vld [vmem:[#allocation2 + $0x140] sm:$0xff]
      %v824 = vld [vmem:[#allocation2 + $0x148] sm:$0xff]
      %v825 = vld [vmem:[#allocation2 + $0x150] sm:$0xff]
      %v826 = vld [vmem:[#allocation2 + $0x158] sm:$0xff]
      %v827 = vld [vmem:[#allocation2 + $0x160] sm:$0xff]
      %v828 = vld [vmem:[#allocation2 + $0x168] sm:$0xff]
      %v829 = vld [vmem:[#allocation2 + $0x170] sm:$0xff]
      %v830 = vld [vmem:[#allocation2 + $0x178] sm:$0xff]
      %v831 = vld [vmem:[#allocation2 + $0x180] sm:$0xff]
      %v832 = vld [vmem:[#allocation2 + $0x188] sm:$0xff]
      %v833 = vld [vmem:[#allocation2 + $0x190] sm:$0xff]
      %v834 = vld [vmem:[#allocation2 + $0x198] sm:$0xff]
      %v835 = vld [vmem:[#allocation2 + $0x1a0] sm:$0xff]
      %v836 = vld [vmem:[#allocation2 + $0x1a8] sm:$0xff]
      %v837 = vld [vmem:[#allocation2 + $0x1b0] sm:$0xff]
      %v838 = vld [vmem:[#allocation2 + $0x1b8] sm:$0xff]
      %v839 = vld [vmem:[#allocation2 + $0x1c0] sm:$0xff]
      %v840 = vld [vmem:[#allocation2 + $0x1c8] sm:$0xff]
      %v841 = vld [vmem:[#allocation2 + $0x1d0] sm:$0xff]
      %v842 = vld [vmem:[#allocation2 + $0x1d8] sm:$0xff]
      %v843 = vld [vmem:[#allocation2 + $0x1e0] sm:$0xff]
      %v844 = vld [vmem:[#allocation2 + $0x1e8] sm:$0xff]
      %v845 = vld [vmem:[#allocation2 + $0x1f0] sm:$0xff]
      %v846 = vld [vmem:[#allocation2 + $0x1f8] sm:$0xff]
      %v847 = vld [vmem:[#allocation2 + $0x200] sm:$0xff]
      %v848 = vld [vmem:[#allocation2 + $0x208] sm:$0xff]
      %v849 = vld [vmem:[#allocation2 + $0x210] sm:$0xff]
      %v850 = vld [vmem:[#allocation2 + $0x218] sm:$0xff]
      %v851 = vld [vmem:[#allocation2 + $0x220] sm:$0xff]
      %v852 = vld [vmem:[#allocation2 + $0x228] sm:$0xff]
      %v853 = vld [vmem:[#allocation2 + $0x230] sm:$0xff]
      %v854 = vld [vmem:[#allocation2 + $0x238] sm:$0xff]
      %v855 = vld [vmem:[%s2] sm:$0xff]
      %v856 = vld [vmem:[%s2 + $0x8] sm:$0xff]
      %v857 = vld [vmem:[%s2 + $0x10] sm:$0xff]
      %v858 = vld [vmem:[%s2 + $0x18] sm:$0xff]
      %860 = vset.pattern.permute.xlu0 0
      %861 = vperm.xlu0 %860, %v855
      %v862 = vpop.permute.xlu0 %861
      %865 = vset.pattern.permute.xlu0 0
      %866 = vperm.xlu0 %865, %v856
      %v867 = vpop.permute.xlu0 %866
      %870 = vset.pattern.permute.xlu0 0
      %871 = vperm.xlu0 %870, %v857
      %v872 = vpop.permute.xlu0 %871
      %875 = vset.pattern.permute.xlu0 0
      %876 = vperm.xlu0 %875, %v858
      %v877 = vpop.permute.xlu0 %876
      %vm879 = vcmask 261120
      %v881 = vsel %vm879, %v773, 0
      %v884 = vsel %vm879, %v776, 0
      %v887 = vsel %vm879, %v779, 0
      %v890 = vsel %vm879, %v782, 0
      %892 = vmatprep.subr.mxu0 %v784
      %893 = vmatpush1.msra.mxu0 %v783
      %894 = vmatprep.subr.mxu0 %v786
      %895 = vmatpush1.msra.mxu0 %v785
      %896 = vmatprep.subr.mxu0 %v788
      %897 = vmatpush1.msra.mxu0 %v787
      %898 = vmatprep.subr.mxu0 %v790
      %899 = vmatpush1.msra.mxu0 %v789
      %900 = vmatprep.subr.mxu0 %v792
      %901 = vmatpush1.msra.mxu0 %v791
      %902 = vmatprep.subr.mxu0 %v794
      %903 = vmatpush1.msra.mxu0 %v793
      %904 = vmatprep.subr.mxu0 %v796
      %905 = vmatpush1.msra.mxu0 %v795
      %906 = vmatprep.subr.mxu0 %v798
      %907 = vmatpush1.msra.mxu0 %v797
      %908 = vmatprep.subr.mxu0 %v800
      %909 = vmatpush1.msra.mxu0 %v799
      %910 = vmatprep.subr.mxu0 %v802
      %911 = vmatpush1.msra.mxu0 %v801
      %912 = vmatprep.subr.mxu0 %v804
      %913 = vmatpush1.msra.mxu0 %v803
      %914 = vmatprep.subr.mxu0 %v806
      %915 = vmatpush1.msra.mxu0 %v805
      %916 = vmatprep.subr.mxu0 %v808
      %917 = vmatpush1.msra.mxu0 %v807
      %918 = vmatprep.subr.mxu0 %v810
      %919 = vmatpush1.msra.mxu0 %v809
      %920 = vmatprep.subr.mxu0 %v812
      %921 = vmatpush1.msra.mxu0 %v811
      %922 = vmatprep.subr.mxu0 %v814
      %923 = vmatpush1.msra.mxu0 %v813
      %924 = vmatprep.subr.mxu0 %v816
      %925 = vmatpush1.msra.mxu0 %v815
      %926 = vmatprep.subr.mxu0 %v818
      %927 = vmatpush1.msra.mxu0 %v817
      %928 = vmatprep.subr.mxu0 %v820
      %929 = vmatpush1.msra.mxu0 %v819
      %930 = vmatprep.subr.mxu0 %v822
      %931 = vmatpush1.msra.mxu0 %v821
      %932 = vmatprep.subr.mxu0 %v824
      %933 = vmatpush1.msra.mxu0 %v823
      %934 = vmatprep.subr.mxu0 %v826
      %935 = vmatpush1.msra.mxu0 %v825
      %936 = vmatprep.subr.mxu0 %v828
      %937 = vmatpush1.msra.mxu0 %v827
      %938 = vmatprep.subr.mxu0 %v830
      %939 = vmatpush1.msra.mxu0 %v829
      %940 = vmatprep.subr.mxu0 %v832
      %941 = vmatpush1.msra.mxu0 %v831
      %942 = vmatprep.subr.mxu0 %v834
      %943 = vmatpush1.msra.mxu0 %v833
      %944 = vmatprep.subr.mxu0 %v836
      %945 = vmatpush1.msra.mxu0 %v835
      %946 = vmatprep.subr.mxu0 %v838
      %947 = vmatpush1.msra.mxu0 %v837
      %948 = vmatprep.subr.mxu0 %v840
      %949 = vmatpush1.msra.mxu0 %v839
      %950 = vmatprep.subr.mxu0 %v842
      %951 = vmatpush1.msra.mxu0 %v841
      %952 = vmatprep.subr.mxu0 %v844
      %953 = vmatpush1.msra.mxu0 %v843
      %954 = vmatprep.subr.mxu0 %v846
      %955 = vmatpush1.msra.mxu0 %v845
      %956 = vmatprep.mubr.f32.mxu0 %v772
      %957 = vmatmul.mubr.f32.gmra.mrb[0].mxu0 %v771
      %v958 = vpop.f32.mrb[0].mxu0
      %v959 = vadd.f32 %v862, %v958
      %v960 = vpop.f32.mrb[0].mxu0
      %v961 = vadd.f32 %v862, %v960
      %962 = vmatprep.mubr.f32.mxu0 %v775
      %963 = vmatmul.mubr.f32.gmra.mrb[0].mxu0 %v774
      %v964 = vpop.f32.mrb[0].mxu0
      %v965 = vadd.f32 %v867, %v964
      %v966 = vpop.f32.mrb[0].mxu0
      %v967 = vadd.f32 %v867, %v966
      %968 = vmatprep.mubr.f32.mxu0 %v778
      %969 = vmatmul.mubr.f32.gmra.mrb[0].mxu0 %v777
      %v970 = vpop.f32.mrb[0].mxu0
      %v971 = vadd.f32 %v872, %v970
      %v972 = vpop.f32.mrb[0].mxu0
      %v973 = vadd.f32 %v872, %v972
      %974 = vmatprep.mubr.f32.mxu0 %v781
      %975 = vmatmul.mubr.f32.gmra.mrb[0].mxu0 %v780
      %v976 = vpop.f32.mrb[0].mxu0
      %v977 = vadd.f32 %v877, %v976
      %v978 = vpop.f32.mrb[0].mxu0
      %v979 = vadd.f32 %v877, %v978
      %980 = vdwg.mxu0
      %981 = vmatprep.subr.mxu0 %v848
      %982 = vmatpush1.msra.mxu0 %v847
      %983 = vmatprep.subr.mxu0 %v850
      %984 = vmatpush1.msra.mxu0 %v849
      %985 = vmatprep.subr.mxu0 %v852
      %986 = vmatpush1.msra.mxu0 %v851
      %987 = vmatprep.subr.mxu0 %v854
      %988 = vmatpush1.msra.mxu0 %v853
      %989 = vmatprep.subr.mxu0 0.0
      %990 = vmatpush1.msra.mxu0 0.0
      %991 = vmatprep.subr.mxu0 0.0
      %992 = vmatpush1.msra.mxu0 0.0
      %993 = vmatprep.subr.mxu0 0.0
      %994 = vmatpush1.msra.mxu0 0.0
      %995 = vmatprep.subr.mxu0 0.0
      %996 = vmatpush1.msra.mxu0 0.0
      %997 = vmatprep.subr.mxu0 0.0
      %998 = vmatpush1.msra.mxu0 0.0
      %999 = vmatprep.subr.mxu0 0.0
      %1000 = vmatpush1.msra.mxu0 0.0
      %1001 = vmatprep.subr.mxu0 0.0
      %1002 = vmatpush1.msra.mxu0 0.0
      %1003 = vmatprep.subr.mxu0 0.0
      %1004 = vmatpush1.msra.mxu0 0.0
      %1005 = vmatprep.subr.mxu0 0.0
      %1006 = vmatpush1.msra.mxu0 0.0
      %1007 = vmatprep.subr.mxu0 0.0
      %1008 = vmatpush1.msra.mxu0 0.0
      %1009 = vmatprep.subr.mxu0 0.0
      %1010 = vmatpush1.msra.mxu0 0.0
      %1011 = vmatprep.subr.mxu0 0.0
      %1012 = vmatpush1.msra.mxu0 0.0
      %1013 = vmatprep.subr.mxu0 0.0
      %1014 = vmatpush1.msra.mxu0 0.0
      %1015 = vmatprep.subr.mxu0 0.0
      %1016 = vmatpush1.msra.mxu0 0.0
      %1017 = vmatprep.subr.mxu0 0.0
      %1018 = vmatpush1.msra.mxu0 0.0
      %1019 = vmatprep.subr.mxu0 0.0
      %1020 = vmatpush1.msra.mxu0 0.0
      %1021 = vmatprep.subr.mxu0 0.0
      %1022 = vmatpush1.msra.mxu0 0.0
      %1023 = vmatprep.subr.mxu0 0.0
      %1024 = vmatpush1.msra.mxu0 0.0
      %1025 = vmatprep.subr.mxu0 0.0
      %1026 = vmatpush1.msra.mxu0 0.0
      %1027 = vmatprep.subr.mxu0 0.0
      %1028 = vmatpush1.msra.mxu0 0.0
      %1029 = vmatprep.subr.mxu0 0.0
      %1030 = vmatpush1.msra.mxu0 0.0
      %1031 = vmatprep.subr.mxu0 0.0
      %1032 = vmatpush1.msra.mxu0 0.0
      %1033 = vmatprep.subr.mxu0 0.0
      %1034 = vmatpush1.msra.mxu0 0.0
      %1035 = vmatprep.subr.mxu0 0.0
      %1036 = vmatpush1.msra.mxu0 0.0
      %1037 = vmatprep.subr.mxu0 0.0
      %1038 = vmatpush1.msra.mxu0 0.0
      %1039 = vmatprep.subr.mxu0 0.0
      %1040 = vmatpush1.msra.mxu0 0.0
      %1041 = vmatprep.subr.mxu0 0.0
      %1042 = vmatpush1.msra.mxu0 0.0
      %1043 = vmatprep.subr.mxu0 0.0
      %1044 = vmatpush1.msra.mxu0 0.0
      %1045 = vmatprep.mubr.f32.mxu0 0.0
      %1046 = vmatmul.mubr.f32.gmra.mrb[0].mxu0 %v881
      %v1047 = vpop.f32.mrb[0].mxu0
      %v1048 = vadd.f32 %v959, %v1047
      %v1049 = vpop.f32.mrb[0].mxu0
      %v1050 = vadd.f32 %v961, %v1049
      %1051 = vmatprep.mubr.f32.mxu0 0.0
      %1052 = vmatmul.mubr.f32.gmra.mrb[0].mxu0 %v884
      %v1053 = vpop.f32.mrb[0].mxu0
      %v1054 = vadd.f32 %v965, %v1053
      %v1055 = vpop.f32.mrb[0].mxu0
      %v1056 = vadd.f32 %v967, %v1055
      %1057 = vmatprep.mubr.f32.mxu0 0.0
      %1058 = vmatmul.mubr.f32.gmra.mrb[0].mxu0 %v887
      %v1059 = vpop.f32.mrb[0].mxu0
      %v1060 = vadd.f32 %v971, %v1059
      %v1061 = vpop.f32.mrb[0].mxu0
      %v1062 = vadd.f32 %v973, %v1061
      %1063 = vmatprep.mubr.f32.mxu0 0.0
      %1064 = vmatmul.mubr.f32.gmra.mrb[0].mxu0 %v890
      %v1065 = vpop.f32.mrb[0].mxu0
      %v1066 = vadd.f32 %v977, %v1065
      %v1067 = vpop.f32.mrb[0].mxu0
      %v1068 = vadd.f32 %v979, %v1067
      %1069 = vdwg.mxu0
      %1070 = vst [vmem:[%s170] sm:$0xff] %v1048
      %1071 = vst [vmem:[%s170 + $0x8] sm:$0xff] %v1050
      %1072 = vst [vmem:[%s170 + $0x10] sm:$0xff] %v1054
      %1073 = vst [vmem:[%s170 + $0x18] sm:$0xff] %v1056
      %1074 = vst [vmem:[%s170 + $0x20] sm:$0xff] %v1060
      %1075 = vst [vmem:[%s170 + $0x28] sm:$0xff] %v1062
      %1076 = vst [vmem:[%s170 + $0x30] sm:$0xff] %v1066
      %1077 = vst [vmem:[%s170 + $0x38] sm:$0xff] %v1068
      %p1078 = scmp.lt.s32.totalorder %s14, 1
      %s1079 = scalar_select %p1078, %s14, 1
      %s1080 = smul.addr %s1079, 8
      %s1081 = smul.addr %s1080, 8
      %s1082 = scalar_lea.vmem %s3, %s1081
      // Predicated region
      $region33: #{unary_mccnn_forward.7} parent=31 // pred_check
        %p1083 = pneg %p100
      $region34: #{unary_mccnn_forward.7} parent=31 // pred_check_branch
        %1085 = sbr.rel (%p1083) target = $region36
      $region35: #{unary_mccnn_forward.7} parent=31 // pred_region
        _
      $region36: #{unary_mccnn_forward.7} parent=31 // pred_fallthru
        _
    $region32: #{unary_mccnn_forward.7} parent=5 // pred_fallthru
      _
    %p1086 = scmp.le.s32.totalorder 2, %s9
    // Predicated region
    $region37: #{unary_mccnn_forward.7} parent=5 // pred_check
      %p1087 = pneg %p1086
    $region38: #{unary_mccnn_forward.7} parent=5 // pred_check_branch
      %1089 = sbr.rel (%p1087) target = $region40
    $region39: #{unary_mccnn_forward.7} parent=5 // pred_region
      %s1090 = ssub.s32 %s9, 2
      // Predicated region
      $region41: #{unary_mccnn_forward.7} parent=39 // pred_check
        %p1091 = pneg %p106
      $region42: #{unary_mccnn_forward.7} parent=39 // pred_check_branch
        %1093 = sbr.rel (%p1091) target = $region44
      $region43: #{unary_mccnn_forward.7} parent=39 // pred_region
        %p1094 = scmp.lt.s32.totalorder %s15, 1
        %s1095 = scalar_select %p1094, %s15, 1
        %s1096 = smul.addr %s1095, 8
        %s1097 = smul.addr %s1096, 8
        %s1098 = scalar_lea.vmem %s3, %s1097
      $region44: #{unary_mccnn_forward.7} parent=39 // pred_fallthru
        _
    $region40: #{unary_mccnn_forward.7} parent=5 // pred_fallthru
      _
  $region6: #{unary_mccnn_forward.7} parent=0 // loop_footer
    %s13 = sadd.s32 1, %s9
  $region7: #{unary_mccnn_forward.7} parent=0 // loop_footer_branch
    %8 = sbr.rel target = $region3
  $region8: #{unary_mccnn_forward.7} parent=0 // loop_exit
    _

</llo_original>
